<compile_context>
chip_gen: v7x
topology: tpu7x:2x2x1
jax: 0.10.0
libtpu: 0.0.40
codegen_flags: <defaults>
</compile_context>

<pallas_src>
import functools

import jax
import jax.numpy as jnp
from jax.experimental import pallas as pl
from jax.experimental.pallas import tpu as pltpu

BN_EPS = 1e-5                      # PyTorch BatchNorm2d default
VMEM_LIMIT = 32 * 1024 * 1024      # safe on v5e/v6e (128 MiB phys) and v7x (64 MiB phys)


# ----------------------------- small helpers -------------------------------

def _pick_tile(n, target):
    """Largest power-of-two multiple of 8 that divides n and is <= target (else full n)."""
    best = n
    t = 8
    while t <= min(n, target):
        if n % t == 0:
            best = t
        t *= 2
    return best


def _mosaic(semantics):
    return pltpu.CompilerParams(dimension_semantics=semantics,
                                vmem_limit_bytes=VMEM_LIMIT)


# ----------------------------- Pallas kernels ------------------------------

def _matmul_kernel(a_ref, w_ref, o_ref):
    # bf16 x bf16 -> f32 accumulation on the MXU.
    o_ref[...] = jnp.dot(a_ref[...], w_ref[...], preferred_element_type=jnp.float32)


def matmul(a, w, *, tile_target=512):
    m, k = a.shape
    k2, n = w.shape
    assert k == k2
    tm = _pick_tile(m, tile_target)
    return pl.pallas_call(
        _matmul_kernel,
        grid=(m // tm,),
        in_specs=[pl.BlockSpec((tm, k), lambda i: (i, 0)),
                  pl.BlockSpec((k, n), lambda i: (0, 0))],
        out_specs=pl.BlockSpec((tm, n), lambda i: (i, 0)),
        out_shape=jax.ShapeDtypeStruct((m, n), jnp.float32),
        compiler_params=_mosaic(("parallel",)),
    )(a, w)


def _stats_kernel(x_ref, o_ref):
    # Resident (2, lanes) accumulator: row0 = sum, row1 = sum of squares.
    @pl.when(pl.program_id(0) == 0)
    def _():
        o_ref[...] = jnp.zeros_like(o_ref)
    x = x_ref[...]
    o_ref[...] += jnp.concatenate(
        [jnp.sum(x, axis=0, keepdims=True),
         jnp.sum(x * x, axis=0, keepdims=True)], axis=0)


def channel_stats(x, *, tile_target=64):
    mr, lw = x.shape
    tm = _pick_tile(mr, tile_target)
    return pl.pallas_call(
        _stats_kernel,
        grid=(mr // tm,),
        in_specs=[pl.BlockSpec((tm, lw), lambda i: (i, 0))],
        out_specs=pl.BlockSpec((2, lw), lambda i: (0, 0)),
        out_shape=jax.ShapeDtypeStruct((2, lw), jnp.float32),
        compiler_params=_mosaic(("arbitrary",)),      # reduction axis
    )(x)


def _affine_elu_kernel(x_ref, s_ref, b_ref, o_ref):
    # Fused BatchNorm-apply (precomputed per-lane scale/shift) + ELU.
    t = x_ref[...] * s_ref[...] + b_ref[...]
    o_ref[...] = jnp.where(t > 0, t, jnp.exp(jnp.minimum(t, 0.0)) - 1.0)


def affine_elu(x, scale, shift, *, tile_target=512):
    mr, lw = x.shape
    tm = _pick_tile(mr, tile_target)
    return pl.pallas_call(
        _affine_elu_kernel,
        grid=(mr // tm,),
        in_specs=[pl.BlockSpec((tm, lw), lambda i: (i, 0)),
                  pl.BlockSpec((1, lw), lambda i: (0, 0)),
                  pl.BlockSpec((1, lw), lambda i: (0, 0))],
        out_specs=pl.BlockSpec((tm, lw), lambda i: (i, 0)),
        out_shape=jax.ShapeDtypeStruct((mr, lw), jnp.float32),
        compiler_params=_mosaic(("parallel",)),
    )(x, scale, shift)


def _residual_affine_elu_kernel(x_ref, r_ref, s_ref, b_ref, o_ref):
    # Fused: last BN-apply + residual add (+ up-conv bias folded into shift) + ELU.
    t = r_ref[...] + x_ref[...] * s_ref[...] + b_ref[...]
    o_ref[...] = jnp.where(t > 0, t, jnp.exp(jnp.minimum(t, 0.0)) - 1.0)


def residual_affine_elu(x, resid, scale, shift, *, tile_target=512):
    mr, lw = x.shape
    tm = _pick_tile(mr, tile_target)
    return pl.pallas_call(
        _residual_affine_elu_kernel,
        grid=(mr // tm,),
        in_specs=[pl.BlockSpec((tm, lw), lambda i: (i, 0)),
                  pl.BlockSpec((tm, lw), lambda i: (i, 0)),
                  pl.BlockSpec((1, lw), lambda i: (0, 0)),
                  pl.BlockSpec((1, lw), lambda i: (0, 0))],
        out_specs=pl.BlockSpec((tm, lw), lambda i: (i, 0)),
        out_shape=jax.ShapeDtypeStruct((mr, lw), jnp.float32),
        compiler_params=_mosaic(("parallel",)),
    )(x, resid, scale, shift)


def _head_softmax2_kernel(x_ref, dw_ref, db_ref, o_ref):
    # 1x1 conv to 2 classes + softmax == sigmoid of the logit difference.
    d = jnp.sum(x_ref[...] * dw_ref[...], axis=1, keepdims=True) + db_ref[...]
    p0 = 1.0 / (1.0 + jnp.exp(-d))
    lane = jax.lax.broadcasted_iota(jnp.int32, o_ref.shape, 1)
    o_ref[...] = jnp.where(lane == 0, p0, 1.0 - p0)


def conv1x1_softmax2(x, dw, db, *, tile_target=512):
    m, c = x.shape
    tm = _pick_tile(m, tile_target)
    return pl.pallas_call(
        _head_softmax2_kernel,
        grid=(m // tm,),
        in_specs=[pl.BlockSpec((tm, c), lambda i: (i, 0)),
                  pl.BlockSpec((1, c), lambda i: (0, 0)),
                  pl.BlockSpec((1, 1), lambda i: (0, 0))],
        out_specs=pl.BlockSpec((tm, 2), lambda i: (i, 0)),
        out_shape=jax.ShapeDtypeStruct((m, 2), jnp.float32),
        compiler_params=_mosaic(("parallel",)),
    )(x, dw, db)


# ------------------------------ JAX glue ------------------------------------

def _im2col3(xp, oh, ow):
    # xp: (N, Hp, Wp, C) zero-padded -> (N*oh*ow, 9*C), inner order (kh, kw, c).
    n, _, _, c = xp.shape
    cols = [xp[:, kh:kh + oh, kw:kw + ow, :] for kh in range(3) for kw in range(3)]
    patches = jnp.stack(cols, axis=3)            # (N, oh, ow, 9, C)
    return patches.reshape(n * oh * ow, 9 * c)


def build_up_weight(w_t):
    # ConvTranspose2d(k=4,s=2,p=1) as 4 parity-phase 2x2 forward convs embedded
    # into one (9*Cin, 4*Cout) matrix matching a 3x3 im2col of the 1-padded input.
    cin, cout = w_t.shape[0], w_t.shape[1]
    sel = ((3, 1), (2, 0))     # parity -> kernel index for tap offset 0 / 1
    w = jnp.zeros((3, 3, cin, 2, 2, cout), jnp.float32)
    for py in range(2):
        for px in range(2):
            for dy in range(2):
                for dx in range(2):
                    kh, kw = sel[py][dy], sel[px][dx]
                    w = w.at[py + dy, px + dx, :, py, px, :].set(w_t[:, :, kh, kw])
    return w.reshape(9 * cin, 4 * cout)


# ------------------------- UpTransition forward -----------------------------

def init_params(key, inchan, outchan, layer, last):
    keys = jax.random.split(key, 4 + 2 * layer)
    params = {
        "up_w": 0.1 * jax.random.normal(keys[0], (inchan, outchan, 4, 4), jnp.float32),
        "up_b": 0.1 * jax.random.normal(keys[1], (outchan,), jnp.float32),
        "bn_gamma": jnp.ones((outchan,), jnp.float32),
        "bn_beta": jnp.zeros((outchan,), jnp.float32),
        "layers": [],
    }
    for i in range(layer):
        params["layers"].append({
            "w": 0.1 * jax.random.normal(keys[2 + 2 * i], (outchan, outchan, 3, 3), jnp.float32),
            "b": 0.1 * jax.random.normal(keys[3 + 2 * i], (outchan,), jnp.float32),
            "gamma": jnp.ones((outchan,), jnp.float32),
            "beta": jnp.zeros((outchan,), jnp.float32),
        })
    if last:
        params["conv1_w"] = 0.1 * jax.random.normal(keys[2 + 2 * layer], (2, outchan, 1, 1), jnp.float32)
        params["conv1_b"] = 0.1 * jax.random.normal(keys[3 + 2 * layer], (2,), jnp.float32)
    return params


def up_transition_forward(params, x_nchw, last):
    x = jnp.transpose(x_nchw, (0, 2, 3, 1)).astype(jnp.float32)   # NCHW -> NHWC
    n, h, w, cin = x.shape
    cout = params["bn_gamma"].shape[0]
    oh, ow = 2 * h, 2 * w
    m = n * oh * ow

    # --- ConvTranspose2d(4,4,s=2,p=1): single 3x3-tap GEMM producing 4 parities.
    # Bias is NOT added here: it cancels in the training-mode BN path and is
    # folded into the residual kernel's shift below.
    xp = jnp.pad(x, ((0, 0), (1, 1), (1, 1), (0, 0)))
    cols = _im2col3(xp, h, w).astype(jnp.bfloat16)
    w_up = build_up_weight(params["up_w"]).astype(jnp.bfloat16)
    g = matmul(cols, w_up)                                        # (n*h*w, 4*cout) f32
    g = g.reshape(n, h, w, 2, 2, cout)
    out1 = jnp.transpose(g, (0, 1, 3, 2, 4, 5)).reshape(n, oh, ow, cout)

    # Lane-dense view: pack 128//C spatial positions onto the 128-lane axis.
    gpack = 128 // cout if (128 % cout == 0 and m % max(1, 128 // cout) == 0) else 1
    mr, lw = m // gpack, gpack * cout

    def to_ld(t):
        return t.reshape(mr, lw)

    def tile_ch(v):
        return jnp.tile(v, gpack).reshape(1, lw)

    def bn_scale_shift(x_ld, gamma, beta):
        st = channel_stats(x_ld)                                  # (2, lw)
        s = st[0].reshape(gpack, cout).sum(axis=0)
        ss = st[1].reshape(gpack, cout).sum(axis=0)
        mean = s / m
        var = jnp.maximum(ss / m - mean * mean, 0.0)              # biased variance
        inv = jax.lax.rsqrt(var + BN_EPS)
        scale = gamma * inv
        shift = beta - mean * scale
        return tile_ch(scale), tile_ch(shift)

    out1_ld = to_ld(out1)
    gammas = [params["bn_gamma"]] + [lp["gamma"] for lp in params["layers"]]
    betas = [params["bn_beta"]] + [lp["beta"] for lp in params["layers"]]

    pre = out1_ld                                                 # input of BN_i
    for i, lp in enumerate(params["layers"]):                     # [ELU, Conv3x3, BN] * layer
        scale, shift = bn_scale_shift(pre, gammas[i], betas[i])
        act = affine_elu(pre, scale, shift)                       # BN_i apply + ELU fused
        a_img = act.reshape(n, oh, ow, cout)
        ap = jnp.pad(a_img, ((0, 0), (1, 1), (1, 1), (0, 0)))
        cols_i = _im2col3(ap, oh, ow).astype(jnp.bfloat16)
        w_mat = jnp.transpose(lp["w"], (2, 3, 1, 0)).reshape(9 * cout, cout).astype(jnp.bfloat16)
        conv = matmul(cols_i, w_mat)                              # conv bias dropped (cancels in BN)
        pre = to_ld(conv)

    scale, shift = bn_scale_shift(pre, gammas[-1], betas[-1])
    shift = shift + tile_ch(params["up_b"])                       # fold the up-conv bias back in
    out = residual_affine_elu(pre, out1_ld, scale, shift)         # ELU(out1 + BN_last(conv)) fused

    if last:
        x_flat = out.reshape(m, cout)
        w1 = params["conv1_w"].reshape(2, cout)
        dw = (w1[0] - w1[1]).reshape(1, cout)
        db = (params["conv1_b"][0] - params["conv1_b"][1]).reshape(1, 1)
        return conv1x1_softmax2(x_flat, dw, db)                   # (m, 2) probabilities
    return jnp.transpose(out.reshape(n, oh, ow, cout), (0, 3, 1, 2))


# --------------------------- pure-JAX reference ------------------------------

def _elu_ref(x):
    return jnp.where(x > 0, x, jnp.expm1(jnp.minimum(x, 0.0)))


def _bn_ref(x_nhwc, gamma, beta):
    mean = jnp.mean(x_nhwc, axis=(0, 1, 2))
    var = jnp.mean(jnp.square(x_nhwc - mean), axis=(0, 1, 2))
    return (x_nhwc - mean) * jax.lax.rsqrt(var + BN_EPS) * gamma + beta


def up_transition_ref(params, x_nchw, last):
    x = jnp.transpose(x_nchw, (0, 2, 3, 1)).astype(jnp.float32)
    w_t = params["up_w"]
    w_hwio = jnp.transpose(w_t[:, :, ::-1, ::-1], (2, 3, 0, 1))
    out1 = jax.lax.conv_general_dilated(
        x, w_hwio, window_strides=(1, 1), padding=((2, 2), (2, 2)),
        lhs_dilation=(2, 2), rhs_dilation=(1, 1),
        dimension_numbers=("NHWC", "HWIO", "NHWC")) + params["up_b"]
    out = _bn_ref(out1, params["bn_gamma"], params["bn_beta"])
    for lp in params["layers"]:
        out = _elu_ref(out)
        w3 = jnp.transpose(lp["w"], (2, 3, 1, 0))
        out = jax.lax.conv_general_dilated(
            out, w3, window_strides=(1, 1), padding=((1, 1), (1, 1)),
            dimension_numbers=("NHWC", "HWIO", "NHWC")) + lp["b"]
        out = _bn_ref(out, lp["gamma"], lp["beta"])
    out = _elu_ref(out1 + out)
    if last:
        w1 = params["conv1_w"].reshape(2, -1)
        logits = jnp.einsum("nhwc,kc->nhwk", out, w1) + params["conv1_b"]
        return jax.nn.softmax(logits.reshape(-1, 2), axis=1)
    return jnp.transpose(out, (0, 3, 1, 2))


# ---------------------------------- main -------------------------------------

if __name__ == "__main__":
    key = jax.random.PRNGKey(0)
    kx, kp = jax.random.split(key)

    N, Cin, H, W = 2, 4, 16, 16
    OUTCHAN, LAYER, LAST = 8, 2, True

    x = jax.random.normal(kx, (N, Cin, H, W), jnp.float32)
    params = init_params(kp, Cin, OUTCHAN, LAYER, LAST)

    fwd = jax.jit(functools.partial(up_transition_forward, last=LAST))
    out = jax.block_until_ready(fwd(params, x))

    M = N * (2 * H) * (2 * W)
    assert out.shape == (M, 2), out.shape
    assert bool(jnp.all(jnp.isfinite(out)))
    assert bool(jnp.allclose(jnp.sum(out, axis=1), 1.0, atol=1e-5))

    # Validate against a pure-JAX reference (bf16 GEMM inputs => loose tolerance).
    ref = up_transition_ref(params, x, LAST)
    err = float(jnp.max(jnp.abs(out - ref)))
    assert err < 5e-2, f"max |pallas - ref| = {err}"
    print("KERNEL_OK")
</pallas_src>

<mosaic_0001>
module attributes {stable_mosaic.version = 11 : i64} {
  func.func @_matmul_kernel(%arg0: i32, %arg1: memref<512x36xbf16, #tpu.memory_space<vmem>>, %arg2: memref<36x32xbf16, #tpu.memory_space<vmem>>, %arg3: memref<512x32xf32, #tpu.memory_space<vmem>>) attributes {dimension_semantics = [#tpu.dimension_semantics<parallel>], iteration_bounds = array<i64: 1>, scalar_prefetch = 0 : i64, scratch_operands = 0 : i64, tpu.core_type = #tpu.core_type<tc>, window_params = [{transform_indices = @transform_0, window_bounds = array<i64: 512, 36>}, {pipeline_mode = #tpu.pipeline_mode<synchronous>, transform_indices = @transform_1, window_bounds = array<i64: 36, 32>}, {transform_indices = @transform_2, window_bounds = array<i64: 512, 32>}]} {
    %c0 = arith.constant 0 : index
    %c0_0 = arith.constant 0 : index
    %0 = vector.load %arg1[%c0, %c0_0] : memref<512x36xbf16, #tpu.memory_space<vmem>>, vector<512x36xbf16>
    %c0_1 = arith.constant 0 : index
    %c0_2 = arith.constant 0 : index
    %1 = vector.load %arg2[%c0_1, %c0_2] : memref<36x32xbf16, #tpu.memory_space<vmem>>, vector<36x32xbf16>
    %cst = arith.constant dense<0.000000e+00> : vector<512x32xf32>
    %2 = tpu.matmul %0, %1, %cst {dimension_numbers = #tpu.dot_dimension_numbers<[1], [0], [0], [1], [0, 0, 1, 1], [], []>} : vector<512x36xbf16>, vector<36x32xbf16>, vector<512x32xf32> -> vector<512x32xf32>
    %c0_3 = arith.constant 0 : index
    %c0_4 = arith.constant 0 : index
    %3 = vector.load %arg3[%c0_3, %c0_4] : memref<512x32xf32, #tpu.memory_space<vmem>>, vector<512x32xf32>
    tpu.vector_store %arg3[%c0_3, %c0_4], %2 {strides = array<i32>} : memref<512x32xf32, #tpu.memory_space<vmem>>, vector<512x32xf32>,
    return
  }
  func.func @transform_0(%arg0: i32) -> (i32, i32) {
    %c0_i32 = arith.constant 0 : i32
    %c0_i32_0 = arith.constant 0 : i32
    return %arg0, %c0_i32 : i32, i32
  }
  func.func @transform_1(%arg0: i32) -> (i32, i32) {
    %c0_i32 = arith.constant 0 : i32
    %c0_i32_0 = arith.constant 0 : i32
    %c0_i32_1 = arith.constant 0 : i32
    return %c0_i32, %c0_i32_0 : i32, i32
  }
  func.func @transform_2(%arg0: i32) -> (i32, i32) {
    %c0_i32 = arith.constant 0 : i32
    %c0_i32_0 = arith.constant 0 : i32
    return %arg0, %c0_i32 : i32, i32
  }
}

module attributes {stable_mosaic.version = 11 : i64} {
  func.func @_stats_kernel(%arg0: i32, %arg1: memref<64x128xf32, #tpu.memory_space<vmem>>, %arg2: memref<2x128xf32, #tpu.memory_space<vmem>>) attributes {dimension_semantics = [#tpu.dimension_semantics<arbitrary>], iteration_bounds = array<i64: 2>, scalar_prefetch = 0 : i64, scratch_operands = 0 : i64, tpu.core_type = #tpu.core_type<tc>, window_params = [{transform_indices = @transform_0, window_bounds = array<i64: 64, 128>}, {pipeline_mode = #tpu.pipeline_mode<synchronous>, transform_indices = @transform_1, window_bounds = array<i64: 2, 128>}]} {
    %c0_i32 = arith.constant 0 : i32
    %0 = arith.cmpi eq, %arg0, %c0_i32 : i32
    %1 = arith.extui %0 : i1 to i32
    %c0_i32_0 = arith.constant 0 : i32
    %2 = arith.cmpi ne, %1, %c0_i32_0 : i32
    scf.if %2 {
      %cst_7 = arith.constant 0.000000e+00 : f32
      %13 = vector.broadcast %cst_7 : f32 to vector<2x128xf32>
      %c0_8 = arith.constant 0 : index
      %c0_9 = arith.constant 0 : index
      %14 = vector.load %arg2[%c0_8, %c0_9] : memref<2x128xf32, #tpu.memory_space<vmem>>, vector<2x128xf32>
      tpu.vector_store %arg2[%c0_8, %c0_9], %13 {strides = array<i32>} : memref<2x128xf32, #tpu.memory_space<vmem>>, vector<2x128xf32>,
    } else {
    }
    %c0 = arith.constant 0 : index
    %c0_1 = arith.constant 0 : index
    %3 = vector.load %arg1[%c0, %c0_1] : memref<64x128xf32, #tpu.memory_space<vmem>>, vector<64x128xf32>
    %c0_2 = arith.constant 0 : index
    %c0_3 = arith.constant 0 : index
    %4 = vector.load %arg2[%c0_2, %c0_3] : memref<2x128xf32, #tpu.memory_space<vmem>>, vector<2x128xf32>
    %cst = arith.constant dense<0.000000e+00> : vector<128xf32>
    %5 = vector.multi_reduction <add>, %3, %cst [0] : vector<64x128xf32> to vector<128xf32>
    %6 = vector.shape_cast %5 : vector<128xf32> to vector<1x128xf32>
    %7 = arith.mulf %3, %3 : vector<64x128xf32>
    %cst_4 = arith.constant dense<0.000000e+00> : vector<128xf32>
    %8 = vector.multi_reduction <add>, %7, %cst_4 [0] : vector<64x128xf32> to vector<128xf32>
    %9 = vector.shape_cast %8 : vector<128xf32> to vector<1x128xf32>
    %10 = tpu.concatenate %6, %9 in 0 : vector<1x128xf32>, vector<1x128xf32> -> vector<2x128xf32>
    %11 = arith.addf %4, %10 : vector<2x128xf32>
    %c0_5 = arith.constant 0 : index
    %c0_6 = arith.constant 0 : index
    %12 = vector.load %arg2[%c0_5, %c0_6] : memref<2x128xf32, #tpu.memory_space<vmem>>, vector<2x128xf32>
    tpu.vector_store %arg2[%c0_5, %c0_6], %11 {strides = array<i32>} : memref<2x128xf32, #tpu.memory_space<vmem>>, vector<2x128xf32>,
    return
  }
  func.func @transform_0(%arg0: i32) -> (i32, i32) {
    %c0_i32 = arith.constant 0 : i32
    %c0_i32_0 = arith.constant 0 : i32
    return %arg0, %c0_i32 : i32, i32
  }
  func.func @transform_1(%arg0: i32) -> (i32, i32) {
    %c0_i32 = arith.constant 0 : i32
    %c0_i32_0 = arith.constant 0 : i32
    %c0_i32_1 = arith.constant 0 : i32
    return %c0_i32, %c0_i32_0 : i32, i32
  }
}

module attributes {stable_mosaic.version = 11 : i64} {
  func.func @_affine_elu_kernel(%arg0: i32, %arg1: memref<128x128xf32, #tpu.memory_space<vmem>>, %arg2: memref<1x128xf32, #tpu.memory_space<vmem>>, %arg3: memref<1x128xf32, #tpu.memory_space<vmem>>, %arg4: memref<128x128xf32, #tpu.memory_space<vmem>>) attributes {dimension_semantics = [#tpu.dimension_semantics<parallel>], iteration_bounds = array<i64: 1>, scalar_prefetch = 0 : i64, scratch_operands = 0 : i64, tpu.core_type = #tpu.core_type<tc>, window_params = [{transform_indices = @transform_0, window_bounds = array<i64: 128, 128>}, {pipeline_mode = #tpu.pipeline_mode<synchronous>, transform_indices = @transform_1, window_bounds = array<i64: 1, 128>}, {pipeline_mode = #tpu.pipeline_mode<synchronous>, transform_indices = @transform_2, window_bounds = array<i64: 1, 128>}, {transform_indices = @transform_3, window_bounds = array<i64: 128, 128>}]} {
    %c0 = arith.constant 0 : index
    %c0_0 = arith.constant 0 : index
    %0 = vector.load %arg1[%c0, %c0_0] : memref<128x128xf32, #tpu.memory_space<vmem>>, vector<128x128xf32>
    %c0_1 = arith.constant 0 : index
    %c0_2 = arith.constant 0 : index
    %1 = vector.load %arg2[%c0_1, %c0_2] : memref<1x128xf32, #tpu.memory_space<vmem>>, vector<1x128xf32>
    %2 = vector.broadcast %1 : vector<1x128xf32> to vector<128x128xf32>
    %3 = arith.mulf %0, %2 : vector<128x128xf32>
    %c0_3 = arith.constant 0 : index
    %c0_4 = arith.constant 0 : index
    %4 = vector.load %arg3[%c0_3, %c0_4] : memref<1x128xf32, #tpu.memory_space<vmem>>, vector<1x128xf32>
    %5 = vector.broadcast %4 : vector<1x128xf32> to vector<128x128xf32>
    %6 = arith.addf %3, %5 : vector<128x128xf32>
    %cst = arith.constant 0.000000e+00 : f32
    %7 = vector.broadcast %cst : f32 to vector<128x128xf32>
    %8 = arith.cmpf ogt, %6, %7 : vector<128x128xf32>
    %cst_5 = arith.constant 0.000000e+00 : f32
    %9 = vector.broadcast %cst_5 : f32 to vector<128x128xf32>
    %10 = arith.minimumf %6, %9 : vector<128x128xf32>
    %11 = math.exp %10 : vector<128x128xf32>
    %cst_6 = arith.constant 1.000000e+00 : f32
    %12 = vector.broadcast %cst_6 : f32 to vector<128x128xf32>
    %13 = arith.subf %11, %12 : vector<128x128xf32>
    %14 = arith.select %8, %6, %13 : vector<128x128xi1>, vector<128x128xf32>
    %c0_7 = arith.constant 0 : index
    %c0_8 = arith.constant 0 : index
    %15 = vector.load %arg4[%c0_7, %c0_8] : memref<128x128xf32, #tpu.memory_space<vmem>>, vector<128x128xf32>
    tpu.vector_store %arg4[%c0_7, %c0_8], %14 {strides = array<i32>} : memref<128x128xf32, #tpu.memory_space<vmem>>, vector<128x128xf32>,
    return
  }
  func.func @transform_0(%arg0: i32) -> (i32, i32) {
    %c0_i32 = arith.constant 0 : i32
    %c0_i32_0 = arith.constant 0 : i32
    return %arg0, %c0_i32 : i32, i32
  }
  func.func @transform_1(%arg0: i32) -> (i32, i32) {
    %c0_i32 = arith.constant 0 : i32
    %c0_i32_0 = arith.constant 0 : i32
    %c0_i32_1 = arith.constant 0 : i32
    return %c0_i32, %c0_i32_0 : i32, i32
  }
  func.func @transform_2(%arg0: i32) -> (i32, i32) {
    %c0_i32 = arith.constant 0 : i32
    %c0_i32_0 = arith.constant 0 : i32
    %c0_i32_1 = arith.constant 0 : i32
    return %c0_i32, %c0_i32_0 : i32, i32
  }
  func.func @transform_3(%arg0: i32) -> (i32, i32) {
    %c0_i32 = arith.constant 0 : i32
    %c0_i32_0 = arith.constant 0 : i32
    return %arg0, %c0_i32 : i32, i32
  }
}

module attributes {stable_mosaic.version = 11 : i64} {
  func.func @_matmul_kernel(%arg0: i32, %arg1: memref<512x72xbf16, #tpu.memory_space<vmem>>, %arg2: memref<72x8xbf16, #tpu.memory_space<vmem>>, %arg3: memref<512x8xf32, #tpu.memory_space<vmem>>) attributes {dimension_semantics = [#tpu.dimension_semantics<parallel>], iteration_bounds = array<i64: 4>, scalar_prefetch = 0 : i64, scratch_operands = 0 : i64, tpu.core_type = #tpu.core_type<tc>, window_params = [{transform_indices = @transform_0, window_bounds = array<i64: 512, 72>}, {pipeline_mode = #tpu.pipeline_mode<synchronous>, transform_indices = @transform_1, window_bounds = array<i64: 72, 8>}, {transform_indices = @transform_2, window_bounds = array<i64: 512, 8>}]} {
    %c0 = arith.constant 0 : index
    %c0_0 = arith.constant 0 : index
    %0 = vector.load %arg1[%c0, %c0_0] : memref<512x72xbf16, #tpu.memory_space<vmem>>, vector<512x72xbf16>
    %c0_1 = arith.constant 0 : index
    %c0_2 = arith.constant 0 : index
    %1 = vector.load %arg2[%c0_1, %c0_2] : memref<72x8xbf16, #tpu.memory_space<vmem>>, vector<72x8xbf16>
    %cst = arith.constant dense<0.000000e+00> : vector<512x8xf32>
    %2 = tpu.matmul %0, %1, %cst {dimension_numbers = #tpu.dot_dimension_numbers<[1], [0], [0], [1], [0, 0, 1, 1], [], []>} : vector<512x72xbf16>, vector<72x8xbf16>, vector<512x8xf32> -> vector<512x8xf32>
    %c0_3 = arith.constant 0 : index
    %c0_4 = arith.constant 0 : index
    %3 = vector.load %arg3[%c0_3, %c0_4] : memref<512x8xf32, #tpu.memory_space<vmem>>, vector<512x8xf32>
    tpu.vector_store %arg3[%c0_3, %c0_4], %2 {strides = array<i32>} : memref<512x8xf32, #tpu.memory_space<vmem>>, vector<512x8xf32>,
    return
  }
  func.func @transform_0(%arg0: i32) -> (i32, i32) {
    %c0_i32 = arith.constant 0 : i32
    %c0_i32_0 = arith.constant 0 : i32
    return %arg0, %c0_i32 : i32, i32
  }
  func.func @transform_1(%arg0: i32) -> (i32, i32) {
    %c0_i32 = arith.constant 0 : i32
    %c0_i32_0 = arith.constant 0 : i32
    %c0_i32_1 = arith.constant 0 : i32
    return %c0_i32, %c0_i32_0 : i32, i32
  }
  func.func @transform_2(%arg0: i32) -> (i32, i32) {
    %c0_i32 = arith.constant 0 : i32
    %c0_i32_0 = arith.constant 0 : i32
    return %arg0, %c0_i32 : i32, i32
  }
}

module attributes {stable_mosaic.version = 11 : i64} {
  func.func @_residual_affine_elu_kernel(%arg0: i32, %arg1: memref<128x128xf32, #tpu.memory_space<vmem>>, %arg2: memref<128x128xf32, #tpu.memory_space<vmem>>, %arg3: memref<1x128xf32, #tpu.memory_space<vmem>>, %arg4: memref<1x128xf32, #tpu.memory_space<vmem>>, %arg5: memref<128x128xf32, #tpu.memory_space<vmem>>) attributes {dimension_semantics = [#tpu.dimension_semantics<parallel>], iteration_bounds = array<i64: 1>, scalar_prefetch = 0 : i64, scratch_operands = 0 : i64, tpu.core_type = #tpu.core_type<tc>, window_params = [{transform_indices = @transform_0, window_bounds = array<i64: 128, 128>}, {transform_indices = @transform_1, window_bounds = array<i64: 128, 128>}, {pipeline_mode = #tpu.pipeline_mode<synchronous>, transform_indices = @transform_2, window_bounds = array<i64: 1, 128>}, {pipeline_mode = #tpu.pipeline_mode<synchronous>, transform_indices = @transform_3, window_bounds = array<i64: 1, 128>}, {transform_indices = @transform_4, window_bounds = array<i64: 128, 128>}]} {
    %c0 = arith.constant 0 : index
    %c0_0 = arith.constant 0 : index
    %0 = vector.load %arg2[%c0, %c0_0] : memref<128x128xf32, #tpu.memory_space<vmem>>, vector<128x128xf32>
    %c0_1 = arith.constant 0 : index
    %c0_2 = arith.constant 0 : index
    %1 = vector.load %arg1[%c0_1, %c0_2] : memref<128x128xf32, #tpu.memory_space<vmem>>, vector<128x128xf32>
    %c0_3 = arith.constant 0 : index
    %c0_4 = arith.constant 0 : index
    %2 = vector.load %arg3[%c0_3, %c0_4] : memref<1x128xf32, #tpu.memory_space<vmem>>, vector<1x128xf32>
    %3 = vector.broadcast %2 : vector<1x128xf32> to vector<128x128xf32>
    %4 = arith.mulf %1, %3 : vector<128x128xf32>
    %5 = arith.addf %0, %4 : vector<128x128xf32>
    %c0_5 = arith.constant 0 : index
    %c0_6 = arith.constant 0 : index
    %6 = vector.load %arg4[%c0_5, %c0_6] : memref<1x128xf32, #tpu.memory_space<vmem>>, vector<1x128xf32>
    %7 = vector.broadcast %6 : vector<1x128xf32> to vector<128x128xf32>
    %8 = arith.addf %5, %7 : vector<128x128xf32>
    %cst = arith.constant 0.000000e+00 : f32
    %9 = vector.broadcast %cst : f32 to vector<128x128xf32>
    %10 = arith.cmpf ogt, %8, %9 : vector<128x128xf32>
    %cst_7 = arith.constant 0.000000e+00 : f32
    %11 = vector.broadcast %cst_7 : f32 to vector<128x128xf32>
    %12 = arith.minimumf %8, %11 : vector<128x128xf32>
    %13 = math.exp %12 : vector<128x128xf32>
    %cst_8 = arith.constant 1.000000e+00 : f32
    %14 = vector.broadcast %cst_8 : f32 to vector<128x128xf32>
    %15 = arith.subf %13, %14 : vector<128x128xf32>
    %16 = arith.select %10, %8, %15 : vector<128x128xi1>, vector<128x128xf32>
    %c0_9 = arith.constant 0 : index
    %c0_10 = arith.constant 0 : index
    %17 = vector.load %arg5[%c0_9, %c0_10] : memref<128x128xf32, #tpu.memory_space<vmem>>, vector<128x128xf32>
    tpu.vector_store %arg5[%c0_9, %c0_10], %16 {strides = array<i32>} : memref<128x128xf32, #tpu.memory_space<vmem>>, vector<128x128xf32>,
    return
  }
  func.func @transform_0(%arg0: i32) -> (i32, i32) {
    %c0_i32 = arith.constant 0 : i32
    %c0_i32_0 = arith.constant 0 : i32
    return %arg0, %c0_i32 : i32, i32
  }
  func.func @transform_1(%arg0: i32) -> (i32, i32) {
    %c0_i32 = arith.constant 0 : i32
    %c0_i32_0 = arith.constant 0 : i32
    return %arg0, %c0_i32 : i32, i32
  }
  func.func @transform_2(%arg0: i32) -> (i32, i32) {
    %c0_i32 = arith.constant 0 : i32
    %c0_i32_0 = arith.constant 0 : i32
    %c0_i32_1 = arith.constant 0 : i32
    return %c0_i32, %c0_i32_0 : i32, i32
  }
  func.func @transform_3(%arg0: i32) -> (i32, i32) {
    %c0_i32 = arith.constant 0 : i32
    %c0_i32_0 = arith.constant 0 : i32
    %c0_i32_1 = arith.constant 0 : i32
    return %c0_i32, %c0_i32_0 : i32, i32
  }
  func.func @transform_4(%arg0: i32) -> (i32, i32) {
    %c0_i32 = arith.constant 0 : i32
    %c0_i32_0 = arith.constant 0 : i32
    return %arg0, %c0_i32 : i32, i32
  }
}

module attributes {stable_mosaic.version = 11 : i64} {
  func.func @_head_softmax2_kernel(%arg0: i32, %arg1: memref<512x8xf32, #tpu.memory_space<vmem>>, %arg2: memref<1x8xf32, #tpu.memory_space<vmem>>, %arg3: memref<1x1xf32, #tpu.memory_space<vmem>>, %arg4: memref<512x2xf32, #tpu.memory_space<vmem>>) attributes {dimension_semantics = [#tpu.dimension_semantics<parallel>], iteration_bounds = array<i64: 4>, scalar_prefetch = 0 : i64, scratch_operands = 0 : i64, tpu.core_type = #tpu.core_type<tc>, window_params = [{transform_indices = @transform_0, window_bounds = array<i64: 512, 8>}, {pipeline_mode = #tpu.pipeline_mode<synchronous>, transform_indices = @transform_1, window_bounds = array<i64: 1, 8>}, {pipeline_mode = #tpu.pipeline_mode<synchronous>, transform_indices = @transform_2, window_bounds = array<i64: 1, 1>}, {transform_indices = @transform_3, window_bounds = array<i64: 512, 2>}]} {
    %c0 = arith.constant 0 : index
    %c0_0 = arith.constant 0 : index
    %0 = vector.load %arg1[%c0, %c0_0] : memref<512x8xf32, #tpu.memory_space<vmem>>, vector<512x8xf32>
    %c0_1 = arith.constant 0 : index
    %c0_2 = arith.constant 0 : index
    %1 = vector.load %arg2[%c0_1, %c0_2] : memref<1x8xf32, #tpu.memory_space<vmem>>, vector<1x8xf32>
    %2 = vector.broadcast %1 : vector<1x8xf32> to vector<512x8xf32>
    %3 = arith.mulf %0, %2 : vector<512x8xf32>
    %cst = arith.constant dense<0.000000e+00> : vector<512xf32>
    %4 = vector.multi_reduction <add>, %3, %cst [1] : vector<512x8xf32> to vector<512xf32>
    %5 = vector.shape_cast %4 : vector<512xf32> to vector<512x1xf32>
    %c0_3 = arith.constant 0 : index
    %c0_4 = arith.constant 0 : index
    %6 = vector.load %arg3[%c0_3, %c0_4] : memref<1x1xf32, #tpu.memory_space<vmem>>, vector<1x1xf32>
    %7 = vector.broadcast %6 : vector<1x1xf32> to vector<512x1xf32>
    %8 = arith.addf %5, %7 : vector<512x1xf32>
    %cst_5 = arith.constant 0.000000e+00 : f32
    %9 = vector.broadcast %cst_5 : f32 to vector<512x1xf32>
    %10 = arith.subf %9, %8 : vector<512x1xf32>
    %11 = math.exp %10 : vector<512x1xf32>
    %cst_6 = arith.constant 1.000000e+00 : f32
    %12 = vector.broadcast %cst_6 : f32 to vector<512x1xf32>
    %13 = arith.addf %12, %11 : vector<512x1xf32>
    %cst_7 = arith.constant 1.000000e+00 : f32
    %14 = vector.broadcast %cst_7 : f32 to vector<512x1xf32>
    %15 = arith.divf %14, %13 : vector<512x1xf32>
    %16 = tpu.iota {dimensions = array<i32: 1>} : vector<512x2xi32>
    %c0_i32 = arith.constant 0 : i32
    %17 = vector.broadcast %c0_i32 : i32 to vector<512x2xi32>
    %18 = arith.cmpi eq, %16, %17 : vector<512x2xi32>
    %cst_8 = arith.constant 1.000000e+00 : f32
    %19 = vector.broadcast %cst_8 : f32 to vector<512x1xf32>
    %20 = arith.subf %19, %15 : vector<512x1xf32>
    %21 = vector.shape_cast %15 : vector<512x1xf32> to vector<512x1xf32>
    %22 = vector.broadcast %21 : vector<512x1xf32> to vector<512x2xf32>
    %23 = vector.shape_cast %20 : vector<512x1xf32> to vector<512x1xf32>
    %24 = vector.broadcast %23 : vector<512x1xf32> to vector<512x2xf32>
    %25 = arith.select %18, %22, %24 : vector<512x2xi1>, vector<512x2xf32>
    %c0_9 = arith.constant 0 : index
    %c0_10 = arith.constant 0 : index
    %26 = vector.load %arg4[%c0_9, %c0_10] : memref<512x2xf32, #tpu.memory_space<vmem>>, vector<512x2xf32>
    tpu.vector_store %arg4[%c0_9, %c0_10], %25 {strides = array<i32>} : memref<512x2xf32, #tpu.memory_space<vmem>>, vector<512x2xf32>,
    return
  }
  func.func @transform_0(%arg0: i32) -> (i32, i32) {
    %c0_i32 = arith.constant 0 : i32
    %c0_i32_0 = arith.constant 0 : i32
    return %arg0, %c0_i32 : i32, i32
  }
  func.func @transform_1(%arg0: i32) -> (i32, i32) {
    %c0_i32 = arith.constant 0 : i32
    %c0_i32_0 = arith.constant 0 : i32
    %c0_i32_1 = arith.constant 0 : i32
    return %c0_i32, %c0_i32_0 : i32, i32
  }
  func.func @transform_2(%arg0: i32) -> (i32, i32) {
    %c0_i32 = arith.constant 0 : i32
    %c0_i32_0 = arith.constant 0 : i32
    %c0_i32_1 = arith.constant 0 : i32
    return %c0_i32, %c0_i32_0 : i32, i32
  }
  func.func @transform_3(%arg0: i32) -> (i32, i32) {
    %c0_i32 = arith.constant 0 : i32
    %c0_i32_0 = arith.constant 0 : i32
    return %arg0, %c0_i32 : i32, i32
  }
}

</mosaic_0001>

<llo_original>
// kernel: up_transition_forward.10
$region0: #{up_transition_forward.10}
  #allocation0 [shape = 'u32[]', space=smem, size = 0x4, offset = 0x4, fixed_abs, tag = 'smem constant byte address 0x4 - core index']
  #allocation1 [shape = 'u32[144,128]{1,0:T(1,128)}', space=vmem, size = 0x12000, scoped, tag = 'internal scratch']
  %s0 = inlined_call_operand.vmem [shape: bf16[512,36], index: 0, kind: input, shape index: {}]
  %s1 = inlined_call_operand.vmem [shape: bf16[36,32], index: 1, kind: input, shape index: {}]
  %s2 = inlined_call_operand.vmem [shape: f32[512,32], index: 2, kind: output, shape index: {}]
  %s3 = sld [smem:[#allocation0]]
  $region18: #{up_transition_forward.10} parent=0
    _
  %s5 = ssub.s32 1, %s3
  %s6 = scalar_select 0, %s5, %s3
  // Predicated region
  $region2: #{up_transition_forward.10} parent=0 // pred_check
    _
  $region3: #{up_transition_forward.10} parent=0 // pred_check_branch
    %8 = sbr.rel (0) target = $region5
  $region4: #{up_transition_forward.10} parent=0 // pred_region
    _
  $region5: #{up_transition_forward.10} parent=0 // pred_fallthru
    _
  // Predicated region
  $region6: #{up_transition_forward.10} parent=0 // pred_check
    _
  $region7: #{up_transition_forward.10} parent=0 // pred_check_branch
    %10 = sbr.rel (0) target = $region9
  $region8: #{up_transition_forward.10} parent=0 // pred_region
    _
  $region9: #{up_transition_forward.10} parent=0 // pred_fallthru
    _
  %v12 = vld [vmem:[%s0] sm:$0xf]
  %v13 = vld [vmem:[%s0 + $0x4] sm:$0xf]
  %v14 = vld [vmem:[%s0 + $0x8] sm:$0xf]
  %v15 = vld [vmem:[%s0 + $0xc] sm:$0xf]
  %v16 = vld [vmem:[%s0 + $0x10] sm:$0xf]
  %v17 = vld [vmem:[%s0 + $0x14] sm:$0xf]
  %v18 = vld [vmem:[%s0 + $0x18] sm:$0xf]
  %v19 = vld [vmem:[%s0 + $0x1c] sm:$0xf]
  %v20 = vld [vmem:[%s0 + $0x20] sm:$0xf]
  %v21 = vld [vmem:[%s0 + $0x24] sm:$0xf]
  %v22 = vld [vmem:[%s0 + $0x28] sm:$0xf]
  %v23 = vld [vmem:[%s0 + $0x2c] sm:$0xf]
  %v24 = vld [vmem:[%s0 + $0x30] sm:$0xf]
  %v25 = vld [vmem:[%s0 + $0x34] sm:$0xf]
  %v26 = vld [vmem:[%s0 + $0x38] sm:$0xf]
  %v27 = vld [vmem:[%s0 + $0x3c] sm:$0xf]
  %v28 = vld [vmem:[%s0 + $0x40] sm:$0xf]
  %v29 = vld [vmem:[%s0 + $0x44] sm:$0xf]
  %v30 = vld [vmem:[%s0 + $0x48] sm:$0xf]
  %v31 = vld [vmem:[%s0 + $0x4c] sm:$0xf]
  %v32 = vld [vmem:[%s0 + $0x50] sm:$0xf]
  %v33 = vld [vmem:[%s0 + $0x54] sm:$0xf]
  %v34 = vld [vmem:[%s0 + $0x58] sm:$0xf]
  %v35 = vld [vmem:[%s0 + $0x5c] sm:$0xf]
  %v36 = vld [vmem:[%s0 + $0x60] sm:$0xf]
  %v37 = vld [vmem:[%s0 + $0x64] sm:$0xf]
  %v38 = vld [vmem:[%s0 + $0x68] sm:$0xf]
  %v39 = vld [vmem:[%s0 + $0x6c] sm:$0xf]
  %v40 = vld [vmem:[%s0 + $0x70] sm:$0xf]
  %v41 = vld [vmem:[%s0 + $0x74] sm:$0xf]
  %v42 = vld [vmem:[%s0 + $0x78] sm:$0xf]
  %v43 = vld [vmem:[%s0 + $0x7c] sm:$0xf]
  %v44 = vld [vmem:[%s0 + $0x80] sm:$0xf]
  %v45 = vld [vmem:[%s0 + $0x84] sm:$0xf]
  %v46 = vld [vmem:[%s0 + $0x88] sm:$0xf]
  %v47 = vld [vmem:[%s0 + $0x8c] sm:$0xf]
  %v48 = vld [vmem:[%s0 + $0x90] sm:$0xf]
  %v49 = vld [vmem:[%s0 + $0x94] sm:$0xf]
  %v50 = vld [vmem:[%s0 + $0x98] sm:$0xf]
  %v51 = vld [vmem:[%s0 + $0x9c] sm:$0xf]
  %v52 = vld [vmem:[%s0 + $0xa0] sm:$0xf]
  %v53 = vld [vmem:[%s0 + $0xa4] sm:$0xf]
  %v54 = vld [vmem:[%s0 + $0xa8] sm:$0xf]
  %v55 = vld [vmem:[%s0 + $0xac] sm:$0xf]
  %v56 = vld [vmem:[%s0 + $0xb0] sm:$0xf]
  %v57 = vld [vmem:[%s0 + $0xb4] sm:$0xf]
  %v58 = vld [vmem:[%s0 + $0xb8] sm:$0xf]
  %v59 = vld [vmem:[%s0 + $0xbc] sm:$0xf]
  %v60 = vld [vmem:[%s0 + $0xc0] sm:$0xf]
  %v61 = vld [vmem:[%s0 + $0xc4] sm:$0xf]
  %v62 = vld [vmem:[%s0 + $0xc8] sm:$0xf]
  %v63 = vld [vmem:[%s0 + $0xcc] sm:$0xf]
  %v64 = vld [vmem:[%s0 + $0xd0] sm:$0xf]
  %v65 = vld [vmem:[%s0 + $0xd4] sm:$0xf]
  %v66 = vld [vmem:[%s0 + $0xd8] sm:$0xf]
  %v67 = vld [vmem:[%s0 + $0xdc] sm:$0xf]
  %v68 = vld [vmem:[%s0 + $0xe0] sm:$0xf]
  %v69 = vld [vmem:[%s0 + $0xe4] sm:$0xf]
  %v70 = vld [vmem:[%s0 + $0xe8] sm:$0xf]
  %v71 = vld [vmem:[%s0 + $0xec] sm:$0xf]
  %v72 = vld [vmem:[%s0 + $0xf0] sm:$0xf]
  %v73 = vld [vmem:[%s0 + $0xf4] sm:$0xf]
  %v74 = vld [vmem:[%s0 + $0xf8] sm:$0xf]
  %v75 = vld [vmem:[%s0 + $0xfc] sm:$0xf]
  %v76 = vld [vmem:[%s1] sm:$0xf]
  %v77 = vld [vmem:[%s1 + $0x4] sm:$0xf]
  %v78 = vld [vmem:[%s1 + $0x8] sm:$0xf]
  %v79 = vld [vmem:[%s1 + $0xc] sm:$0xf]
  %v80 = vld [vmem:[%s1 + $0x10] sm:$0x3]
  %v145 = vunpack.c.l.b16 %v12
  %v146 = vunpack.c.l.b16 %v13
  %v147 = vunpack.c.l.b16 %v14
  %v148 = vunpack.c.l.b16 %v15
  %v149 = vunpack.c.l.b16 %v16
  %v150 = vunpack.c.l.b16 %v17
  %v151 = vunpack.c.l.b16 %v18
  %v152 = vunpack.c.l.b16 %v19
  %v153 = vunpack.c.l.b16 %v20
  %v154 = vunpack.c.l.b16 %v21
  %v155 = vunpack.c.l.b16 %v22
  %v156 = vunpack.c.l.b16 %v23
  %v157 = vunpack.c.l.b16 %v24
  %v158 = vunpack.c.l.b16 %v25
  %v159 = vunpack.c.l.b16 %v26
  %v160 = vunpack.c.l.b16 %v27
  %v161 = vunpack.c.l.b16 %v28
  %v162 = vunpack.c.l.b16 %v29
  %v163 = vunpack.c.l.b16 %v30
  %v164 = vunpack.c.l.b16 %v31
  %v165 = vunpack.c.l.b16 %v32
  %v166 = vunpack.c.l.b16 %v33
  %v167 = vunpack.c.l.b16 %v34
  %v168 = vunpack.c.l.b16 %v35
  %v169 = vunpack.c.l.b16 %v36
  %v170 = vunpack.c.l.b16 %v37
  %v171 = vunpack.c.l.b16 %v38
  %v172 = vunpack.c.l.b16 %v39
  %v173 = vunpack.c.l.b16 %v40
  %v174 = vunpack.c.l.b16 %v41
  %v175 = vunpack.c.l.b16 %v42
  %v176 = vunpack.c.l.b16 %v43
  %v177 = vunpack.c.l.b16 %v44
  %v178 = vunpack.c.l.b16 %v45
  %v179 = vunpack.c.l.b16 %v46
  %v180 = vunpack.c.l.b16 %v47
  %v181 = vunpack.c.l.b16 %v48
  %v182 = vunpack.c.l.b16 %v49
  %v183 = vunpack.c.l.b16 %v50
  %v184 = vunpack.c.l.b16 %v51
  %v185 = vunpack.c.l.b16 %v52
  %v186 = vunpack.c.l.b16 %v53
  %v187 = vunpack.c.l.b16 %v54
  %v188 = vunpack.c.l.b16 %v55
  %v189 = vunpack.c.l.b16 %v56
  %v190 = vunpack.c.l.b16 %v57
  %v191 = vunpack.c.l.b16 %v58
  %v192 = vunpack.c.l.b16 %v59
  %v193 = vunpack.c.l.b16 %v60
  %v194 = vunpack.c.l.b16 %v61
  %v195 = vunpack.c.l.b16 %v62
  %v196 = vunpack.c.l.b16 %v63
  %v197 = vunpack.c.l.b16 %v64
  %v198 = vunpack.c.l.b16 %v65
  %v199 = vunpack.c.l.b16 %v66
  %v200 = vunpack.c.l.b16 %v67
  %v201 = vunpack.c.l.b16 %v68
  %v202 = vunpack.c.l.b16 %v69
  %v203 = vunpack.c.l.b16 %v70
  %v204 = vunpack.c.l.b16 %v71
  %v205 = vunpack.c.l.b16 %v72
  %v206 = vunpack.c.l.b16 %v73
  %v207 = vunpack.c.l.b16 %v74
  %v208 = vunpack.c.l.b16 %v75
  %v209 = vpack.c.b16 %v146, %v145
  %v210 = vpack.c.b16 %v148, %v147
  %v211 = vpack.c.b16 %v150, %v149
  %v212 = vpack.c.b16 %v152, %v151
  %v213 = vpack.c.b16 %v154, %v153
  %v214 = vpack.c.b16 %v156, %v155
  %v215 = vpack.c.b16 %v158, %v157
  %v216 = vpack.c.b16 %v160, %v159
  %v217 = vpack.c.b16 %v162, %v161
  %v218 = vpack.c.b16 %v164, %v163
  %v219 = vpack.c.b16 %v166, %v165
  %v220 = vpack.c.b16 %v168, %v167
  %v221 = vpack.c.b16 %v170, %v169
  %v222 = vpack.c.b16 %v172, %v171
  %v223 = vpack.c.b16 %v174, %v173
  %v224 = vpack.c.b16 %v176, %v175
  %v225 = vpack.c.b16 %v178, %v177
  %v226 = vpack.c.b16 %v180, %v179
  %v227 = vpack.c.b16 %v182, %v181
  %v228 = vpack.c.b16 %v184, %v183
  %v229 = vpack.c.b16 %v186, %v185
  %v230 = vpack.c.b16 %v188, %v187
  %v231 = vpack.c.b16 %v190, %v189
  %v232 = vpack.c.b16 %v192, %v191
  %v233 = vpack.c.b16 %v194, %v193
  %v234 = vpack.c.b16 %v196, %v195
  %v235 = vpack.c.b16 %v198, %v197
  %v236 = vpack.c.b16 %v200, %v199
  %v237 = vpack.c.b16 %v202, %v201
  %v238 = vpack.c.b16 %v204, %v203
  %v239 = vpack.c.b16 %v206, %v205
  %v240 = vpack.c.b16 %v208, %v207
  %v246 = vunpack.c.l.b16 %v76
  %v247 = vunpack.c.l.b16 %v77
  %v248 = vunpack.c.l.b16 %v78
  %v249 = vunpack.c.l.b16 %v79
  %v250 = vunpack.c.l.b16 %v80
  %v251 = vpack.c.b16 %v247, %v246
  %v252 = vpack.c.b16 %v249, %v248
  %v253 = vpack.c.b16 %v250, %v250
  %vm256 = vcmask 293888
  %v258 = vsel %vm256, %v209, 0
  %v261 = vsel %vm256, %v210, 0
  %v264 = vsel %vm256, %v211, 0
  %v267 = vsel %vm256, %v212, 0
  %v270 = vsel %vm256, %v213, 0
  %v273 = vsel %vm256, %v214, 0
  %v276 = vsel %vm256, %v215, 0
  %v279 = vsel %vm256, %v216, 0
  %v282 = vsel %vm256, %v217, 0
  %v285 = vsel %vm256, %v218, 0
  %v288 = vsel %vm256, %v219, 0
  %v291 = vsel %vm256, %v220, 0
  %v294 = vsel %vm256, %v221, 0
  %v297 = vsel %vm256, %v222, 0
  %v300 = vsel %vm256, %v223, 0
  %v303 = vsel %vm256, %v224, 0
  %v306 = vsel %vm256, %v225, 0
  %v309 = vsel %vm256, %v226, 0
  %v312 = vsel %vm256, %v227, 0
  %v315 = vsel %vm256, %v228, 0
  %v318 = vsel %vm256, %v229, 0
  %v321 = vsel %vm256, %v230, 0
  %v324 = vsel %vm256, %v231, 0
  %v327 = vsel %vm256, %v232, 0
  %v330 = vsel %vm256, %v233, 0
  %v333 = vsel %vm256, %v234, 0
  %v336 = vsel %vm256, %v235, 0
  %v339 = vsel %vm256, %v236, 0
  %v342 = vsel %vm256, %v237, 0
  %v345 = vsel %vm256, %v238, 0
  %v348 = vsel %vm256, %v239, 0
  %v351 = vsel %vm256, %v240, 0
  %vm353 = vcmask 1041408
  %v355 = vsel %vm353, %v253, 0
  %357 = vmatprep.subr.bf16.mxu0 0
  %358 = vmatpush1.bf16.msra.mxu0 %v251
  %359 = vmatprep.subr.bf16.mxu0 0
  %360 = vmatpush1.bf16.msra.mxu0 %v252
  %361 = vmatprep.subr.bf16.mxu0 0
  %362 = vmatpush1.bf16.msra.mxu0 %v355
  %363 = vmatprep.subr.bf16.mxu0 0
  %364 = vmatpush1.bf16.msra.mxu0 0
  %365 = vmatprep.subr.bf16.mxu0 0
  %366 = vmatpush1.bf16.msra.mxu0 0
  %367 = vmatprep.subr.bf16.mxu0 0
  %368 = vmatpush1.bf16.msra.mxu0 0
  %369 = vmatprep.subr.bf16.mxu0 0
  %370 = vmatpush1.bf16.msra.mxu0 0
  %371 = vmatprep.subr.bf16.mxu0 0
  %372 = vmatpush1.bf16.msra.mxu0 0
  %373 = vmatprep.subr.bf16.mxu0 0
  %374 = vmatpush1.bf16.msra.mxu0 0
  %375 = vmatprep.subr.bf16.mxu0 0
  %376 = vmatpush1.bf16.msra.mxu0 0
  %377 = vmatprep.subr.bf16.mxu0 0
  %378 = vmatpush1.bf16.msra.mxu0 0
  %379 = vmatprep.subr.bf16.mxu0 0
  %380 = vmatpush1.bf16.msra.mxu0 0
  %381 = vmatprep.subr.bf16.mxu0 0
  %382 = vmatpush1.bf16.msra.mxu0 0
  %383 = vmatprep.subr.bf16.mxu0 0
  %384 = vmatpush1.bf16.msra.mxu0 0
  %385 = vmatprep.subr.bf16.mxu0 0
  %386 = vmatpush1.bf16.msra.mxu0 0
  %387 = vmatprep.subr.bf16.mxu0 0
  %388 = vmatpush1.bf16.msra.mxu0 0
  %389 = vmatprep.mubr.bf16.mxu0 0
  %390 = vmatmul.mubr.bf16.gmra.mrb[0].mxu0 %v258
  %v391 = vpop.f32.mrb[0].mxu0
  %v392 = vadd.f32 0.0, %v391
  %v393 = vpop.f32.mrb[0].mxu0
  %v394 = vpop.f32.mrb[0].mxu0
  %v395 = vadd.f32 0.0, %v394
  %v396 = vpop.f32.mrb[0].mxu0
  %397 = vmatprep.mubr.bf16.mxu0 0
  %398 = vmatmul.mubr.bf16.gmra.mrb[0].mxu0 %v261
  %v399 = vpop.f32.mrb[0].mxu0
  %v400 = vadd.f32 0.0, %v399
  %v401 = vpop.f32.mrb[0].mxu0
  %v402 = vpop.f32.mrb[0].mxu0
  %v403 = vadd.f32 0.0, %v402
  %v404 = vpop.f32.mrb[0].mxu0
  %405 = vmatprep.mubr.bf16.mxu0 0
  %406 = vmatmul.mubr.bf16.gmra.mrb[0].mxu0 %v264
  %v407 = vpop.f32.mrb[0].mxu0
  %v408 = vadd.f32 0.0, %v407
  %v409 = vpop.f32.mrb[0].mxu0
  %v410 = vpop.f32.mrb[0].mxu0
  %v411 = vadd.f32 0.0, %v410
  %v412 = vpop.f32.mrb[0].mxu0
  %413 = vmatprep.mubr.bf16.mxu0 0
  %414 = vmatmul.mubr.bf16.gmra.mrb[0].mxu0 %v267
  %v415 = vpop.f32.mrb[0].mxu0
  %v416 = vadd.f32 0.0, %v415
  %v417 = vpop.f32.mrb[0].mxu0
  %v418 = vpop.f32.mrb[0].mxu0
  %v419 = vadd.f32 0.0, %v418
  %v420 = vpop.f32.mrb[0].mxu0
  %421 = vmatprep.mubr.bf16.mxu0 0
  %422 = vmatmul.mubr.bf16.gmra.mrb[0].mxu0 %v270
  %v423 = vpop.f32.mrb[0].mxu0
  %v424 = vadd.f32 0.0, %v423
  %v425 = vpop.f32.mrb[0].mxu0
  %v426 = vpop.f32.mrb[0].mxu0
  %v427 = vadd.f32 0.0, %v426
  %v428 = vpop.f32.mrb[0].mxu0
  %429 = vmatprep.mubr.bf16.mxu0 0
  %430 = vmatmul.mubr.bf16.gmra.mrb[0].mxu0 %v273
  %v431 = vpop.f32.mrb[0].mxu0
  %v432 = vadd.f32 0.0, %v431
  %v433 = vpop.f32.mrb[0].mxu0
  %v434 = vpop.f32.mrb[0].mxu0
  %v435 = vadd.f32 0.0, %v434
  %v436 = vpop.f32.mrb[0].mxu0
  %437 = vmatprep.mubr.bf16.mxu0 0
  %438 = vmatmul.mubr.bf16.gmra.mrb[0].mxu0 %v276
  %v439 = vpop.f32.mrb[0].mxu0
  %v440 = vadd.f32 0.0, %v439
  %v441 = vpop.f32.mrb[0].mxu0
  %v442 = vpop.f32.mrb[0].mxu0
  %v443 = vadd.f32 0.0, %v442
  %v444 = vpop.f32.mrb[0].mxu0
  %445 = vmatprep.mubr.bf16.mxu0 0
  %446 = vmatmul.mubr.bf16.gmra.mrb[0].mxu0 %v279
  %v447 = vpop.f32.mrb[0].mxu0
  %v448 = vadd.f32 0.0, %v447
  %v449 = vpop.f32.mrb[0].mxu0
  %v450 = vpop.f32.mrb[0].mxu0
  %v451 = vadd.f32 0.0, %v450
  %v452 = vpop.f32.mrb[0].mxu0
  %453 = vmatprep.mubr.bf16.mxu0 0
  %454 = vmatmul.mubr.bf16.gmra.mrb[0].mxu0 %v282
  %v455 = vpop.f32.mrb[0].mxu0
  %v456 = vadd.f32 0.0, %v455
  %v457 = vpop.f32.mrb[0].mxu0
  %v458 = vpop.f32.mrb[0].mxu0
  %v459 = vadd.f32 0.0, %v458
  %v460 = vpop.f32.mrb[0].mxu0
  %461 = vmatprep.mubr.bf16.mxu0 0
  %462 = vmatmul.mubr.bf16.gmra.mrb[0].mxu0 %v285
  %v463 = vpop.f32.mrb[0].mxu0
  %v464 = vadd.f32 0.0, %v463
  %v465 = vpop.f32.mrb[0].mxu0
  %v466 = vpop.f32.mrb[0].mxu0
  %v467 = vadd.f32 0.0, %v466
  %v468 = vpop.f32.mrb[0].mxu0
  %469 = vmatprep.mubr.bf16.mxu0 0
  %470 = vmatmul.mubr.bf16.gmra.mrb[0].mxu0 %v288
  %v471 = vpop.f32.mrb[0].mxu0
  %v472 = vadd.f32 0.0, %v471
  %v473 = vpop.f32.mrb[0].mxu0
  %v474 = vpop.f32.mrb[0].mxu0
  %v475 = vadd.f32 0.0, %v474
  %v476 = vpop.f32.mrb[0].mxu0
  %477 = vmatprep.mubr.bf16.mxu0 0
  %478 = vmatmul.mubr.bf16.gmra.mrb[0].mxu0 %v291
  %v479 = vpop.f32.mrb[0].mxu0
  %v480 = vadd.f32 0.0, %v479
  %v481 = vpop.f32.mrb[0].mxu0
  %v482 = vpop.f32.mrb[0].mxu0
  %v483 = vadd.f32 0.0, %v482
  %v484 = vpop.f32.mrb[0].mxu0
  %485 = vmatprep.mubr.bf16.mxu0 0
  %486 = vmatmul.mubr.bf16.gmra.mrb[0].mxu0 %v294
  %v487 = vpop.f32.mrb[0].mxu0
  %v488 = vadd.f32 0.0, %v487
  %v489 = vpop.f32.mrb[0].mxu0
  %v490 = vpop.f32.mrb[0].mxu0
  %v491 = vadd.f32 0.0, %v490
  %v492 = vpop.f32.mrb[0].mxu0
  %493 = vmatprep.mubr.bf16.mxu0 0
  %494 = vmatmul.mubr.bf16.gmra.mrb[0].mxu0 %v297
  %v495 = vpop.f32.mrb[0].mxu0
  %v496 = vadd.f32 0.0, %v495
  %v497 = vpop.f32.mrb[0].mxu0
  %v498 = vpop.f32.mrb[0].mxu0
  %v499 = vadd.f32 0.0, %v498
  %v500 = vpop.f32.mrb[0].mxu0
  %501 = vmatprep.mubr.bf16.mxu0 0
  %502 = vmatmul.mubr.bf16.gmra.mrb[0].mxu0 %v300
  %v503 = vpop.f32.mrb[0].mxu0
  %v504 = vadd.f32 0.0, %v503
  %v505 = vpop.f32.mrb[0].mxu0
  %v506 = vpop.f32.mrb[0].mxu0
  %v507 = vadd.f32 0.0, %v506
  %v508 = vpop.f32.mrb[0].mxu0
  %509 = vmatprep.mubr.bf16.mxu0 0
  %510 = vmatmul.mubr.bf16.gmra.mrb[0].mxu0 %v303
  %v511 = vpop.f32.mrb[0].mxu0
  %v512 = vadd.f32 0.0, %v511
  %v513 = vpop.f32.mrb[0].mxu0
  %v514 = vpop.f32.mrb[0].mxu0
  %v515 = vadd.f32 0.0, %v514
  %v516 = vpop.f32.mrb[0].mxu0
  %517 = vmatprep.mubr.bf16.mxu0 0
  %518 = vmatmul.mubr.bf16.gmra.mrb[0].mxu0 %v306
  %v519 = vpop.f32.mrb[0].mxu0
  %v520 = vadd.f32 0.0, %v519
  %v521 = vpop.f32.mrb[0].mxu0
  %v522 = vpop.f32.mrb[0].mxu0
  %v523 = vadd.f32 0.0, %v522
  %v524 = vpop.f32.mrb[0].mxu0
  %525 = vmatprep.mubr.bf16.mxu0 0
  %526 = vmatmul.mubr.bf16.gmra.mrb[0].mxu0 %v309
  %v527 = vpop.f32.mrb[0].mxu0
  %v528 = vadd.f32 0.0, %v527
  %v529 = vpop.f32.mrb[0].mxu0
  %v530 = vpop.f32.mrb[0].mxu0
  %v531 = vadd.f32 0.0, %v530
  %v532 = vpop.f32.mrb[0].mxu0
  %533 = vmatprep.mubr.bf16.mxu0 0
  %534 = vmatmul.mubr.bf16.gmra.mrb[0].mxu0 %v312
  %v535 = vpop.f32.mrb[0].mxu0
  %v536 = vadd.f32 0.0, %v535
  %v537 = vpop.f32.mrb[0].mxu0
  %v538 = vpop.f32.mrb[0].mxu0
  %v539 = vadd.f32 0.0, %v538
  %v540 = vpop.f32.mrb[0].mxu0
  %541 = vmatprep.mubr.bf16.mxu0 0
  %542 = vmatmul.mubr.bf16.gmra.mrb[0].mxu0 %v315
  %v543 = vpop.f32.mrb[0].mxu0
  %v544 = vadd.f32 0.0, %v543
  %v545 = vpop.f32.mrb[0].mxu0
  %v546 = vpop.f32.mrb[0].mxu0
  %v547 = vadd.f32 0.0, %v546
  %v548 = vpop.f32.mrb[0].mxu0
  %549 = vmatprep.mubr.bf16.mxu0 0
  %550 = vmatmul.mubr.bf16.gmra.mrb[0].mxu0 %v318
  %v551 = vpop.f32.mrb[0].mxu0
  %v552 = vadd.f32 0.0, %v551
  %v553 = vpop.f32.mrb[0].mxu0
  %v554 = vpop.f32.mrb[0].mxu0
  %v555 = vadd.f32 0.0, %v554
  %v556 = vpop.f32.mrb[0].mxu0
  %557 = vmatprep.mubr.bf16.mxu0 0
  %558 = vmatmul.mubr.bf16.gmra.mrb[0].mxu0 %v321
  %v559 = vpop.f32.mrb[0].mxu0
  %v560 = vadd.f32 0.0, %v559
  %v561 = vpop.f32.mrb[0].mxu0
  %v562 = vpop.f32.mrb[0].mxu0
  %v563 = vadd.f32 0.0, %v562
  %v564 = vpop.f32.mrb[0].mxu0
  %565 = vmatprep.mubr.bf16.mxu0 0
  %566 = vmatmul.mubr.bf16.gmra.mrb[0].mxu0 %v324
  %v567 = vpop.f32.mrb[0].mxu0
  %v568 = vadd.f32 0.0, %v567
  %v569 = vpop.f32.mrb[0].mxu0
  %v570 = vpop.f32.mrb[0].mxu0
  %v571 = vadd.f32 0.0, %v570
  %v572 = vpop.f32.mrb[0].mxu0
  %573 = vmatprep.mubr.bf16.mxu0 0
  %574 = vmatmul.mubr.bf16.gmra.mrb[0].mxu0 %v327
  %v575 = vpop.f32.mrb[0].mxu0
  %v576 = vadd.f32 0.0, %v575
  %v577 = vpop.f32.mrb[0].mxu0
  %v578 = vpop.f32.mrb[0].mxu0
  %v579 = vadd.f32 0.0, %v578
  %v580 = vpop.f32.mrb[0].mxu0
  %581 = vmatprep.mubr.bf16.mxu0 0
  %582 = vmatmul.mubr.bf16.gmra.mrb[0].mxu0 %v330
  %v583 = vpop.f32.mrb[0].mxu0
  %v584 = vadd.f32 0.0, %v583
  %v585 = vpop.f32.mrb[0].mxu0
  %v586 = vpop.f32.mrb[0].mxu0
  %v587 = vadd.f32 0.0, %v586
  %v588 = vpop.f32.mrb[0].mxu0
  %589 = vmatprep.mubr.bf16.mxu0 0
  %590 = vmatmul.mubr.bf16.gmra.mrb[0].mxu0 %v333
  %v591 = vpop.f32.mrb[0].mxu0
  %v592 = vadd.f32 0.0, %v591
  %v593 = vpop.f32.mrb[0].mxu0
  %v594 = vpop.f32.mrb[0].mxu0
  %v595 = vadd.f32 0.0, %v594
  %v596 = vpop.f32.mrb[0].mxu0
  %597 = vmatprep.mubr.bf16.mxu0 0
  %598 = vmatmul.mubr.bf16.gmra.mrb[0].mxu0 %v336
  %v599 = vpop.f32.mrb[0].mxu0
  %v600 = vadd.f32 0.0, %v599
  %v601 = vpop.f32.mrb[0].mxu0
  %v602 = vpop.f32.mrb[0].mxu0
  %v603 = vadd.f32 0.0, %v602
  %v604 = vpop.f32.mrb[0].mxu0
  %605 = vmatprep.mubr.bf16.mxu0 0
  %606 = vmatmul.mubr.bf16.gmra.mrb[0].mxu0 %v339
  %v607 = vpop.f32.mrb[0].mxu0
  %v608 = vadd.f32 0.0, %v607
  %v609 = vpop.f32.mrb[0].mxu0
  %v610 = vpop.f32.mrb[0].mxu0
  %v611 = vadd.f32 0.0, %v610
  %v612 = vpop.f32.mrb[0].mxu0
  %613 = vmatprep.mubr.bf16.mxu0 0
  %614 = vmatmul.mubr.bf16.gmra.mrb[0].mxu0 %v342
  %v615 = vpop.f32.mrb[0].mxu0
  %v616 = vadd.f32 0.0, %v615
  %v617 = vpop.f32.mrb[0].mxu0
  %v618 = vpop.f32.mrb[0].mxu0
  %v619 = vadd.f32 0.0, %v618
  %v620 = vpop.f32.mrb[0].mxu0
  %621 = vmatprep.mubr.bf16.mxu0 0
  %622 = vmatmul.mubr.bf16.gmra.mrb[0].mxu0 %v345
  %v623 = vpop.f32.mrb[0].mxu0
  %v624 = vadd.f32 0.0, %v623
  %v625 = vpop.f32.mrb[0].mxu0
  %v626 = vpop.f32.mrb[0].mxu0
  %v627 = vadd.f32 0.0, %v626
  %v628 = vpop.f32.mrb[0].mxu0
  %629 = vmatprep.mubr.bf16.mxu0 0
  %630 = vmatmul.mubr.bf16.gmra.mrb[0].mxu0 %v348
  %v631 = vpop.f32.mrb[0].mxu0
  %v632 = vadd.f32 0.0, %v631
  %v633 = vpop.f32.mrb[0].mxu0
  %v634 = vpop.f32.mrb[0].mxu0
  %v635 = vadd.f32 0.0, %v634
  %v636 = vpop.f32.mrb[0].mxu0
  %637 = vmatprep.mubr.bf16.mxu0 0
  %638 = vmatmul.mubr.bf16.gmra.mrb[0].mxu0 %v351
  %v639 = vpop.f32.mrb[0].mxu0
  %v640 = vadd.f32 0.0, %v639
  %v641 = vpop.f32.mrb[0].mxu0
  %v642 = vpop.f32.mrb[0].mxu0
  %v643 = vadd.f32 0.0, %v642
  %v644 = vpop.f32.mrb[0].mxu0
  %645 = vdwg.mxu0
  %vm646 = vcmask 261120
  %647 = vst.msk [vmem:[%s2] sm:$0xff] %vm646, %v392
  %648 = vst.msk [vmem:[%s2 + $0x8] sm:$0xff] %vm646, %v395
  %649 = vst.msk [vmem:[%s2 + $0x10] sm:$0xff] %vm646, %v400
  %650 = vst.msk [vmem:[%s2 + $0x18] sm:$0xff] %vm646, %v403
  %651 = vst.msk [vmem:[%s2 + $0x20] sm:$0xff] %vm646, %v408
  %652 = vst.msk [vmem:[%s2 + $0x28] sm:$0xff] %vm646, %v411
  %653 = vst.msk [vmem:[%s2 + $0x30] sm:$0xff] %vm646, %v416
  %654 = vst.msk [vmem:[%s2 + $0x38] sm:$0xff] %vm646, %v419
  %655 = vst.msk [vmem:[%s2 + $0x40] sm:$0xff] %vm646, %v424
  %656 = vst.msk [vmem:[%s2 + $0x48] sm:$0xff] %vm646, %v427
  %657 = vst.msk [vmem:[%s2 + $0x50] sm:$0xff] %vm646, %v432
  %658 = vst.msk [vmem:[%s2 + $0x58] sm:$0xff] %vm646, %v435
  %659 = vst.msk [vmem:[%s2 + $0x60] sm:$0xff] %vm646, %v440
  %660 = vst.msk [vmem:[%s2 + $0x68] sm:$0xff] %vm646, %v443
  %661 = vst.msk [vmem:[%s2 + $0x70] sm:$0xff] %vm646, %v448
  %662 = vst.msk [vmem:[%s2 + $0x78] sm:$0xff] %vm646, %v451
  %663 = vst.msk [vmem:[%s2 + $0x80] sm:$0xff] %vm646, %v456
  %664 = vst.msk [vmem:[%s2 + $0x88] sm:$0xff] %vm646, %v459
  %665 = vst.msk [vmem:[%s2 + $0x90] sm:$0xff] %vm646, %v464
  %666 = vst.msk [vmem:[%s2 + $0x98] sm:$0xff] %vm646, %v467
  %667 = vst.msk [vmem:[%s2 + $0xa0] sm:$0xff] %vm646, %v472
  %668 = vst.msk [vmem:[%s2 + $0xa8] sm:$0xff] %vm646, %v475
  %669 = vst.msk [vmem:[%s2 + $0xb0] sm:$0xff] %vm646, %v480
  %670 = vst.msk [vmem:[%s2 + $0xb8] sm:$0xff] %vm646, %v483
  %671 = vst.msk [vmem:[%s2 + $0xc0] sm:$0xff] %vm646, %v488
  %672 = vst.msk [vmem:[%s2 + $0xc8] sm:$0xff] %vm646, %v491
  %673 = vst.msk [vmem:[%s2 + $0xd0] sm:$0xff] %vm646, %v496
  %674 = vst.msk [vmem:[%s2 + $0xd8] sm:$0xff] %vm646, %v499
  %675 = vst.msk [vmem:[%s2 + $0xe0] sm:$0xff] %vm646, %v504
  %676 = vst.msk [vmem:[%s2 + $0xe8] sm:$0xff] %vm646, %v507
  %677 = vst.msk [vmem:[%s2 + $0xf0] sm:$0xff] %vm646, %v512
  %678 = vst.msk [vmem:[%s2 + $0xf8] sm:$0xff] %vm646, %v515
  %679 = vst.msk [vmem:[%s2 + $0x100] sm:$0xff] %vm646, %v520
  %680 = vst.msk [vmem:[%s2 + $0x108] sm:$0xff] %vm646, %v523
  %681 = vst.msk [vmem:[%s2 + $0x110] sm:$0xff] %vm646, %v528
  %682 = vst.msk [vmem:[%s2 + $0x118] sm:$0xff] %vm646, %v531
  %683 = vst.msk [vmem:[%s2 + $0x120] sm:$0xff] %vm646, %v536
  %684 = vst.msk [vmem:[%s2 + $0x128] sm:$0xff] %vm646, %v539
  %685 = vst.msk [vmem:[%s2 + $0x130] sm:$0xff] %vm646, %v544
  %686 = vst.msk [vmem:[%s2 + $0x138] sm:$0xff] %vm646, %v547
  %687 = vst.msk [vmem:[%s2 + $0x140] sm:$0xff] %vm646, %v552
  %688 = vst.msk [vmem:[%s2 + $0x148] sm:$0xff] %vm646, %v555
  %689 = vst.msk [vmem:[%s2 + $0x150] sm:$0xff] %vm646, %v560
  %690 = vst.msk [vmem:[%s2 + $0x158] sm:$0xff] %vm646, %v563
  %691 = vst.msk [vmem:[%s2 + $0x160] sm:$0xff] %vm646, %v568
  %692 = vst.msk [vmem:[%s2 + $0x168] sm:$0xff] %vm646, %v571
  %693 = vst.msk [vmem:[%s2 + $0x170] sm:$0xff] %vm646, %v576
  %694 = vst.msk [vmem:[%s2 + $0x178] sm:$0xff] %vm646, %v579
  %695 = vst.msk [vmem:[%s2 + $0x180] sm:$0xff] %vm646, %v584
  %696 = vst.msk [vmem:[%s2 + $0x188] sm:$0xff] %vm646, %v587
  %697 = vst.msk [vmem:[%s2 + $0x190] sm:$0xff] %vm646, %v592
  %698 = vst.msk [vmem:[%s2 + $0x198] sm:$0xff] %vm646, %v595
  %699 = vst.msk [vmem:[%s2 + $0x1a0] sm:$0xff] %vm646, %v600
  %700 = vst.msk [vmem:[%s2 + $0x1a8] sm:$0xff] %vm646, %v603
  %701 = vst.msk [vmem:[%s2 + $0x1b0] sm:$0xff] %vm646, %v608
  %702 = vst.msk [vmem:[%s2 + $0x1b8] sm:$0xff] %vm646, %v611
  %703 = vst.msk [vmem:[%s2 + $0x1c0] sm:$0xff] %vm646, %v616
  %704 = vst.msk [vmem:[%s2 + $0x1c8] sm:$0xff] %vm646, %v619
  %705 = vst.msk [vmem:[%s2 + $0x1d0] sm:$0xff] %vm646, %v624
  %706 = vst.msk [vmem:[%s2 + $0x1d8] sm:$0xff] %vm646, %v627
  %707 = vst.msk [vmem:[%s2 + $0x1e0] sm:$0xff] %vm646, %v632
  %708 = vst.msk [vmem:[%s2 + $0x1e8] sm:$0xff] %vm646, %v635
  %709 = vst.msk [vmem:[%s2 + $0x1f0] sm:$0xff] %vm646, %v640
  %710 = vst.msk [vmem:[%s2 + $0x1f8] sm:$0xff] %vm646, %v643
  // Predicated region
  $region10: #{up_transition_forward.10} parent=0 // pred_check
    _
  $region11: #{up_transition_forward.10} parent=0 // pred_check_branch
    %712 = sbr.rel (0) target = $region13
  $region12: #{up_transition_forward.10} parent=0 // pred_region
    _
  $region13: #{up_transition_forward.10} parent=0 // pred_fallthru
    _
  // Predicated region
  $region14: #{up_transition_forward.10} parent=0 // pred_check
    _
  $region15: #{up_transition_forward.10} parent=0 // pred_check_branch
    %714 = sbr.rel (0) target = $region17
  $region16: #{up_transition_forward.10} parent=0 // pred_region
    _
  $region17: #{up_transition_forward.10} parent=0 // pred_fallthru
    _

// kernel: up_transition_forward.11
$region0: #{up_transition_forward.11}
  #allocation0 [shape = 'u32[]', space=smem, size = 0x4, offset = 0x4, fixed_abs, tag = 'smem constant byte address 0x4 - core index']
  #allocation1 [shape = 'u32[144,128]{1,0:T(1,128)}', space=vmem, size = 0x12000, scoped, tag = 'internal scratch']
  %s0 = inlined_call_operand.vmem [shape: f32[128,128], index: 0, kind: input, shape index: {}]
  %s1 = inlined_call_operand.vmem [shape: f32[2,128], index: 1, kind: output, shape index: {}]
  %s2 = sld [smem:[#allocation0]]
  $region41: #{up_transition_forward.11} parent=0
    _
  %s4 = ssub.s32 1, %s2
  %s5 = scalar_select 0, %s4, %s2
  loop: start=0, step=1, limit=4
  $region2: #{up_transition_forward.11} parent=0 // loop_pre_header
    _
  $region3: #{up_transition_forward.11} parent=0 // loop_header
    %s7 = sphi 0, %s11
    %p8 = scmp.ge.s32.totalorder %s7, 4
    %s17 = sphi 0, %s19
    %s20 = sphi 0, %s17
    %s21 = sphi 0, %s20
    %s37 = sphi 0, %s21
    %s41 = sphi 0, %s41
    %s43 = sphi 0, %s41
    %s44 = sphi 0, %s43
    %s58 = sphi 0, %s44
  $region4: #{up_transition_forward.11} parent=0 // loop_header_branch
    %10 = sbr.rel (%p8) target = $region8
  $region5: #{up_transition_forward.11} parent=0 // loop_body
    %s12 = ssub.s32 %s7, 1
    %s13 = ssub.s32 %s7, 2
    %s14 = sadd.s32 %s7, 1
    %s15 = ssub.s32 %s7, %s14
    %p16 = scmp.eq.s32.totalorder %s15, 0
    %s18 = sadd.s32 %s17, 1
    %s19 = scalar_select %p16, %s17, %s18
    %p22 = pneg %p16
    %p23 = scmp.eq.s32.totalorder %s7, 1
    %p24 = por %p22, %p23
    %p25 = scmp.ne.s32.totalorder %s17, %s20
    %p26 = scmp.eq.s32.totalorder %s7, 0
    %p27 = por %p25, %p26
    %p28 = scmp.ne.s32.totalorder %s17, %s20
    %p29 = scmp.eq.s32.totalorder %s12, 1
    %p30 = por %p28, %p29
    %p31 = scmp.ne.s32.totalorder %s20, %s21
    %p32 = scmp.eq.s32.totalorder %s12, 0
    %p33 = por %p31, %p32
    %p34 = scmp.ne.s32.totalorder %s20, %s21
    %p35 = scmp.eq.s32.totalorder %s13, 1
    %p36 = por %p34, %p35
    %p38 = scmp.ne.s32.totalorder %s21, %s37
    %p39 = scmp.eq.s32.totalorder %s13, 0
    %p40 = por %p38, %p39
    %s42 = sadd.s32 %s41, 1
    %p45 = scmp.eq.s32.totalorder %s7, 1
    %p46 = scmp.ne.s32.totalorder %s41, %s43
    %p47 = scmp.eq.s32.totalorder %s7, 0
    %p48 = por %p46, %p47
    %p49 = scmp.ne.s32.totalorder %s41, %s43
    %p50 = scmp.eq.s32.totalorder %s12, 1
    %p51 = por %p49, %p50
    %p52 = scmp.ne.s32.totalorder %s43, %s44
    %p53 = scmp.eq.s32.totalorder %s12, 0
    %p54 = por %p52, %p53
    %p55 = scmp.ne.s32.totalorder %s43, %s44
    %p56 = scmp.eq.s32.totalorder %s13, 1
    %p57 = por %p55, %p56
    %p59 = scmp.ne.s32.totalorder %s44, %s58
    %p60 = scmp.eq.s32.totalorder %s13, 0
    %p61 = por %p59, %p60
    %p62 = scmp.le.s32.totalorder 1, %s7
    %p63 = scmp.lt.s32.totalorder %s7, 3
    %p64 = pnand %p62, %p63
    %p65 = pneg %p64
    // Predicated region
    $region9: #{up_transition_forward.11} parent=5 // pred_check
      _
    $region10: #{up_transition_forward.11} parent=5 // pred_check_branch
      %67 = sbr.rel (%p64) target = $region12
    $region11: #{up_transition_forward.11} parent=5 // pred_region
      %s68 = ssub.s32 %s7, 1
    $region12: #{up_transition_forward.11} parent=5 // pred_fallthru
      _
    %p69 = scmp.lt.s32.totalorder %s7, 2
    // Predicated region
    $region13: #{up_transition_forward.11} parent=5 // pred_check
      %p70 = pneg %p69
    $region14: #{up_transition_forward.11} parent=5 // pred_check_branch
      %72 = sbr.rel (%p70) target = $region16
    $region15: #{up_transition_forward.11} parent=5 // pred_region
      // Predicated region
      $region17: #{up_transition_forward.11} parent=15 // pred_check
        %p73 = pneg %p27
      $region18: #{up_transition_forward.11} parent=15 // pred_check_branch
        %75 = sbr.rel (%p73) target = $region20
      $region19: #{up_transition_forward.11} parent=15 // pred_region
        %s76 = smul.u32 8, %s7
        %p77 = scmp.lt.s32.totalorder %s76, 15
        %s78 = scalar_select %p77, %s76, 15
        %s79 = smul.addr %s78, 8
        %s80 = scalar_lea.vmem %s0, %s79
        %s81 = smul.u32 8, %s7
      $region20: #{up_transition_forward.11} parent=15 // pred_fallthru
        _
    $region16: #{up_transition_forward.11} parent=5 // pred_fallthru
      _
    %p82 = scmp.le.s32.totalorder 1, %s7
    %p83 = scmp.lt.s32.totalorder %s7, 3
    %p84 = pnand %p82, %p83
    %p85 = pneg %p84
    // Predicated region
    $region21: #{up_transition_forward.11} parent=5 // pred_check
      _
    $region22: #{up_transition_forward.11} parent=5 // pred_check_branch
      %87 = sbr.rel (%p84) target = $region24
    $region23: #{up_transition_forward.11} parent=5 // pred_region
      %s88 = ssub.s32 %s7, 1
      %s89 = smul.u32 8, %s12
      %p90 = scmp.lt.s32.totalorder %s89, 15
      %s91 = scalar_select %p90, %s89, 15
      %s92 = smul.addr %s91, 8
      %s93 = scalar_lea.vmem %s0, %s92
      %p94 = pneg %p33
      %p95 = pneg %p30
      %p96 = pneg %p54
      %p97 = pneg %p51
      %s98 = smul.u32 8, %s12
      %p99 = scmp.lt.s32.totalorder %s98, 15
      %s100 = scalar_select %p99, %s98, 15
      %s101 = smul.addr %s100, 8
      %s102 = scalar_lea.vmem %s0, %s101
      %s103 = smul.u32 8, %s12
      %p104 = scmp.eq.s32.totalorder %s12, 0
      // Predicated region
      $region25: #{up_transition_forward.11} parent=23 // pred_check
        %p105 = pneg %p104
      $region26: #{up_transition_forward.11} parent=23 // pred_check_branch
        %107 = sbr.rel (%p105) target = $region28
      $region27: #{up_transition_forward.11} parent=23 // pred_region
        %108 = vst [vmem:[%s1] sm:$0x3] 0.0
      $region28: #{up_transition_forward.11} parent=23 // pred_fallthru
        _
      %v109 = vld [vmem:[%s102] sm:$0xff]
      %v110 = vld [vmem:[%s102 + $0x8] sm:$0xff]
      %v111 = vld [vmem:[%s102 + $0x10] sm:$0xff]
      %v112 = vld [vmem:[%s102 + $0x18] sm:$0xff]
      %v113 = vld [vmem:[%s102 + $0x20] sm:$0xff]
      %v114 = vld [vmem:[%s102 + $0x28] sm:$0xff]
      %v115 = vld [vmem:[%s102 + $0x30] sm:$0xff]
      %v116 = vld [vmem:[%s102 + $0x38] sm:$0xff]
      %v117 = vld [vmem:[%s1] sm:$0x3]
      %v118 = vadd.f32 %v109, %v110
      %v119 = vadd.f32 %v118, %v111
      %v120 = vadd.f32 %v119, %v112
      %v121 = vadd.f32 %v120, %v113
      %v122 = vadd.f32 %v121, %v114
      %v123 = vadd.f32 %v122, %v115
      %v124 = vadd.f32 %v123, %v116
      %v125 = vrot.slane %v124, 4
      %v126 = vadd.f32 %v124, %v125
      %v127 = vrot.slane %v126, 2
      %v128 = vadd.f32 %v126, %v127
      %v129 = vrot.slane %v128, 1
      %v130 = vadd.f32 %v128, %v129
      %v131 = vmul.f32 %v109, %v109
      %v132 = vmul.f32 %v110, %v110
      %v133 = vmul.f32 %v111, %v111
      %v134 = vmul.f32 %v112, %v112
      %v135 = vmul.f32 %v113, %v113
      %v136 = vmul.f32 %v114, %v114
      %v137 = vmul.f32 %v115, %v115
      %v138 = vmul.f32 %v116, %v116
      %v139 = vadd.f32 %v131, %v132
      %v140 = vadd.f32 %v139, %v133
      %v141 = vadd.f32 %v140, %v134
      %v142 = vadd.f32 %v141, %v135
      %v143 = vadd.f32 %v142, %v136
      %v144 = vadd.f32 %v143, %v137
      %v145 = vadd.f32 %v144, %v138
      %v146 = vrot.slane %v145, 4
      %v147 = vadd.f32 %v145, %v146
      %v148 = vrot.slane %v147, 2
      %v149 = vadd.f32 %v147, %v148
      %v150 = vrot.slane %v149, 1
      %v151 = vadd.f32 %v149, %v150
      %vm152 = vcmask 1040384
      %v153 = vsel %vm152, %v130, %v151
      %v154 = vadd.f32 %v117, %v153
      %155 = vst [vmem:[%s1] sm:$0x3] %v154
      // Predicated region
      $region29: #{up_transition_forward.11} parent=23 // pred_check
        %p156 = pneg %p51
      $region30: #{up_transition_forward.11} parent=23 // pred_check_branch
        %158 = sbr.rel (%p156) target = $region32
      $region31: #{up_transition_forward.11} parent=23 // pred_region
        _
      $region32: #{up_transition_forward.11} parent=23 // pred_fallthru
        _
      // Predicated region
      $region33: #{up_transition_forward.11} parent=23 // pred_check
        %p159 = pneg %p51
      $region34: #{up_transition_forward.11} parent=23 // pred_check_branch
        %161 = sbr.rel (%p159) target = $region36
      $region35: #{up_transition_forward.11} parent=23 // pred_region
        _
      $region36: #{up_transition_forward.11} parent=23 // pred_fallthru
        _
    $region24: #{up_transition_forward.11} parent=5 // pred_fallthru
      _
    %p162 = scmp.le.s32.totalorder 2, %s7
    // Predicated region
    $region37: #{up_transition_forward.11} parent=5 // pred_check
      %p163 = pneg %p162
    $region38: #{up_transition_forward.11} parent=5 // pred_check_branch
      %165 = sbr.rel (%p163) target = $region40
    $region39: #{up_transition_forward.11} parent=5 // pred_region
      %s166 = ssub.s32 %s7, 2
    $region40: #{up_transition_forward.11} parent=5 // pred_fallthru
      _
  $region6: #{up_transition_forward.11} parent=0 // loop_footer
    %s11 = sadd.s32 1, %s7
  $region7: #{up_transition_forward.11} parent=0 // loop_footer_branch
    %6 = sbr.rel target = $region3
  $region8: #{up_transition_forward.11} parent=0 // loop_exit
    _

// kernel: squeeze.42
$region0: #{squeeze.42}
  %s0 = inlined_call_operand.vmem [shape: f32[128], index: 0, kind: input, shape index: {}]
  %s1 = inlined_call_operand.vmem [shape: f32[16,8], index: 1, kind: output, shape index: {}]
  $region1: #{squeeze.42} parent=0
    #allocation0 [shape = 'u8[4096]{0}', space=vmem, size = 0x1000, scoped, tag = 'scoped mem for input reshape']
    %s3 = sshllo.u32 0, 1
    %v4 = vld [vmem:[%s0] sm:%s3]
    %5 = vst [vmem:[#allocation0] sm:%s3] %v4
    %v6 = vld [vmem:[#allocation0] sm:$0x1]
    %vm7 = vcmask 64512
    %8 = vst.msk [vmem:[%s1] sm:$0x1] %vm7, %v6
    %v9 = vld [vmem:[#allocation0] sm:$0x1]
    %10 = vrot.lane.b32.xlu0 %v9, 120
    %v11 = vpop.permute.xlu0 %10
    %vm12 = vcmask 64512
    %s13 = scalar_lea.vmem %s1, 1
    %14 = vst.msk [vmem:[%s13] sm:$0x1] %vm12, %v11
    %v15 = vld [vmem:[#allocation0] sm:$0x1]
    %16 = vrot.lane.b32.xlu0 %v15, 112
    %v17 = vpop.permute.xlu0 %16
    %vm18 = vcmask 64512
    %s19 = scalar_lea.vmem %s1, 2
    %20 = vst.msk [vmem:[%s19] sm:$0x1] %vm18, %v17
    %v21 = vld [vmem:[#allocation0] sm:$0x1]
    %22 = vrot.lane.b32.xlu0 %v21, 104
    %v23 = vpop.permute.xlu0 %22
    %vm24 = vcmask 64512
    %s25 = scalar_lea.vmem %s1, 3
    %26 = vst.msk [vmem:[%s25] sm:$0x1] %vm24, %v23
    %v27 = vld [vmem:[#allocation0] sm:$0x1]
    %28 = vrot.lane.b32.xlu0 %v27, 96
    %v29 = vpop.permute.xlu0 %28
    %vm30 = vcmask 64512
    %s31 = scalar_lea.vmem %s1, 4
    %32 = vst.msk [vmem:[%s31] sm:$0x1] %vm30, %v29
    %v33 = vld [vmem:[#allocation0] sm:$0x1]
    %34 = vrot.lane.b32.xlu0 %v33, 88
    %v35 = vpop.permute.xlu0 %34
    %vm36 = vcmask 64512
    %s37 = scalar_lea.vmem %s1, 5
    %38 = vst.msk [vmem:[%s37] sm:$0x1] %vm36, %v35
    %v39 = vld [vmem:[#allocation0] sm:$0x1]
    %40 = vrot.lane.b32.xlu0 %v39, 80
    %v41 = vpop.permute.xlu0 %40
    %vm42 = vcmask 64512
    %s43 = scalar_lea.vmem %s1, 6
    %44 = vst.msk [vmem:[%s43] sm:$0x1] %vm42, %v41
    %v45 = vld [vmem:[#allocation0] sm:$0x1]
    %46 = vrot.lane.b32.xlu0 %v45, 72
    %v47 = vpop.permute.xlu0 %46
    %vm48 = vcmask 64512
    %s49 = scalar_lea.vmem %s1, 7
    %50 = vst.msk [vmem:[%s49] sm:$0x1] %vm48, %v47
    %v51 = vld [vmem:[#allocation0] sm:$0x1]
    %52 = vrot.lane.b32.xlu0 %v51, 64
    %v53 = vpop.permute.xlu0 %52
    %vm54 = vcmask 64512
    %s55 = scalar_lea.vmem %s1, 8
    %56 = vst.msk [vmem:[%s55] sm:$0x1] %vm54, %v53
    %v57 = vld [vmem:[#allocation0] sm:$0x1]
    %58 = vrot.lane.b32.xlu0 %v57, 56
    %v59 = vpop.permute.xlu0 %58
    %vm60 = vcmask 64512
    %s61 = scalar_lea.vmem %s1, 9
    %62 = vst.msk [vmem:[%s61] sm:$0x1] %vm60, %v59
    %v63 = vld [vmem:[#allocation0] sm:$0x1]
    %64 = vrot.lane.b32.xlu0 %v63, 48
    %v65 = vpop.permute.xlu0 %64
    %vm66 = vcmask 64512
    %s67 = scalar_lea.vmem %s1, 10
    %68 = vst.msk [vmem:[%s67] sm:$0x1] %vm66, %v65
    %v69 = vld [vmem:[#allocation0] sm:$0x1]
    %70 = vrot.lane.b32.xlu0 %v69, 40
    %v71 = vpop.permute.xlu0 %70
    %vm72 = vcmask 64512
    %s73 = scalar_lea.vmem %s1, 11
    %74 = vst.msk [vmem:[%s73] sm:$0x1] %vm72, %v71
    %v75 = vld [vmem:[#allocation0] sm:$0x1]
    %76 = vrot.lane.b32.xlu0 %v75, 32
    %v77 = vpop.permute.xlu0 %76
    %vm78 = vcmask 64512
    %s79 = scalar_lea.vmem %s1, 12
    %80 = vst.msk [vmem:[%s79] sm:$0x1] %vm78, %v77
    %v81 = vld [vmem:[#allocation0] sm:$0x1]
    %82 = vrot.lane.b32.xlu0 %v81, 24
    %v83 = vpop.permute.xlu0 %82
    %vm84 = vcmask 64512
    %s85 = scalar_lea.vmem %s1, 13
    %86 = vst.msk [vmem:[%s85] sm:$0x1] %vm84, %v83
    %v87 = vld [vmem:[#allocation0] sm:$0x1]
    %88 = vrot.lane.b32.xlu0 %v87, 16
    %v89 = vpop.permute.xlu0 %88
    %vm90 = vcmask 64512
    %s91 = scalar_lea.vmem %s1, 14
    %92 = vst.msk [vmem:[%s91] sm:$0x1] %vm90, %v89
    %v93 = vld [vmem:[#allocation0] sm:$0x1]
    %94 = vrot.lane.b32.xlu0 %v93, 8
    %v95 = vpop.permute.xlu0 %94
    %vm96 = vcmask 64512
    %s97 = scalar_lea.vmem %s1, 15
    %98 = vst.msk [vmem:[%s97] sm:$0x1] %vm96, %v95

// kernel: tile.38
$region0: #{tile.38}
  #allocation0 [shape = 's32[1]{0}', space=sflag, size = 0x4, scoped, tag = 'scoped memory for tile.38']
  %s0 = inlined_call_operand.vmem [shape: f32[8], index: 0, kind: input, shape index: {}]
  %s1 = inlined_call_operand.vmem [shape: f32[16,8], index: 1, kind: output, shape index: {}]
  // Predicated region
  $region2: #{tile.38} parent=0 // pred_check
    _
  $region3: #{tile.38} parent=0 // pred_check_branch
    %3 = sbr.rel (0) target = $region5
  $region4: #{tile.38} parent=0 // pred_region
    _
  $region5: #{tile.38} parent=0 // pred_fallthru
    _
  %v4 = vld [vmem:[%s0] ss:$0 sm:$0xff]
  %5 = vst [vmem:[%s1] sm:$0xff] %v4
  %s6 = scalar_lea.vmem %s1, 8
  %7 = vst [vmem:[%s6] sm:$0xff] %v4

// kernel: tile.39
$region0: #{tile.39}
  %s0 = inlined_call_operand.vmem [shape: f32[16,8], index: 0, kind: input, shape index: {}]
  %s1 = inlined_call_operand.vmem [shape: f32[1,128], index: 1, kind: output, shape index: {}]
  $region1: #{tile.39} parent=0
    #allocation0 [shape = 'u8[4096]{0}', space=vmem, size = 0x1000, scoped, tag = 'scoped mem for output reshape']
    %v2 = vld [vmem:[%s0] sm:$0x1]
    %vm3 = vcmask 64512
    %4 = vst.msk [vmem:[#allocation0] sm:$0x1] %vm3, %v2
    %s5 = scalar_lea.vmem %s0, 15
    %v6 = vld [vmem:[%s5] sm:$0x1]
    %7 = vrot.lane.b32.xlu0 %v6, 120
    %v8 = vpop.permute.xlu0 %7
    %vm9 = vcmask 1048512
    %10 = vst.msk [vmem:[#allocation0] sm:$0x1] %vm9, %v8
    %s11 = scalar_lea.vmem %s0, 14
    %v12 = vld [vmem:[%s11] sm:$0x1]
    %13 = vrot.lane.b32.xlu0 %v12, 112
    %v14 = vpop.permute.xlu0 %13
    %vm15 = vcmask 982912
    %16 = vst.msk [vmem:[#allocation0] sm:$0x1] %vm15, %v14
    %s17 = scalar_lea.vmem %s0, 13
    %v18 = vld [vmem:[%s17] sm:$0x1]
    %19 = vrot.lane.b32.xlu0 %v18, 104
    %v20 = vpop.permute.xlu0 %19
    %vm21 = vcmask 917312
    %22 = vst.msk [vmem:[#allocation0] sm:$0x1] %vm21, %v20
    %s23 = scalar_lea.vmem %s0, 12
    %v24 = vld [vmem:[%s23] sm:$0x1]
    %25 = vrot.lane.b32.xlu0 %v24, 96
    %v26 = vpop.permute.xlu0 %25
    %vm27 = vcmask 851712
    %28 = vst.msk [vmem:[#allocation0] sm:$0x1] %vm27, %v26
    %s29 = scalar_lea.vmem %s0, 11
    %v30 = vld [vmem:[%s29] sm:$0x1]
    %31 = vrot.lane.b32.xlu0 %v30, 88
    %v32 = vpop.permute.xlu0 %31
    %vm33 = vcmask 786112
    %34 = vst.msk [vmem:[#allocation0] sm:$0x1] %vm33, %v32
    %s35 = scalar_lea.vmem %s0, 10
    %v36 = vld [vmem:[%s35] sm:$0x1]
    %37 = vrot.lane.b32.xlu0 %v36, 80
    %v38 = vpop.permute.xlu0 %37
    %vm39 = vcmask 720512
    %40 = vst.msk [vmem:[#allocation0] sm:$0x1] %vm39, %v38
    %s41 = scalar_lea.vmem %s0, 9
    %v42 = vld [vmem:[%s41] sm:$0x1]
    %43 = vrot.lane.b32.xlu0 %v42, 72
    %v44 = vpop.permute.xlu0 %43
    %vm45 = vcmask 654912
    %46 = vst.msk [vmem:[#allocation0] sm:$0x1] %vm45, %v44
    %s47 = scalar_lea.vmem %s0, 8
    %v48 = vld [vmem:[%s47] sm:$0x1]
    %49 = vrot.lane.b32.xlu0 %v48, 64
    %v50 = vpop.permute.xlu0 %49
    %vm51 = vcmask 589312
    %52 = vst.msk [vmem:[#allocation0] sm:$0x1] %vm51, %v50
    %s53 = scalar_lea.vmem %s0, 7
    %v54 = vld [vmem:[%s53] sm:$0x1]
    %55 = vrot.lane.b32.xlu0 %v54, 56
    %v56 = vpop.permute.xlu0 %55
    %vm57 = vcmask 523712
    %58 = vst.msk [vmem:[#allocation0] sm:$0x1] %vm57, %v56
    %s59 = scalar_lea.vmem %s0, 6
    %v60 = vld [vmem:[%s59] sm:$0x1]
    %61 = vrot.lane.b32.xlu0 %v60, 48
    %v62 = vpop.permute.xlu0 %61
    %vm63 = vcmask 458112
    %64 = vst.msk [vmem:[#allocation0] sm:$0x1] %vm63, %v62
    %s65 = scalar_lea.vmem %s0, 5
    %v66 = vld [vmem:[%s65] sm:$0x1]
    %67 = vrot.lane.b32.xlu0 %v66, 40
    %v68 = vpop.permute.xlu0 %67
    %vm69 = vcmask 392512
    %70 = vst.msk [vmem:[#allocation0] sm:$0x1] %vm69, %v68
    %s71 = scalar_lea.vmem %s0, 4
    %v72 = vld [vmem:[%s71] sm:$0x1]
    %73 = vrot.lane.b32.xlu0 %v72, 32
    %v74 = vpop.permute.xlu0 %73
    %vm75 = vcmask 326912
    %76 = vst.msk [vmem:[#allocation0] sm:$0x1] %vm75, %v74
    %s77 = scalar_lea.vmem %s0, 3
    %v78 = vld [vmem:[%s77] sm:$0x1]
    %79 = vrot.lane.b32.xlu0 %v78, 24
    %v80 = vpop.permute.xlu0 %79
    %vm81 = vcmask 261312
    %82 = vst.msk [vmem:[#allocation0] sm:$0x1] %vm81, %v80
    %s83 = scalar_lea.vmem %s0, 2
    %v84 = vld [vmem:[%s83] sm:$0x1]
    %85 = vrot.lane.b32.xlu0 %v84, 16
    %v86 = vpop.permute.xlu0 %85
    %vm87 = vcmask 195712
    %88 = vst.msk [vmem:[#allocation0] sm:$0x1] %vm87, %v86
    %s89 = scalar_lea.vmem %s0, 1
    %v90 = vld [vmem:[%s89] sm:$0x1]
    %91 = vrot.lane.b32.xlu0 %v90, 8
    %v92 = vpop.permute.xlu0 %91
    %vm93 = vcmask 130112
    %94 = vst.msk [vmem:[#allocation0] sm:$0x1] %vm93, %v92
    %s96 = sshllo.u32 0, 1
    %v98 = vld [vmem:[#allocation0] sm:%s96]
    %s99 = sshllo.u32 0, 1
    %100 = vst [vmem:[%s1] sm:%s99] %v98

// kernel: up_transition_forward.12
$region0: #{up_transition_forward.12}
  #allocation0 [shape = 'u32[]', space=smem, size = 0x4, offset = 0x4, fixed_abs, tag = 'smem constant byte address 0x4 - core index']
  #allocation1 [shape = 'u32[144,128]{1,0:T(1,128)}', space=vmem, size = 0x12000, scoped, tag = 'internal scratch']
  %s0 = inlined_call_operand.vmem [shape: f32[128,128], index: 0, kind: input, shape index: {}]
  %s1 = inlined_call_operand.vmem [shape: f32[1,128], index: 1, kind: input, shape index: {}]
  %s2 = inlined_call_operand.vmem [shape: f32[1,128], index: 2, kind: input, shape index: {}]
  %s3 = inlined_call_operand.vmem [shape: f32[128,128], index: 3, kind: output, shape index: {}]
  %s4 = sld [smem:[#allocation0]]
  $region22: #{up_transition_forward.12} parent=0
    _
  %s6 = ssub.s32 1, %s4
  %s7 = scalar_select 0, %s6, %s4
  // Predicated region
  $region2: #{up_transition_forward.12} parent=0 // pred_check
    _
  $region3: #{up_transition_forward.12} parent=0 // pred_check_branch
    %9 = sbr.rel (0) target = $region5
  $region4: #{up_transition_forward.12} parent=0 // pred_region
    _
  $region5: #{up_transition_forward.12} parent=0 // pred_fallthru
    _
  // Predicated region
  $region6: #{up_transition_forward.12} parent=0 // pred_check
    _
  $region7: #{up_transition_forward.12} parent=0 // pred_check_branch
    %11 = sbr.rel (0) target = $region9
  $region8: #{up_transition_forward.12} parent=0 // pred_region
    _
  $region9: #{up_transition_forward.12} parent=0 // pred_fallthru
    _
  // Predicated region
  $region10: #{up_transition_forward.12} parent=0 // pred_check
    _
  $region11: #{up_transition_forward.12} parent=0 // pred_check_branch
    %13 = sbr.rel (0) target = $region13
  $region12: #{up_transition_forward.12} parent=0 // pred_region
    _
  $region13: #{up_transition_forward.12} parent=0 // pred_fallthru
    _
  %v14 = vld [vmem:[%s0] sm:$0xff]
  %v15 = vld [vmem:[%s0 + $0x8] sm:$0xff]
  %v16 = vld [vmem:[%s0 + $0x10] sm:$0xff]
  %v17 = vld [vmem:[%s0 + $0x18] sm:$0xff]
  %v18 = vld [vmem:[%s0 + $0x20] sm:$0xff]
  %v19 = vld [vmem:[%s0 + $0x28] sm:$0xff]
  %v20 = vld [vmem:[%s0 + $0x30] sm:$0xff]
  %v21 = vld [vmem:[%s0 + $0x38] sm:$0xff]
  %v22 = vld [vmem:[%s0 + $0x40] sm:$0xff]
  %v23 = vld [vmem:[%s0 + $0x48] sm:$0xff]
  %v24 = vld [vmem:[%s0 + $0x50] sm:$0xff]
  %v25 = vld [vmem:[%s0 + $0x58] sm:$0xff]
  %v26 = vld [vmem:[%s0 + $0x60] sm:$0xff]
  %v27 = vld [vmem:[%s0 + $0x68] sm:$0xff]
  %v28 = vld [vmem:[%s0 + $0x70] sm:$0xff]
  %v29 = vld [vmem:[%s0 + $0x78] sm:$0xff]
  %v30 = vld [vmem:[%s1] sm:$0x1]
  %v32 = vlaneseq
  %v33 = vshrl.u32 %v32, 7
  %v34 = vsub.s32 0, %v33
  %v35 = vrot.slane %v30, %v34
  %v37 = vmul.f32 %v14, %v35
  %v38 = vmul.f32 %v15, %v35
  %v39 = vmul.f32 %v16, %v35
  %v40 = vmul.f32 %v17, %v35
  %v41 = vmul.f32 %v18, %v35
  %v42 = vmul.f32 %v19, %v35
  %v43 = vmul.f32 %v20, %v35
  %v44 = vmul.f32 %v21, %v35
  %v45 = vmul.f32 %v22, %v35
  %v46 = vmul.f32 %v23, %v35
  %v47 = vmul.f32 %v24, %v35
  %v48 = vmul.f32 %v25, %v35
  %v49 = vmul.f32 %v26, %v35
  %v50 = vmul.f32 %v27, %v35
  %v51 = vmul.f32 %v28, %v35
  %v52 = vmul.f32 %v29, %v35
  %v53 = vld [vmem:[%s2] sm:$0x1]
  %v55 = vlaneseq
  %v56 = vshrl.u32 %v55, 7
  %v57 = vsub.s32 0, %v56
  %v58 = vrot.slane %v53, %v57
  %v60 = vadd.f32 %v37, %v58
  %v61 = vadd.f32 %v38, %v58
  %v62 = vadd.f32 %v39, %v58
  %v63 = vadd.f32 %v40, %v58
  %v64 = vadd.f32 %v41, %v58
  %v65 = vadd.f32 %v42, %v58
  %v66 = vadd.f32 %v43, %v58
  %v67 = vadd.f32 %v44, %v58
  %v68 = vadd.f32 %v45, %v58
  %v69 = vadd.f32 %v46, %v58
  %v70 = vadd.f32 %v47, %v58
  %v71 = vadd.f32 %v48, %v58
  %v72 = vadd.f32 %v49, %v58
  %v73 = vadd.f32 %v50, %v58
  %v74 = vadd.f32 %v51, %v58
  %v75 = vadd.f32 %v52, %v58
  %vm76 = vcmp.gt.f32.partialorder %v60, 0.0
  %vm77 = vcmp.gt.f32.partialorder %v61, 0.0
  %vm78 = vcmp.gt.f32.partialorder %v62, 0.0
  %vm79 = vcmp.gt.f32.partialorder %v63, 0.0
  %vm80 = vcmp.gt.f32.partialorder %v64, 0.0
  %vm81 = vcmp.gt.f32.partialorder %v65, 0.0
  %vm82 = vcmp.gt.f32.partialorder %v66, 0.0
  %vm83 = vcmp.gt.f32.partialorder %v67, 0.0
  %vm84 = vcmp.gt.f32.partialorder %v68, 0.0
  %vm85 = vcmp.gt.f32.partialorder %v69, 0.0
  %vm86 = vcmp.gt.f32.partialorder %v70, 0.0
  %vm87 = vcmp.gt.f32.partialorder %v71, 0.0
  %vm88 = vcmp.gt.f32.partialorder %v72, 0.0
  %vm89 = vcmp.gt.f32.partialorder %v73, 0.0
  %vm90 = vcmp.gt.f32.partialorder %v74, 0.0
  %vm91 = vcmp.gt.f32.partialorder %v75, 0.0
  %v92 = vmin.f32 %v60, 0.0
  %v93 = vmin.f32 %v61, 0.0
  %v94 = vmin.f32 %v62, 0.0
  %v95 = vmin.f32 %v63, 0.0
  %v96 = vmin.f32 %v64, 0.0
  %v97 = vmin.f32 %v65, 0.0
  %v98 = vmin.f32 %v66, 0.0
  %v99 = vmin.f32 %v67, 0.0
  %v100 = vmin.f32 %v68, 0.0
  %v101 = vmin.f32 %v69, 0.0
  %v102 = vmin.f32 %v70, 0.0
  %v103 = vmin.f32 %v71, 0.0
  %v104 = vmin.f32 %v72, 0.0
  %v105 = vmin.f32 %v73, 0.0
  %v106 = vmin.f32 %v74, 0.0
  %v107 = vmin.f32 %v75, 0.0
  %v108 = vmul.f32 %v92, 1.442695
  %v109 = vpow.pop %v108
  %v110 = vmul.f32 %v93, 1.442695
  %v111 = vpow.pop %v110
  %v112 = vmul.f32 %v94, 1.442695
  %v113 = vpow.pop %v112
  %v114 = vmul.f32 %v95, 1.442695
  %v115 = vpow.pop %v114
  %v116 = vmul.f32 %v96, 1.442695
  %v117 = vpow.pop %v116
  %v118 = vmul.f32 %v97, 1.442695
  %v119 = vpow.pop %v118
  %v120 = vmul.f32 %v98, 1.442695
  %v121 = vpow.pop %v120
  %v122 = vmul.f32 %v99, 1.442695
  %v123 = vpow.pop %v122
  %v124 = vmul.f32 %v100, 1.442695
  %v125 = vpow.pop %v124
  %v126 = vmul.f32 %v101, 1.442695
  %v127 = vpow.pop %v126
  %v128 = vmul.f32 %v102, 1.442695
  %v129 = vpow.pop %v128
  %v130 = vmul.f32 %v103, 1.442695
  %v131 = vpow.pop %v130
  %v132 = vmul.f32 %v104, 1.442695
  %v133 = vpow.pop %v132
  %v134 = vmul.f32 %v105, 1.442695
  %v135 = vpow.pop %v134
  %v136 = vmul.f32 %v106, 1.442695
  %v137 = vpow.pop %v136
  %v138 = vmul.f32 %v107, 1.442695
  %v139 = vpow.pop %v138
  %v140 = vsub.f32 %v109, 1.0
  %v141 = vsub.f32 %v111, 1.0
  %v142 = vsub.f32 %v113, 1.0
  %v143 = vsub.f32 %v115, 1.0
  %v144 = vsub.f32 %v117, 1.0
  %v145 = vsub.f32 %v119, 1.0
  %v146 = vsub.f32 %v121, 1.0
  %v147 = vsub.f32 %v123, 1.0
  %v148 = vsub.f32 %v125, 1.0
  %v149 = vsub.f32 %v127, 1.0
  %v150 = vsub.f32 %v129, 1.0
  %v151 = vsub.f32 %v131, 1.0
  %v152 = vsub.f32 %v133, 1.0
  %v153 = vsub.f32 %v135, 1.0
  %v154 = vsub.f32 %v137, 1.0
  %v155 = vsub.f32 %v139, 1.0
  %v156 = vsel %vm76, %v60, %v140
  %v157 = vsel %vm77, %v61, %v141
  %v158 = vsel %vm78, %v62, %v142
  %v159 = vsel %vm79, %v63, %v143
  %v160 = vsel %vm80, %v64, %v144
  %v161 = vsel %vm81, %v65, %v145
  %v162 = vsel %vm82, %v66, %v146
  %v163 = vsel %vm83, %v67, %v147
  %v164 = vsel %vm84, %v68, %v148
  %v165 = vsel %vm85, %v69, %v149
  %v166 = vsel %vm86, %v70, %v150
  %v167 = vsel %vm87, %v71, %v151
  %v168 = vsel %vm88, %v72, %v152
  %v169 = vsel %vm89, %v73, %v153
  %v170 = vsel %vm90, %v74, %v154
  %v171 = vsel %vm91, %v75, %v155
  %172 = vst [vmem:[%s3] sm:$0xff] %v156
  %173 = vst [vmem:[%s3 + $0x8] sm:$0xff] %v157
  %174 = vst [vmem:[%s3 + $0x10] sm:$0xff] %v158
  %175 = vst [vmem:[%s3 + $0x18] sm:$0xff] %v159
  %176 = vst [vmem:[%s3 + $0x20] sm:$0xff] %v160
  %177 = vst [vmem:[%s3 + $0x28] sm:$0xff] %v161
  %178 = vst [vmem:[%s3 + $0x30] sm:$0xff] %v162
  %179 = vst [vmem:[%s3 + $0x38] sm:$0xff] %v163
  %180 = vst [vmem:[%s3 + $0x40] sm:$0xff] %v164
  %181 = vst [vmem:[%s3 + $0x48] sm:$0xff] %v165
  %182 = vst [vmem:[%s3 + $0x50] sm:$0xff] %v166
  %183 = vst [vmem:[%s3 + $0x58] sm:$0xff] %v167
  %184 = vst [vmem:[%s3 + $0x60] sm:$0xff] %v168
  %185 = vst [vmem:[%s3 + $0x68] sm:$0xff] %v169
  %186 = vst [vmem:[%s3 + $0x70] sm:$0xff] %v170
  %187 = vst [vmem:[%s3 + $0x78] sm:$0xff] %v171
  // Predicated region
  $region14: #{up_transition_forward.12} parent=0 // pred_check
    _
  $region15: #{up_transition_forward.12} parent=0 // pred_check_branch
    %189 = sbr.rel (0) target = $region17
  $region16: #{up_transition_forward.12} parent=0 // pred_region
    _
  $region17: #{up_transition_forward.12} parent=0 // pred_fallthru
    _
  // Predicated region
  $region18: #{up_transition_forward.12} parent=0 // pred_check
    _
  $region19: #{up_transition_forward.12} parent=0 // pred_check_branch
    %191 = sbr.rel (0) target = $region21
  $region20: #{up_transition_forward.12} parent=0 // pred_region
    _
  $region21: #{up_transition_forward.12} parent=0 // pred_fallthru
    _

// kernel: up_transition_forward.13
$region0: #{up_transition_forward.13}
  #allocation0 [shape = 'u32[]', space=smem, size = 0x4, offset = 0x4, fixed_abs, tag = 'smem constant byte address 0x4 - core index']
  #allocation1 [shape = 'u32[144,128]{1,0:T(1,128)}', space=vmem, size = 0x12000, scoped, tag = 'internal scratch']
  %s0 = inlined_call_operand.vmem [shape: bf16[2048,72], index: 0, kind: input, shape index: {}]
  %s1 = inlined_call_operand.vmem [shape: bf16[72,8], index: 1, kind: input, shape index: {}]
  %s2 = inlined_call_operand.vmem [shape: f32[2048,8], index: 2, kind: output, shape index: {}]
  %s3 = sld [smem:[#allocation0]]
  $region41: #{up_transition_forward.13} parent=0
    _
  %s5 = ssub.s32 1, %s3
  %s6 = scalar_select 0, %s5, %s3
  loop: start=0, step=1, limit=6
  $region2: #{up_transition_forward.13} parent=0 // loop_pre_header
    _
  $region3: #{up_transition_forward.13} parent=0 // loop_header
    %s8 = sphi 0, %s12
    %p9 = scmp.ge.s32.totalorder %s8, 6
    %s18 = sphi 0, %s20
    %s21 = sphi 0, %s18
    %s22 = sphi 0, %s21
    %s38 = sphi 0, %s22
    %s42 = sphi 0, %s42
    %s44 = sphi 0, %s42
    %s45 = sphi 0, %s44
    %s59 = sphi 0, %s45
    %s65 = sphi 0, %s67
    %s68 = sphi 0, %s65
    %s69 = sphi 0, %s68
    %s85 = sphi 0, %s69
  $region4: #{up_transition_forward.13} parent=0 // loop_header_branch
    %11 = sbr.rel (%p9) target = $region8
  $region5: #{up_transition_forward.13} parent=0 // loop_body
    %s13 = ssub.s32 %s8, 1
    %s14 = ssub.s32 %s8, 2
    %s15 = sadd.s32 %s8, 1
    %s16 = ssub.s32 %s8, %s15
    %p17 = scmp.eq.s32.totalorder %s16, 0
    %s19 = sadd.s32 %s18, 1
    %s20 = scalar_select %p17, %s18, %s19
    %p23 = pneg %p17
    %p24 = scmp.eq.s32.totalorder %s8, 3
    %p25 = por %p23, %p24
    %p26 = scmp.ne.s32.totalorder %s18, %s21
    %p27 = scmp.eq.s32.totalorder %s8, 0
    %p28 = por %p26, %p27
    %p29 = scmp.ne.s32.totalorder %s18, %s21
    %p30 = scmp.eq.s32.totalorder %s13, 3
    %p31 = por %p29, %p30
    %p32 = scmp.ne.s32.totalorder %s21, %s22
    %p33 = scmp.eq.s32.totalorder %s13, 0
    %p34 = por %p32, %p33
    %p35 = scmp.ne.s32.totalorder %s21, %s22
    %p36 = scmp.eq.s32.totalorder %s14, 3
    %p37 = por %p35, %p36
    %p39 = scmp.ne.s32.totalorder %s22, %s38
    %p40 = scmp.eq.s32.totalorder %s14, 0
    %p41 = por %p39, %p40
    %s43 = sadd.s32 %s42, 1
    %p46 = scmp.eq.s32.totalorder %s8, 3
    %p47 = scmp.ne.s32.totalorder %s42, %s44
    %p48 = scmp.eq.s32.totalorder %s8, 0
    %p49 = por %p47, %p48
    %p50 = scmp.ne.s32.totalorder %s42, %s44
    %p51 = scmp.eq.s32.totalorder %s13, 3
    %p52 = por %p50, %p51
    %p53 = scmp.ne.s32.totalorder %s44, %s45
    %p54 = scmp.eq.s32.totalorder %s13, 0
    %p55 = por %p53, %p54
    %p56 = scmp.ne.s32.totalorder %s44, %s45
    %p57 = scmp.eq.s32.totalorder %s14, 3
    %p58 = por %p56, %p57
    %p60 = scmp.ne.s32.totalorder %s45, %s59
    %p61 = scmp.eq.s32.totalorder %s14, 0
    %p62 = por %p60, %p61
    %s63 = ssub.s32 %s8, %s15
    %p64 = scmp.eq.s32.totalorder %s63, 0
    %s66 = sadd.s32 %s65, 1
    %s67 = scalar_select %p64, %s65, %s66
    %p70 = pneg %p64
    %p71 = scmp.eq.s32.totalorder %s8, 3
    %p72 = por %p70, %p71
    %p73 = scmp.ne.s32.totalorder %s65, %s68
    %p74 = scmp.eq.s32.totalorder %s8, 0
    %p75 = por %p73, %p74
    %p76 = scmp.ne.s32.totalorder %s65, %s68
    %p77 = scmp.eq.s32.totalorder %s13, 3
    %p78 = por %p76, %p77
    %p79 = scmp.ne.s32.totalorder %s68, %s69
    %p80 = scmp.eq.s32.totalorder %s13, 0
    %p81 = por %p79, %p80
    %p82 = scmp.ne.s32.totalorder %s68, %s69
    %p83 = scmp.eq.s32.totalorder %s14, 3
    %p84 = por %p82, %p83
    %p86 = scmp.ne.s32.totalorder %s69, %s85
    %p87 = scmp.eq.s32.totalorder %s14, 0
    %p88 = por %p86, %p87
    %p89 = scmp.le.s32.totalorder 1, %s8
    %p90 = scmp.lt.s32.totalorder %s8, 5
    %p91 = pnand %p89, %p90
    %p92 = pneg %p91
    // Predicated region
    $region9: #{up_transition_forward.13} parent=5 // pred_check
      _
    $region10: #{up_transition_forward.13} parent=5 // pred_check_branch
      %94 = sbr.rel (%p91) target = $region12
    $region11: #{up_transition_forward.13} parent=5 // pred_region
      %s95 = ssub.s32 %s8, 1
      // Predicated region
      $region13: #{up_transition_forward.13} parent=11 // pred_check
        %p96 = pneg %p55
      $region14: #{up_transition_forward.13} parent=11 // pred_check_branch
        %98 = sbr.rel (%p96) target = $region16
      $region15: #{up_transition_forward.13} parent=11 // pred_region
        _
      $region16: #{up_transition_forward.13} parent=11 // pred_fallthru
        _
    $region12: #{up_transition_forward.13} parent=5 // pred_fallthru
      _
    %p99 = scmp.lt.s32.totalorder %s8, 4
    // Predicated region
    $region17: #{up_transition_forward.13} parent=5 // pred_check
      %p100 = pneg %p99
    $region18: #{up_transition_forward.13} parent=5 // pred_check_branch
      %102 = sbr.rel (%p100) target = $region20
    $region19: #{up_transition_forward.13} parent=5 // pred_region
      // Predicated region
      $region21: #{up_transition_forward.13} parent=19 // pred_check
        %p103 = pneg %p28
      $region22: #{up_transition_forward.13} parent=19 // pred_check_branch
        %105 = sbr.rel (%p103) target = $region24
      $region23: #{up_transition_forward.13} parent=19 // pred_region
        %s106 = smul.u32 64, %s8
        %p107 = scmp.lt.s32.totalorder %s106, 255
        %s108 = scalar_select %p107, %s106, 255
        %s109 = smul.addr %s108, 4
        %s110 = scalar_lea.vmem %s0, %s109
        %s111 = smul.u32 64, %s8
      $region24: #{up_transition_forward.13} parent=19 // pred_fallthru
        _
    $region20: #{up_transition_forward.13} parent=5 // pred_fallthru
      _
    %p112 = scmp.le.s32.totalorder 1, %s8
    %p113 = scmp.lt.s32.totalorder %s8, 5
    %p114 = pnand %p112, %p113
    %p115 = pneg %p114
    // Predicated region
    $region25: #{up_transition_forward.13} parent=5 // pred_check
      _
    $region26: #{up_transition_forward.13} parent=5 // pred_check_branch
      %117 = sbr.rel (%p114) target = $region28
    $region27: #{up_transition_forward.13} parent=5 // pred_region
      %s118 = ssub.s32 %s8, 1
      %s119 = smul.u32 64, %s13
      %p120 = scmp.lt.s32.totalorder %s119, 255
      %s121 = scalar_select %p120, %s119, 255
      %s122 = smul.addr %s121, 4
      %s123 = scalar_lea.vmem %s0, %s122
      %p124 = pneg %p34
      %p125 = pneg %p31
      %p126 = pneg %p55
      %p127 = pneg %p52
      %p128 = pneg %p81
      %p129 = pneg %p78
      %s130 = smul.u32 64, %s13
      %p131 = scmp.lt.s32.totalorder %s130, 255
      %s132 = scalar_select %p131, %s130, 255
      %s133 = smul.addr %s132, 8
      %s134 = scalar_lea.vmem %s2, %s133
      %s135 = smul.u32 64, %s13
      %p136 = scmp.lt.s32.totalorder %s135, 255
      %s137 = scalar_select %p136, %s135, 255
      %s138 = smul.addr %s137, 4
      %s139 = scalar_lea.vmem %s0, %s138
      %s140 = smul.u32 64, %s13
      %s141 = smul.u32 64, %s13
      %p142 = scmp.lt.s32.totalorder %s141, 255
      %s143 = scalar_select %p142, %s141, 255
      %s144 = smul.addr %s143, 8
      %s145 = scalar_lea.vmem %s2, %s144
      %s146 = smul.u32 64, %s13
      %v148 = vld [vmem:[%s139] sm:$0xf]
      %v149 = vld [vmem:[%s139 + $0x4] sm:$0xf]
      %v150 = vld [vmem:[%s139 + $0x8] sm:$0xf]
      %v151 = vld [vmem:[%s139 + $0xc] sm:$0xf]
      %v152 = vld [vmem:[%s139 + $0x10] sm:$0xf]
      %v153 = vld [vmem:[%s139 + $0x14] sm:$0xf]
      %v154 = vld [vmem:[%s139 + $0x18] sm:$0xf]
      %v155 = vld [vmem:[%s139 + $0x1c] sm:$0xf]
      %v156 = vld [vmem:[%s139 + $0x20] sm:$0xf]
      %v157 = vld [vmem:[%s139 + $0x24] sm:$0xf]
      %v158 = vld [vmem:[%s139 + $0x28] sm:$0xf]
      %v159 = vld [vmem:[%s139 + $0x2c] sm:$0xf]
      %v160 = vld [vmem:[%s139 + $0x30] sm:$0xf]
      %v161 = vld [vmem:[%s139 + $0x34] sm:$0xf]
      %v162 = vld [vmem:[%s139 + $0x38] sm:$0xf]
      %v163 = vld [vmem:[%s139 + $0x3c] sm:$0xf]
      %v164 = vld [vmem:[%s139 + $0x40] sm:$0xf]
      %v165 = vld [vmem:[%s139 + $0x44] sm:$0xf]
      %v166 = vld [vmem:[%s139 + $0x48] sm:$0xf]
      %v167 = vld [vmem:[%s139 + $0x4c] sm:$0xf]
      %v168 = vld [vmem:[%s139 + $0x50] sm:$0xf]
      %v169 = vld [vmem:[%s139 + $0x54] sm:$0xf]
      %v170 = vld [vmem:[%s139 + $0x58] sm:$0xf]
      %v171 = vld [vmem:[%s139 + $0x5c] sm:$0xf]
      %v172 = vld [vmem:[%s139 + $0x60] sm:$0xf]
      %v173 = vld [vmem:[%s139 + $0x64] sm:$0xf]
      %v174 = vld [vmem:[%s139 + $0x68] sm:$0xf]
      %v175 = vld [vmem:[%s139 + $0x6c] sm:$0xf]
      %v176 = vld [vmem:[%s139 + $0x70] sm:$0xf]
      %v177 = vld [vmem:[%s139 + $0x74] sm:$0xf]
      %v178 = vld [vmem:[%s139 + $0x78] sm:$0xf]
      %v179 = vld [vmem:[%s139 + $0x7c] sm:$0xf]
      %v180 = vld [vmem:[%s139 + $0x80] sm:$0xf]
      %v181 = vld [vmem:[%s139 + $0x84] sm:$0xf]
      %v182 = vld [vmem:[%s139 + $0x88] sm:$0xf]
      %v183 = vld [vmem:[%s139 + $0x8c] sm:$0xf]
      %v184 = vld [vmem:[%s139 + $0x90] sm:$0xf]
      %v185 = vld [vmem:[%s139 + $0x94] sm:$0xf]
      %v186 = vld [vmem:[%s139 + $0x98] sm:$0xf]
      %v187 = vld [vmem:[%s139 + $0x9c] sm:$0xf]
      %v188 = vld [vmem:[%s139 + $0xa0] sm:$0xf]
      %v189 = vld [vmem:[%s139 + $0xa4] sm:$0xf]
      %v190 = vld [vmem:[%s139 + $0xa8] sm:$0xf]
      %v191 = vld [vmem:[%s139 + $0xac] sm:$0xf]
      %v192 = vld [vmem:[%s139 + $0xb0] sm:$0xf]
      %v193 = vld [vmem:[%s139 + $0xb4] sm:$0xf]
      %v194 = vld [vmem:[%s139 + $0xb8] sm:$0xf]
      %v195 = vld [vmem:[%s139 + $0xbc] sm:$0xf]
      %v196 = vld [vmem:[%s139 + $0xc0] sm:$0xf]
      %v197 = vld [vmem:[%s139 + $0xc4] sm:$0xf]
      %v198 = vld [vmem:[%s139 + $0xc8] sm:$0xf]
      %v199 = vld [vmem:[%s139 + $0xcc] sm:$0xf]
      %v200 = vld [vmem:[%s139 + $0xd0] sm:$0xf]
      %v201 = vld [vmem:[%s139 + $0xd4] sm:$0xf]
      %v202 = vld [vmem:[%s139 + $0xd8] sm:$0xf]
      %v203 = vld [vmem:[%s139 + $0xdc] sm:$0xf]
      %v204 = vld [vmem:[%s139 + $0xe0] sm:$0xf]
      %v205 = vld [vmem:[%s139 + $0xe4] sm:$0xf]
      %v206 = vld [vmem:[%s139 + $0xe8] sm:$0xf]
      %v207 = vld [vmem:[%s139 + $0xec] sm:$0xf]
      %v208 = vld [vmem:[%s139 + $0xf0] sm:$0xf]
      %v209 = vld [vmem:[%s139 + $0xf4] sm:$0xf]
      %v210 = vld [vmem:[%s139 + $0xf8] sm:$0xf]
      %v211 = vld [vmem:[%s139 + $0xfc] sm:$0xf]
      %v212 = vld [vmem:[%s1] sm:$0xf]
      %v213 = vld [vmem:[%s1 + $0x4] sm:$0xf]
      %v214 = vld [vmem:[%s1 + $0x8] sm:$0xf]
      %v215 = vld [vmem:[%s1 + $0xc] sm:$0xf]
      %v216 = vld [vmem:[%s1 + $0x10] sm:$0xf]
      %v217 = vld [vmem:[%s1 + $0x14] sm:$0xf]
      %v218 = vld [vmem:[%s1 + $0x18] sm:$0xf]
      %v219 = vld [vmem:[%s1 + $0x1c] sm:$0xf]
      %v220 = vld [vmem:[%s1 + $0x20] sm:$0xf]
      %v285 = vunpack.c.l.b16 %v148
      %v286 = vunpack.c.l.b16 %v149
      %v287 = vunpack.c.l.b16 %v150
      %v288 = vunpack.c.l.b16 %v151
      %v289 = vunpack.c.l.b16 %v152
      %v290 = vunpack.c.l.b16 %v153
      %v291 = vunpack.c.l.b16 %v154
      %v292 = vunpack.c.l.b16 %v155
      %v293 = vunpack.c.l.b16 %v156
      %v294 = vunpack.c.l.b16 %v157
      %v295 = vunpack.c.l.b16 %v158
      %v296 = vunpack.c.l.b16 %v159
      %v297 = vunpack.c.l.b16 %v160
      %v298 = vunpack.c.l.b16 %v161
      %v299 = vunpack.c.l.b16 %v162
      %v300 = vunpack.c.l.b16 %v163
      %v301 = vunpack.c.l.b16 %v164
      %v302 = vunpack.c.l.b16 %v165
      %v303 = vunpack.c.l.b16 %v166
      %v304 = vunpack.c.l.b16 %v167
      %v305 = vunpack.c.l.b16 %v168
      %v306 = vunpack.c.l.b16 %v169
      %v307 = vunpack.c.l.b16 %v170
      %v308 = vunpack.c.l.b16 %v171
      %v309 = vunpack.c.l.b16 %v172
      %v310 = vunpack.c.l.b16 %v173
      %v311 = vunpack.c.l.b16 %v174
      %v312 = vunpack.c.l.b16 %v175
      %v313 = vunpack.c.l.b16 %v176
      %v314 = vunpack.c.l.b16 %v177
      %v315 = vunpack.c.l.b16 %v178
      %v316 = vunpack.c.l.b16 %v179
      %v317 = vunpack.c.l.b16 %v180
      %v318 = vunpack.c.l.b16 %v181
      %v319 = vunpack.c.l.b16 %v182
      %v320 = vunpack.c.l.b16 %v183
      %v321 = vunpack.c.l.b16 %v184
      %v322 = vunpack.c.l.b16 %v185
      %v323 = vunpack.c.l.b16 %v186
      %v324 = vunpack.c.l.b16 %v187
      %v325 = vunpack.c.l.b16 %v188
      %v326 = vunpack.c.l.b16 %v189
      %v327 = vunpack.c.l.b16 %v190
      %v328 = vunpack.c.l.b16 %v191
      %v329 = vunpack.c.l.b16 %v192
      %v330 = vunpack.c.l.b16 %v193
      %v331 = vunpack.c.l.b16 %v194
      %v332 = vunpack.c.l.b16 %v195
      %v333 = vunpack.c.l.b16 %v196
      %v334 = vunpack.c.l.b16 %v197
      %v335 = vunpack.c.l.b16 %v198
      %v336 = vunpack.c.l.b16 %v199
      %v337 = vunpack.c.l.b16 %v200
      %v338 = vunpack.c.l.b16 %v201
      %v339 = vunpack.c.l.b16 %v202
      %v340 = vunpack.c.l.b16 %v203
      %v341 = vunpack.c.l.b16 %v204
      %v342 = vunpack.c.l.b16 %v205
      %v343 = vunpack.c.l.b16 %v206
      %v344 = vunpack.c.l.b16 %v207
      %v345 = vunpack.c.l.b16 %v208
      %v346 = vunpack.c.l.b16 %v209
      %v347 = vunpack.c.l.b16 %v210
      %v348 = vunpack.c.l.b16 %v211
      %v349 = vpack.c.b16 %v286, %v285
      %v350 = vpack.c.b16 %v288, %v287
      %v351 = vpack.c.b16 %v290, %v289
      %v352 = vpack.c.b16 %v292, %v291
      %v353 = vpack.c.b16 %v294, %v293
      %v354 = vpack.c.b16 %v296, %v295
      %v355 = vpack.c.b16 %v298, %v297
      %v356 = vpack.c.b16 %v300, %v299
      %v357 = vpack.c.b16 %v302, %v301
      %v358 = vpack.c.b16 %v304, %v303
      %v359 = vpack.c.b16 %v306, %v305
      %v360 = vpack.c.b16 %v308, %v307
      %v361 = vpack.c.b16 %v310, %v309
      %v362 = vpack.c.b16 %v312, %v311
      %v363 = vpack.c.b16 %v314, %v313
      %v364 = vpack.c.b16 %v316, %v315
      %v365 = vpack.c.b16 %v318, %v317
      %v366 = vpack.c.b16 %v320, %v319
      %v367 = vpack.c.b16 %v322, %v321
      %v368 = vpack.c.b16 %v324, %v323
      %v369 = vpack.c.b16 %v326, %v325
      %v370 = vpack.c.b16 %v328, %v327
      %v371 = vpack.c.b16 %v330, %v329
      %v372 = vpack.c.b16 %v332, %v331
      %v373 = vpack.c.b16 %v334, %v333
      %v374 = vpack.c.b16 %v336, %v335
      %v375 = vpack.c.b16 %v338, %v337
      %v376 = vpack.c.b16 %v340, %v339
      %v377 = vpack.c.b16 %v342, %v341
      %v378 = vpack.c.b16 %v344, %v343
      %v379 = vpack.c.b16 %v346, %v345
      %v380 = vpack.c.b16 %v348, %v347
      %v390 = vunpack.c.l.b16 %v212
      %v391 = vunpack.c.l.b16 %v213
      %v392 = vunpack.c.l.b16 %v214
      %v393 = vunpack.c.l.b16 %v215
      %v394 = vunpack.c.l.b16 %v216
      %v395 = vunpack.c.l.b16 %v217
      %v396 = vunpack.c.l.b16 %v218
      %v397 = vunpack.c.l.b16 %v219
      %v398 = vunpack.c.l.b16 %v220
      %v399 = vpack.c.b16 %v391, %v390
      %v400 = vpack.c.b16 %v393, %v392
      %v401 = vpack.c.b16 %v395, %v394
      %v402 = vpack.c.b16 %v397, %v396
      %v403 = vpack.c.b16 %v398, %v398
      %vm408 = vcmask 588800
      %v410 = vsel %vm408, %v349, 0
      %v413 = vsel %vm408, %v350, 0
      %v416 = vsel %vm408, %v351, 0
      %v419 = vsel %vm408, %v352, 0
      %v422 = vsel %vm408, %v353, 0
      %v425 = vsel %vm408, %v354, 0
      %v428 = vsel %vm408, %v355, 0
      %v431 = vsel %vm408, %v356, 0
      %v434 = vsel %vm408, %v357, 0
      %v437 = vsel %vm408, %v358, 0
      %v440 = vsel %vm408, %v359, 0
      %v443 = vsel %vm408, %v360, 0
      %v446 = vsel %vm408, %v361, 0
      %v449 = vsel %vm408, %v362, 0
      %v452 = vsel %vm408, %v363, 0
      %v455 = vsel %vm408, %v364, 0
      %v458 = vsel %vm408, %v365, 0
      %v461 = vsel %vm408, %v366, 0
      %v464 = vsel %vm408, %v367, 0
      %v467 = vsel %vm408, %v368, 0
      %v470 = vsel %vm408, %v369, 0
      %v473 = vsel %vm408, %v370, 0
      %v476 = vsel %vm408, %v371, 0
      %v479 = vsel %vm408, %v372, 0
      %v482 = vsel %vm408, %v373, 0
      %v485 = vsel %vm408, %v374, 0
      %v488 = vsel %vm408, %v375, 0
      %v491 = vsel %vm408, %v376, 0
      %v494 = vsel %vm408, %v377, 0
      %v497 = vsel %vm408, %v378, 0
      %v500 = vsel %vm408, %v379, 0
      %v503 = vsel %vm408, %v380, 0
      %vm505 = vcmask 1043456
      %v507 = vsel %vm505, %v403, 0
      %509 = vmatprep.subr.bf16.mxu0 0
      %510 = vmatpush1.bf16.msra.mxu0 %v399
      %511 = vmatprep.subr.bf16.mxu0 0
      %512 = vmatpush1.bf16.msra.mxu0 %v400
      %513 = vmatprep.subr.bf16.mxu0 0
      %514 = vmatpush1.bf16.msra.mxu0 %v401
      %515 = vmatprep.subr.bf16.mxu0 0
      %516 = vmatpush1.bf16.msra.mxu0 %v402
      %517 = vmatprep.subr.bf16.mxu0 0
      %518 = vmatpush1.bf16.msra.mxu0 %v507
      %519 = vmatprep.subr.bf16.mxu0 0
      %520 = vmatpush1.bf16.msra.mxu0 0
      %521 = vmatprep.subr.bf16.mxu0 0
      %522 = vmatpush1.bf16.msra.mxu0 0
      %523 = vmatprep.subr.bf16.mxu0 0
      %524 = vmatpush1.bf16.msra.mxu0 0
      %525 = vmatprep.subr.bf16.mxu0 0
      %526 = vmatpush1.bf16.msra.mxu0 0
      %527 = vmatprep.subr.bf16.mxu0 0
      %528 = vmatpush1.bf16.msra.mxu0 0
      %529 = vmatprep.subr.bf16.mxu0 0
      %530 = vmatpush1.bf16.msra.mxu0 0
      %531 = vmatprep.subr.bf16.mxu0 0
      %532 = vmatpush1.bf16.msra.mxu0 0
      %533 = vmatprep.subr.bf16.mxu0 0
      %534 = vmatpush1.bf16.msra.mxu0 0
      %535 = vmatprep.subr.bf16.mxu0 0
      %536 = vmatpush1.bf16.msra.mxu0 0
      %537 = vmatprep.subr.bf16.mxu0 0
      %538 = vmatpush1.bf16.msra.mxu0 0
      %539 = vmatprep.subr.bf16.mxu0 0
      %540 = vmatpush1.bf16.msra.mxu0 0
      %541 = vmatprep.mubr.bf16.mxu0 0
      %542 = vmatmul.mubr.bf16.gmra.mrb[0].mxu0 %v410
      %v543 = vpop.f32.mrb[0].mxu0
      %v544 = vadd.f32 0.0, %v543
      %v545 = vpop.f32.mrb[0].mxu0
      %v546 = vpop.f32.mrb[0].mxu0
      %v547 = vadd.f32 0.0, %v546
      %v548 = vpop.f32.mrb[0].mxu0
      %549 = vmatprep.mubr.bf16.mxu0 0
      %550 = vmatmul.mubr.bf16.gmra.mrb[0].mxu0 %v413
      %v551 = vpop.f32.mrb[0].mxu0
      %v552 = vadd.f32 0.0, %v551
      %v553 = vpop.f32.mrb[0].mxu0
      %v554 = vpop.f32.mrb[0].mxu0
      %v555 = vadd.f32 0.0, %v554
      %v556 = vpop.f32.mrb[0].mxu0
      %557 = vmatprep.mubr.bf16.mxu0 0
      %558 = vmatmul.mubr.bf16.gmra.mrb[0].mxu0 %v416
      %v559 = vpop.f32.mrb[0].mxu0
      %v560 = vadd.f32 0.0, %v559
      %v561 = vpop.f32.mrb[0].mxu0
      %v562 = vpop.f32.mrb[0].mxu0
      %v563 = vadd.f32 0.0, %v562
      %v564 = vpop.f32.mrb[0].mxu0
      %565 = vmatprep.mubr.bf16.mxu0 0
      %566 = vmatmul.mubr.bf16.gmra.mrb[0].mxu0 %v419
      %v567 = vpop.f32.mrb[0].mxu0
      %v568 = vadd.f32 0.0, %v567
      %v569 = vpop.f32.mrb[0].mxu0
      %v570 = vpop.f32.mrb[0].mxu0
      %v571 = vadd.f32 0.0, %v570
      %v572 = vpop.f32.mrb[0].mxu0
      %573 = vmatprep.mubr.bf16.mxu0 0
      %574 = vmatmul.mubr.bf16.gmra.mrb[0].mxu0 %v422
      %v575 = vpop.f32.mrb[0].mxu0
      %v576 = vadd.f32 0.0, %v575
      %v577 = vpop.f32.mrb[0].mxu0
      %v578 = vpop.f32.mrb[0].mxu0
      %v579 = vadd.f32 0.0, %v578
      %v580 = vpop.f32.mrb[0].mxu0
      %581 = vmatprep.mubr.bf16.mxu0 0
      %582 = vmatmul.mubr.bf16.gmra.mrb[0].mxu0 %v425
      %v583 = vpop.f32.mrb[0].mxu0
      %v584 = vadd.f32 0.0, %v583
      %v585 = vpop.f32.mrb[0].mxu0
      %v586 = vpop.f32.mrb[0].mxu0
      %v587 = vadd.f32 0.0, %v586
      %v588 = vpop.f32.mrb[0].mxu0
      %589 = vmatprep.mubr.bf16.mxu0 0
      %590 = vmatmul.mubr.bf16.gmra.mrb[0].mxu0 %v428
      %v591 = vpop.f32.mrb[0].mxu0
      %v592 = vadd.f32 0.0, %v591
      %v593 = vpop.f32.mrb[0].mxu0
      %v594 = vpop.f32.mrb[0].mxu0
      %v595 = vadd.f32 0.0, %v594
      %v596 = vpop.f32.mrb[0].mxu0
      %597 = vmatprep.mubr.bf16.mxu0 0
      %598 = vmatmul.mubr.bf16.gmra.mrb[0].mxu0 %v431
      %v599 = vpop.f32.mrb[0].mxu0
      %v600 = vadd.f32 0.0, %v599
      %v601 = vpop.f32.mrb[0].mxu0
      %v602 = vpop.f32.mrb[0].mxu0
      %v603 = vadd.f32 0.0, %v602
      %v604 = vpop.f32.mrb[0].mxu0
      %605 = vmatprep.mubr.bf16.mxu0 0
      %606 = vmatmul.mubr.bf16.gmra.mrb[0].mxu0 %v434
      %v607 = vpop.f32.mrb[0].mxu0
      %v608 = vadd.f32 0.0, %v607
      %v609 = vpop.f32.mrb[0].mxu0
      %v610 = vpop.f32.mrb[0].mxu0
      %v611 = vadd.f32 0.0, %v610
      %v612 = vpop.f32.mrb[0].mxu0
      %613 = vmatprep.mubr.bf16.mxu0 0
      %614 = vmatmul.mubr.bf16.gmra.mrb[0].mxu0 %v437
      %v615 = vpop.f32.mrb[0].mxu0
      %v616 = vadd.f32 0.0, %v615
      %v617 = vpop.f32.mrb[0].mxu0
      %v618 = vpop.f32.mrb[0].mxu0
      %v619 = vadd.f32 0.0, %v618
      %v620 = vpop.f32.mrb[0].mxu0
      %621 = vmatprep.mubr.bf16.mxu0 0
      %622 = vmatmul.mubr.bf16.gmra.mrb[0].mxu0 %v440
      %v623 = vpop.f32.mrb[0].mxu0
      %v624 = vadd.f32 0.0, %v623
      %v625 = vpop.f32.mrb[0].mxu0
      %v626 = vpop.f32.mrb[0].mxu0
      %v627 = vadd.f32 0.0, %v626
      %v628 = vpop.f32.mrb[0].mxu0
      %629 = vmatprep.mubr.bf16.mxu0 0
      %630 = vmatmul.mubr.bf16.gmra.mrb[0].mxu0 %v443
      %v631 = vpop.f32.mrb[0].mxu0
      %v632 = vadd.f32 0.0, %v631
      %v633 = vpop.f32.mrb[0].mxu0
      %v634 = vpop.f32.mrb[0].mxu0
      %v635 = vadd.f32 0.0, %v634
      %v636 = vpop.f32.mrb[0].mxu0
      %637 = vmatprep.mubr.bf16.mxu0 0
      %638 = vmatmul.mubr.bf16.gmra.mrb[0].mxu0 %v446
      %v639 = vpop.f32.mrb[0].mxu0
      %v640 = vadd.f32 0.0, %v639
      %v641 = vpop.f32.mrb[0].mxu0
      %v642 = vpop.f32.mrb[0].mxu0
      %v643 = vadd.f32 0.0, %v642
      %v644 = vpop.f32.mrb[0].mxu0
      %645 = vmatprep.mubr.bf16.mxu0 0
      %646 = vmatmul.mubr.bf16.gmra.mrb[0].mxu0 %v449
      %v647 = vpop.f32.mrb[0].mxu0
      %v648 = vadd.f32 0.0, %v647
      %v649 = vpop.f32.mrb[0].mxu0
      %v650 = vpop.f32.mrb[0].mxu0
      %v651 = vadd.f32 0.0, %v650
      %v652 = vpop.f32.mrb[0].mxu0
      %653 = vmatprep.mubr.bf16.mxu0 0
      %654 = vmatmul.mubr.bf16.gmra.mrb[0].mxu0 %v452
      %v655 = vpop.f32.mrb[0].mxu0
      %v656 = vadd.f32 0.0, %v655
      %v657 = vpop.f32.mrb[0].mxu0
      %v658 = vpop.f32.mrb[0].mxu0
      %v659 = vadd.f32 0.0, %v658
      %v660 = vpop.f32.mrb[0].mxu0
      %661 = vmatprep.mubr.bf16.mxu0 0
      %662 = vmatmul.mubr.bf16.gmra.mrb[0].mxu0 %v455
      %v663 = vpop.f32.mrb[0].mxu0
      %v664 = vadd.f32 0.0, %v663
      %v665 = vpop.f32.mrb[0].mxu0
      %v666 = vpop.f32.mrb[0].mxu0
      %v667 = vadd.f32 0.0, %v666
      %v668 = vpop.f32.mrb[0].mxu0
      %669 = vmatprep.mubr.bf16.mxu0 0
      %670 = vmatmul.mubr.bf16.gmra.mrb[0].mxu0 %v458
      %v671 = vpop.f32.mrb[0].mxu0
      %v672 = vadd.f32 0.0, %v671
      %v673 = vpop.f32.mrb[0].mxu0
      %v674 = vpop.f32.mrb[0].mxu0
      %v675 = vadd.f32 0.0, %v674
      %v676 = vpop.f32.mrb[0].mxu0
      %677 = vmatprep.mubr.bf16.mxu0 0
      %678 = vmatmul.mubr.bf16.gmra.mrb[0].mxu0 %v461
      %v679 = vpop.f32.mrb[0].mxu0
      %v680 = vadd.f32 0.0, %v679
      %v681 = vpop.f32.mrb[0].mxu0
      %v682 = vpop.f32.mrb[0].mxu0
      %v683 = vadd.f32 0.0, %v682
      %v684 = vpop.f32.mrb[0].mxu0
      %685 = vmatprep.mubr.bf16.mxu0 0
      %686 = vmatmul.mubr.bf16.gmra.mrb[0].mxu0 %v464
      %v687 = vpop.f32.mrb[0].mxu0
      %v688 = vadd.f32 0.0, %v687
      %v689 = vpop.f32.mrb[0].mxu0
      %v690 = vpop.f32.mrb[0].mxu0
      %v691 = vadd.f32 0.0, %v690
      %v692 = vpop.f32.mrb[0].mxu0
      %693 = vmatprep.mubr.bf16.mxu0 0
      %694 = vmatmul.mubr.bf16.gmra.mrb[0].mxu0 %v467
      %v695 = vpop.f32.mrb[0].mxu0
      %v696 = vadd.f32 0.0, %v695
      %v697 = vpop.f32.mrb[0].mxu0
      %v698 = vpop.f32.mrb[0].mxu0
      %v699 = vadd.f32 0.0, %v698
      %v700 = vpop.f32.mrb[0].mxu0
      %701 = vmatprep.mubr.bf16.mxu0 0
      %702 = vmatmul.mubr.bf16.gmra.mrb[0].mxu0 %v470
      %v703 = vpop.f32.mrb[0].mxu0
      %v704 = vadd.f32 0.0, %v703
      %v705 = vpop.f32.mrb[0].mxu0
      %v706 = vpop.f32.mrb[0].mxu0
      %v707 = vadd.f32 0.0, %v706
      %v708 = vpop.f32.mrb[0].mxu0
      %709 = vmatprep.mubr.bf16.mxu0 0
      %710 = vmatmul.mubr.bf16.gmra.mrb[0].mxu0 %v473
      %v711 = vpop.f32.mrb[0].mxu0
      %v712 = vadd.f32 0.0, %v711
      %v713 = vpop.f32.mrb[0].mxu0
      %v714 = vpop.f32.mrb[0].mxu0
      %v715 = vadd.f32 0.0, %v714
      %v716 = vpop.f32.mrb[0].mxu0
      %717 = vmatprep.mubr.bf16.mxu0 0
      %718 = vmatmul.mubr.bf16.gmra.mrb[0].mxu0 %v476
      %v719 = vpop.f32.mrb[0].mxu0
      %v720 = vadd.f32 0.0, %v719
      %v721 = vpop.f32.mrb[0].mxu0
      %v722 = vpop.f32.mrb[0].mxu0
      %v723 = vadd.f32 0.0, %v722
      %v724 = vpop.f32.mrb[0].mxu0
      %725 = vmatprep.mubr.bf16.mxu0 0
      %726 = vmatmul.mubr.bf16.gmra.mrb[0].mxu0 %v479
      %v727 = vpop.f32.mrb[0].mxu0
      %v728 = vadd.f32 0.0, %v727
      %v729 = vpop.f32.mrb[0].mxu0
      %v730 = vpop.f32.mrb[0].mxu0
      %v731 = vadd.f32 0.0, %v730
      %v732 = vpop.f32.mrb[0].mxu0
      %733 = vmatprep.mubr.bf16.mxu0 0
      %734 = vmatmul.mubr.bf16.gmra.mrb[0].mxu0 %v482
      %v735 = vpop.f32.mrb[0].mxu0
      %v736 = vadd.f32 0.0, %v735
      %v737 = vpop.f32.mrb[0].mxu0
      %v738 = vpop.f32.mrb[0].mxu0
      %v739 = vadd.f32 0.0, %v738
      %v740 = vpop.f32.mrb[0].mxu0
      %741 = vmatprep.mubr.bf16.mxu0 0
      %742 = vmatmul.mubr.bf16.gmra.mrb[0].mxu0 %v485
      %v743 = vpop.f32.mrb[0].mxu0
      %v744 = vadd.f32 0.0, %v743
      %v745 = vpop.f32.mrb[0].mxu0
      %v746 = vpop.f32.mrb[0].mxu0
      %v747 = vadd.f32 0.0, %v746
      %v748 = vpop.f32.mrb[0].mxu0
      %749 = vmatprep.mubr.bf16.mxu0 0
      %750 = vmatmul.mubr.bf16.gmra.mrb[0].mxu0 %v488
      %v751 = vpop.f32.mrb[0].mxu0
      %v752 = vadd.f32 0.0, %v751
      %v753 = vpop.f32.mrb[0].mxu0
      %v754 = vpop.f32.mrb[0].mxu0
      %v755 = vadd.f32 0.0, %v754
      %v756 = vpop.f32.mrb[0].mxu0
      %757 = vmatprep.mubr.bf16.mxu0 0
      %758 = vmatmul.mubr.bf16.gmra.mrb[0].mxu0 %v491
      %v759 = vpop.f32.mrb[0].mxu0
      %v760 = vadd.f32 0.0, %v759
      %v761 = vpop.f32.mrb[0].mxu0
      %v762 = vpop.f32.mrb[0].mxu0
      %v763 = vadd.f32 0.0, %v762
      %v764 = vpop.f32.mrb[0].mxu0
      %765 = vmatprep.mubr.bf16.mxu0 0
      %766 = vmatmul.mubr.bf16.gmra.mrb[0].mxu0 %v494
      %v767 = vpop.f32.mrb[0].mxu0
      %v768 = vadd.f32 0.0, %v767
      %v769 = vpop.f32.mrb[0].mxu0
      %v770 = vpop.f32.mrb[0].mxu0
      %v771 = vadd.f32 0.0, %v770
      %v772 = vpop.f32.mrb[0].mxu0
      %773 = vmatprep.mubr.bf16.mxu0 0
      %774 = vmatmul.mubr.bf16.gmra.mrb[0].mxu0 %v497
      %v775 = vpop.f32.mrb[0].mxu0
      %v776 = vadd.f32 0.0, %v775
      %v777 = vpop.f32.mrb[0].mxu0
      %v778 = vpop.f32.mrb[0].mxu0
      %v779 = vadd.f32 0.0, %v778
      %v780 = vpop.f32.mrb[0].mxu0
      %781 = vmatprep.mubr.bf16.mxu0 0
      %782 = vmatmul.mubr.bf16.gmra.mrb[0].mxu0 %v500
      %v783 = vpop.f32.mrb[0].mxu0
      %v784 = vadd.f32 0.0, %v783
      %v785 = vpop.f32.mrb[0].mxu0
      %v786 = vpop.f32.mrb[0].mxu0
      %v787 = vadd.f32 0.0, %v786
      %v788 = vpop.f32.mrb[0].mxu0
      %789 = vmatprep.mubr.bf16.mxu0 0
      %790 = vmatmul.mubr.bf16.gmra.mrb[0].mxu0 %v503
      %v791 = vpop.f32.mrb[0].mxu0
      %v792 = vadd.f32 0.0, %v791
      %v793 = vpop.f32.mrb[0].mxu0
      %v794 = vpop.f32.mrb[0].mxu0
      %v795 = vadd.f32 0.0, %v794
      %v796 = vpop.f32.mrb[0].mxu0
      %797 = vdwg.mxu0
      %vm798 = vcmask 64512
      %799 = vst.msk [vmem:[%s145] sm:$0xff] %vm798, %v544
      %800 = vst.msk [vmem:[%s145 + $0x8] sm:$0xff] %vm798, %v547
      %801 = vst.msk [vmem:[%s145 + $0x10] sm:$0xff] %vm798, %v552
      %802 = vst.msk [vmem:[%s145 + $0x18] sm:$0xff] %vm798, %v555
      %803 = vst.msk [vmem:[%s145 + $0x20] sm:$0xff] %vm798, %v560
      %804 = vst.msk [vmem:[%s145 + $0x28] sm:$0xff] %vm798, %v563
      %805 = vst.msk [vmem:[%s145 + $0x30] sm:$0xff] %vm798, %v568
      %806 = vst.msk [vmem:[%s145 + $0x38] sm:$0xff] %vm798, %v571
      %807 = vst.msk [vmem:[%s145 + $0x40] sm:$0xff] %vm798, %v576
      %808 = vst.msk [vmem:[%s145 + $0x48] sm:$0xff] %vm798, %v579
      %809 = vst.msk [vmem:[%s145 + $0x50] sm:$0xff] %vm798, %v584
      %810 = vst.msk [vmem:[%s145 + $0x58] sm:$0xff] %vm798, %v587
      %811 = vst.msk [vmem:[%s145 + $0x60] sm:$0xff] %vm798, %v592
      %812 = vst.msk [vmem:[%s145 + $0x68] sm:$0xff] %vm798, %v595
      %813 = vst.msk [vmem:[%s145 + $0x70] sm:$0xff] %vm798, %v600
      %814 = vst.msk [vmem:[%s145 + $0x78] sm:$0xff] %vm798, %v603
      %815 = vst.msk [vmem:[%s145 + $0x80] sm:$0xff] %vm798, %v608
      %816 = vst.msk [vmem:[%s145 + $0x88] sm:$0xff] %vm798, %v611
      %817 = vst.msk [vmem:[%s145 + $0x90] sm:$0xff] %vm798, %v616
      %818 = vst.msk [vmem:[%s145 + $0x98] sm:$0xff] %vm798, %v619
      %819 = vst.msk [vmem:[%s145 + $0xa0] sm:$0xff] %vm798, %v624
      %820 = vst.msk [vmem:[%s145 + $0xa8] sm:$0xff] %vm798, %v627
      %821 = vst.msk [vmem:[%s145 + $0xb0] sm:$0xff] %vm798, %v632
      %822 = vst.msk [vmem:[%s145 + $0xb8] sm:$0xff] %vm798, %v635
      %823 = vst.msk [vmem:[%s145 + $0xc0] sm:$0xff] %vm798, %v640
      %824 = vst.msk [vmem:[%s145 + $0xc8] sm:$0xff] %vm798, %v643
      %825 = vst.msk [vmem:[%s145 + $0xd0] sm:$0xff] %vm798, %v648
      %826 = vst.msk [vmem:[%s145 + $0xd8] sm:$0xff] %vm798, %v651
      %827 = vst.msk [vmem:[%s145 + $0xe0] sm:$0xff] %vm798, %v656
      %828 = vst.msk [vmem:[%s145 + $0xe8] sm:$0xff] %vm798, %v659
      %829 = vst.msk [vmem:[%s145 + $0xf0] sm:$0xff] %vm798, %v664
      %830 = vst.msk [vmem:[%s145 + $0xf8] sm:$0xff] %vm798, %v667
      %831 = vst.msk [vmem:[%s145 + $0x100] sm:$0xff] %vm798, %v672
      %832 = vst.msk [vmem:[%s145 + $0x108] sm:$0xff] %vm798, %v675
      %833 = vst.msk [vmem:[%s145 + $0x110] sm:$0xff] %vm798, %v680
      %834 = vst.msk [vmem:[%s145 + $0x118] sm:$0xff] %vm798, %v683
      %835 = vst.msk [vmem:[%s145 + $0x120] sm:$0xff] %vm798, %v688
      %836 = vst.msk [vmem:[%s145 + $0x128] sm:$0xff] %vm798, %v691
      %837 = vst.msk [vmem:[%s145 + $0x130] sm:$0xff] %vm798, %v696
      %838 = vst.msk [vmem:[%s145 + $0x138] sm:$0xff] %vm798, %v699
      %839 = vst.msk [vmem:[%s145 + $0x140] sm:$0xff] %vm798, %v704
      %840 = vst.msk [vmem:[%s145 + $0x148] sm:$0xff] %vm798, %v707
      %841 = vst.msk [vmem:[%s145 + $0x150] sm:$0xff] %vm798, %v712
      %842 = vst.msk [vmem:[%s145 + $0x158] sm:$0xff] %vm798, %v715
      %843 = vst.msk [vmem:[%s145 + $0x160] sm:$0xff] %vm798, %v720
      %844 = vst.msk [vmem:[%s145 + $0x168] sm:$0xff] %vm798, %v723
      %845 = vst.msk [vmem:[%s145 + $0x170] sm:$0xff] %vm798, %v728
      %846 = vst.msk [vmem:[%s145 + $0x178] sm:$0xff] %vm798, %v731
      %847 = vst.msk [vmem:[%s145 + $0x180] sm:$0xff] %vm798, %v736
      %848 = vst.msk [vmem:[%s145 + $0x188] sm:$0xff] %vm798, %v739
      %849 = vst.msk [vmem:[%s145 + $0x190] sm:$0xff] %vm798, %v744
      %850 = vst.msk [vmem:[%s145 + $0x198] sm:$0xff] %vm798, %v747
      %851 = vst.msk [vmem:[%s145 + $0x1a0] sm:$0xff] %vm798, %v752
      %852 = vst.msk [vmem:[%s145 + $0x1a8] sm:$0xff] %vm798, %v755
      %853 = vst.msk [vmem:[%s145 + $0x1b0] sm:$0xff] %vm798, %v760
      %854 = vst.msk [vmem:[%s145 + $0x1b8] sm:$0xff] %vm798, %v763
      %855 = vst.msk [vmem:[%s145 + $0x1c0] sm:$0xff] %vm798, %v768
      %856 = vst.msk [vmem:[%s145 + $0x1c8] sm:$0xff] %vm798, %v771
      %857 = vst.msk [vmem:[%s145 + $0x1d0] sm:$0xff] %vm798, %v776
      %858 = vst.msk [vmem:[%s145 + $0x1d8] sm:$0xff] %vm798, %v779
      %859 = vst.msk [vmem:[%s145 + $0x1e0] sm:$0xff] %vm798, %v784
      %860 = vst.msk [vmem:[%s145 + $0x1e8] sm:$0xff] %vm798, %v787
      %861 = vst.msk [vmem:[%s145 + $0x1f0] sm:$0xff] %vm798, %v792
      %862 = vst.msk [vmem:[%s145 + $0x1f8] sm:$0xff] %vm798, %v795
      %s863 = smul.u32 64, %s13
      %p864 = scmp.lt.s32.totalorder %s863, 255
      %s865 = scalar_select %p864, %s863, 255
      %s866 = smul.addr %s865, 8
      %s867 = scalar_lea.vmem %s2, %s866
      // Predicated region
      $region29: #{up_transition_forward.13} parent=27 // pred_check
        %p868 = pneg %p78
      $region30: #{up_transition_forward.13} parent=27 // pred_check_branch
        %870 = sbr.rel (%p868) target = $region32
      $region31: #{up_transition_forward.13} parent=27 // pred_region
        %s871 = smul.u32 64, %s13
      $region32: #{up_transition_forward.13} parent=27 // pred_fallthru
        _
    $region28: #{up_transition_forward.13} parent=5 // pred_fallthru
      _
    %p872 = scmp.le.s32.totalorder 2, %s8
    // Predicated region
    $region33: #{up_transition_forward.13} parent=5 // pred_check
      %p873 = pneg %p872
    $region34: #{up_transition_forward.13} parent=5 // pred_check_branch
      %875 = sbr.rel (%p873) target = $region36
    $region35: #{up_transition_forward.13} parent=5 // pred_region
      %s876 = ssub.s32 %s8, 2
      // Predicated region
      $region37: #{up_transition_forward.13} parent=35 // pred_check
        %p877 = pneg %p84
      $region38: #{up_transition_forward.13} parent=35 // pred_check_branch
        %879 = sbr.rel (%p877) target = $region40
      $region39: #{up_transition_forward.13} parent=35 // pred_region
        %s880 = smul.u32 64, %s14
        %p881 = scmp.lt.s32.totalorder %s880, 255
        %s882 = scalar_select %p881, %s880, 255
        %s883 = smul.addr %s882, 8
        %s884 = scalar_lea.vmem %s2, %s883
      $region40: #{up_transition_forward.13} parent=35 // pred_fallthru
        _
    $region36: #{up_transition_forward.13} parent=5 // pred_fallthru
      _
  $region6: #{up_transition_forward.13} parent=0 // loop_footer
    %s12 = sadd.s32 1, %s8
  $region7: #{up_transition_forward.13} parent=0 // loop_footer_branch
    %7 = sbr.rel target = $region3
  $region8: #{up_transition_forward.13} parent=0 // loop_exit
    _

// kernel: up_transition_forward.18
$region0: #{up_transition_forward.18}
  #allocation0 [shape = 'u32[]', space=smem, size = 0x4, offset = 0x4, fixed_abs, tag = 'smem constant byte address 0x4 - core index']
  #allocation1 [shape = 'u32[144,128]{1,0:T(1,128)}', space=vmem, size = 0x12000, scoped, tag = 'internal scratch']
  %s0 = inlined_call_operand.vmem [shape: f32[128,128], index: 0, kind: input, shape index: {}]
  %s1 = inlined_call_operand.vmem [shape: f32[128,128], index: 1, kind: input, shape index: {}]
  %s2 = inlined_call_operand.vmem [shape: f32[1,128], index: 2, kind: input, shape index: {}]
  %s3 = inlined_call_operand.vmem [shape: f32[1,128], index: 3, kind: input, shape index: {}]
  %s4 = inlined_call_operand.vmem [shape: f32[128,128], index: 4, kind: output, shape index: {}]
  %s5 = sld [smem:[#allocation0]]
  $region26: #{up_transition_forward.18} parent=0
    _
  %s7 = ssub.s32 1, %s5
  %s8 = scalar_select 0, %s7, %s5
  // Predicated region
  $region2: #{up_transition_forward.18} parent=0 // pred_check
    _
  $region3: #{up_transition_forward.18} parent=0 // pred_check_branch
    %10 = sbr.rel (0) target = $region5
  $region4: #{up_transition_forward.18} parent=0 // pred_region
    _
  $region5: #{up_transition_forward.18} parent=0 // pred_fallthru
    _
  // Predicated region
  $region6: #{up_transition_forward.18} parent=0 // pred_check
    _
  $region7: #{up_transition_forward.18} parent=0 // pred_check_branch
    %12 = sbr.rel (0) target = $region9
  $region8: #{up_transition_forward.18} parent=0 // pred_region
    _
  $region9: #{up_transition_forward.18} parent=0 // pred_fallthru
    _
  // Predicated region
  $region10: #{up_transition_forward.18} parent=0 // pred_check
    _
  $region11: #{up_transition_forward.18} parent=0 // pred_check_branch
    %14 = sbr.rel (0) target = $region13
  $region12: #{up_transition_forward.18} parent=0 // pred_region
    _
  $region13: #{up_transition_forward.18} parent=0 // pred_fallthru
    _
  // Predicated region
  $region14: #{up_transition_forward.18} parent=0 // pred_check
    _
  $region15: #{up_transition_forward.18} parent=0 // pred_check_branch
    %16 = sbr.rel (0) target = $region17
  $region16: #{up_transition_forward.18} parent=0 // pred_region
    _
  $region17: #{up_transition_forward.18} parent=0 // pred_fallthru
    _
  %v17 = vld [vmem:[%s1] sm:$0xff]
  %v18 = vld [vmem:[%s1 + $0x8] sm:$0xff]
  %v19 = vld [vmem:[%s1 + $0x10] sm:$0xff]
  %v20 = vld [vmem:[%s1 + $0x18] sm:$0xff]
  %v21 = vld [vmem:[%s1 + $0x20] sm:$0xff]
  %v22 = vld [vmem:[%s1 + $0x28] sm:$0xff]
  %v23 = vld [vmem:[%s1 + $0x30] sm:$0xff]
  %v24 = vld [vmem:[%s1 + $0x38] sm:$0xff]
  %v25 = vld [vmem:[%s1 + $0x40] sm:$0xff]
  %v26 = vld [vmem:[%s1 + $0x48] sm:$0xff]
  %v27 = vld [vmem:[%s1 + $0x50] sm:$0xff]
  %v28 = vld [vmem:[%s1 + $0x58] sm:$0xff]
  %v29 = vld [vmem:[%s1 + $0x60] sm:$0xff]
  %v30 = vld [vmem:[%s1 + $0x68] sm:$0xff]
  %v31 = vld [vmem:[%s1 + $0x70] sm:$0xff]
  %v32 = vld [vmem:[%s1 + $0x78] sm:$0xff]
  %v33 = vld [vmem:[%s0] sm:$0xff]
  %v34 = vld [vmem:[%s0 + $0x8] sm:$0xff]
  %v35 = vld [vmem:[%s0 + $0x10] sm:$0xff]
  %v36 = vld [vmem:[%s0 + $0x18] sm:$0xff]
  %v37 = vld [vmem:[%s0 + $0x20] sm:$0xff]
  %v38 = vld [vmem:[%s0 + $0x28] sm:$0xff]
  %v39 = vld [vmem:[%s0 + $0x30] sm:$0xff]
  %v40 = vld [vmem:[%s0 + $0x38] sm:$0xff]
  %v41 = vld [vmem:[%s0 + $0x40] sm:$0xff]
  %v42 = vld [vmem:[%s0 + $0x48] sm:$0xff]
  %v43 = vld [vmem:[%s0 + $0x50] sm:$0xff]
  %v44 = vld [vmem:[%s0 + $0x58] sm:$0xff]
  %v45 = vld [vmem:[%s0 + $0x60] sm:$0xff]
  %v46 = vld [vmem:[%s0 + $0x68] sm:$0xff]
  %v47 = vld [vmem:[%s0 + $0x70] sm:$0xff]
  %v48 = vld [vmem:[%s0 + $0x78] sm:$0xff]
  %v49 = vld [vmem:[%s2] sm:$0x1]
  %v51 = vlaneseq
  %v52 = vshrl.u32 %v51, 7
  %v53 = vsub.s32 0, %v52
  %v54 = vrot.slane %v49, %v53
  %v56 = vmul.f32 %v33, %v54
  %v57 = vmul.f32 %v34, %v54
  %v58 = vmul.f32 %v35, %v54
  %v59 = vmul.f32 %v36, %v54
  %v60 = vmul.f32 %v37, %v54
  %v61 = vmul.f32 %v38, %v54
  %v62 = vmul.f32 %v39, %v54
  %v63 = vmul.f32 %v40, %v54
  %v64 = vmul.f32 %v41, %v54
  %v65 = vmul.f32 %v42, %v54
  %v66 = vmul.f32 %v43, %v54
  %v67 = vmul.f32 %v44, %v54
  %v68 = vmul.f32 %v45, %v54
  %v69 = vmul.f32 %v46, %v54
  %v70 = vmul.f32 %v47, %v54
  %v71 = vmul.f32 %v48, %v54
  %v72 = vadd.f32 %v17, %v56
  %v73 = vadd.f32 %v18, %v57
  %v74 = vadd.f32 %v19, %v58
  %v75 = vadd.f32 %v20, %v59
  %v76 = vadd.f32 %v21, %v60
  %v77 = vadd.f32 %v22, %v61
  %v78 = vadd.f32 %v23, %v62
  %v79 = vadd.f32 %v24, %v63
  %v80 = vadd.f32 %v25, %v64
  %v81 = vadd.f32 %v26, %v65
  %v82 = vadd.f32 %v27, %v66
  %v83 = vadd.f32 %v28, %v67
  %v84 = vadd.f32 %v29, %v68
  %v85 = vadd.f32 %v30, %v69
  %v86 = vadd.f32 %v31, %v70
  %v87 = vadd.f32 %v32, %v71
  %v88 = vld [vmem:[%s3] sm:$0x1]
  %v90 = vlaneseq
  %v91 = vshrl.u32 %v90, 7
  %v92 = vsub.s32 0, %v91
  %v93 = vrot.slane %v88, %v92
  %v95 = vadd.f32 %v72, %v93
  %v96 = vadd.f32 %v73, %v93
  %v97 = vadd.f32 %v74, %v93
  %v98 = vadd.f32 %v75, %v93
  %v99 = vadd.f32 %v76, %v93
  %v100 = vadd.f32 %v77, %v93
  %v101 = vadd.f32 %v78, %v93
  %v102 = vadd.f32 %v79, %v93
  %v103 = vadd.f32 %v80, %v93
  %v104 = vadd.f32 %v81, %v93
  %v105 = vadd.f32 %v82, %v93
  %v106 = vadd.f32 %v83, %v93
  %v107 = vadd.f32 %v84, %v93
  %v108 = vadd.f32 %v85, %v93
  %v109 = vadd.f32 %v86, %v93
  %v110 = vadd.f32 %v87, %v93
  %vm111 = vcmp.gt.f32.partialorder %v95, 0.0
  %vm112 = vcmp.gt.f32.partialorder %v96, 0.0
  %vm113 = vcmp.gt.f32.partialorder %v97, 0.0
  %vm114 = vcmp.gt.f32.partialorder %v98, 0.0
  %vm115 = vcmp.gt.f32.partialorder %v99, 0.0
  %vm116 = vcmp.gt.f32.partialorder %v100, 0.0
  %vm117 = vcmp.gt.f32.partialorder %v101, 0.0
  %vm118 = vcmp.gt.f32.partialorder %v102, 0.0
  %vm119 = vcmp.gt.f32.partialorder %v103, 0.0
  %vm120 = vcmp.gt.f32.partialorder %v104, 0.0
  %vm121 = vcmp.gt.f32.partialorder %v105, 0.0
  %vm122 = vcmp.gt.f32.partialorder %v106, 0.0
  %vm123 = vcmp.gt.f32.partialorder %v107, 0.0
  %vm124 = vcmp.gt.f32.partialorder %v108, 0.0
  %vm125 = vcmp.gt.f32.partialorder %v109, 0.0
  %vm126 = vcmp.gt.f32.partialorder %v110, 0.0
  %v127 = vmin.f32 %v95, 0.0
  %v128 = vmin.f32 %v96, 0.0
  %v129 = vmin.f32 %v97, 0.0
  %v130 = vmin.f32 %v98, 0.0
  %v131 = vmin.f32 %v99, 0.0
  %v132 = vmin.f32 %v100, 0.0
  %v133 = vmin.f32 %v101, 0.0
  %v134 = vmin.f32 %v102, 0.0
  %v135 = vmin.f32 %v103, 0.0
  %v136 = vmin.f32 %v104, 0.0
  %v137 = vmin.f32 %v105, 0.0
  %v138 = vmin.f32 %v106, 0.0
  %v139 = vmin.f32 %v107, 0.0
  %v140 = vmin.f32 %v108, 0.0
  %v141 = vmin.f32 %v109, 0.0
  %v142 = vmin.f32 %v110, 0.0
  %v143 = vmul.f32 %v127, 1.442695
  %v144 = vpow.pop %v143
  %v145 = vmul.f32 %v128, 1.442695
  %v146 = vpow.pop %v145
  %v147 = vmul.f32 %v129, 1.442695
  %v148 = vpow.pop %v147
  %v149 = vmul.f32 %v130, 1.442695
  %v150 = vpow.pop %v149
  %v151 = vmul.f32 %v131, 1.442695
  %v152 = vpow.pop %v151
  %v153 = vmul.f32 %v132, 1.442695
  %v154 = vpow.pop %v153
  %v155 = vmul.f32 %v133, 1.442695
  %v156 = vpow.pop %v155
  %v157 = vmul.f32 %v134, 1.442695
  %v158 = vpow.pop %v157
  %v159 = vmul.f32 %v135, 1.442695
  %v160 = vpow.pop %v159
  %v161 = vmul.f32 %v136, 1.442695
  %v162 = vpow.pop %v161
  %v163 = vmul.f32 %v137, 1.442695
  %v164 = vpow.pop %v163
  %v165 = vmul.f32 %v138, 1.442695
  %v166 = vpow.pop %v165
  %v167 = vmul.f32 %v139, 1.442695
  %v168 = vpow.pop %v167
  %v169 = vmul.f32 %v140, 1.442695
  %v170 = vpow.pop %v169
  %v171 = vmul.f32 %v141, 1.442695
  %v172 = vpow.pop %v171
  %v173 = vmul.f32 %v142, 1.442695
  %v174 = vpow.pop %v173
  %v175 = vsub.f32 %v144, 1.0
  %v176 = vsub.f32 %v146, 1.0
  %v177 = vsub.f32 %v148, 1.0
  %v178 = vsub.f32 %v150, 1.0
  %v179 = vsub.f32 %v152, 1.0
  %v180 = vsub.f32 %v154, 1.0
  %v181 = vsub.f32 %v156, 1.0
  %v182 = vsub.f32 %v158, 1.0
  %v183 = vsub.f32 %v160, 1.0
  %v184 = vsub.f32 %v162, 1.0
  %v185 = vsub.f32 %v164, 1.0
  %v186 = vsub.f32 %v166, 1.0
  %v187 = vsub.f32 %v168, 1.0
  %v188 = vsub.f32 %v170, 1.0
  %v189 = vsub.f32 %v172, 1.0
  %v190 = vsub.f32 %v174, 1.0
  %v191 = vsel %vm111, %v95, %v175
  %v192 = vsel %vm112, %v96, %v176
  %v193 = vsel %vm113, %v97, %v177
  %v194 = vsel %vm114, %v98, %v178
  %v195 = vsel %vm115, %v99, %v179
  %v196 = vsel %vm116, %v100, %v180
  %v197 = vsel %vm117, %v101, %v181
  %v198 = vsel %vm118, %v102, %v182
  %v199 = vsel %vm119, %v103, %v183
  %v200 = vsel %vm120, %v104, %v184
  %v201 = vsel %vm121, %v105, %v185
  %v202 = vsel %vm122, %v106, %v186
  %v203 = vsel %vm123, %v107, %v187
  %v204 = vsel %vm124, %v108, %v188
  %v205 = vsel %vm125, %v109, %v189
  %v206 = vsel %vm126, %v110, %v190
  %207 = vst [vmem:[%s4] sm:$0xff] %v191
  %208 = vst [vmem:[%s4 + $0x8] sm:$0xff] %v192
  %209 = vst [vmem:[%s4 + $0x10] sm:$0xff] %v193
  %210 = vst [vmem:[%s4 + $0x18] sm:$0xff] %v194
  %211 = vst [vmem:[%s4 + $0x20] sm:$0xff] %v195
  %212 = vst [vmem:[%s4 + $0x28] sm:$0xff] %v196
  %213 = vst [vmem:[%s4 + $0x30] sm:$0xff] %v197
  %214 = vst [vmem:[%s4 + $0x38] sm:$0xff] %v198
  %215 = vst [vmem:[%s4 + $0x40] sm:$0xff] %v199
  %216 = vst [vmem:[%s4 + $0x48] sm:$0xff] %v200
  %217 = vst [vmem:[%s4 + $0x50] sm:$0xff] %v201
  %218 = vst [vmem:[%s4 + $0x58] sm:$0xff] %v202
  %219 = vst [vmem:[%s4 + $0x60] sm:$0xff] %v203
  %220 = vst [vmem:[%s4 + $0x68] sm:$0xff] %v204
  %221 = vst [vmem:[%s4 + $0x70] sm:$0xff] %v205
  %222 = vst [vmem:[%s4 + $0x78] sm:$0xff] %v206
  // Predicated region
  $region18: #{up_transition_forward.18} parent=0 // pred_check
    _
  $region19: #{up_transition_forward.18} parent=0 // pred_check_branch
    %224 = sbr.rel (0) target = $region21
  $region20: #{up_transition_forward.18} parent=0 // pred_region
    _
  $region21: #{up_transition_forward.18} parent=0 // pred_fallthru
    _
  // Predicated region
  $region22: #{up_transition_forward.18} parent=0 // pred_check
    _
  $region23: #{up_transition_forward.18} parent=0 // pred_check_branch
    %226 = sbr.rel (0) target = $region25
  $region24: #{up_transition_forward.18} parent=0 // pred_region
    _
  $region25: #{up_transition_forward.18} parent=0 // pred_fallthru
    _

// kernel: up_transition_forward.19
$region0: #{up_transition_forward.19}
  #allocation0 [shape = 'u32[]', space=smem, size = 0x4, offset = 0x4, fixed_abs, tag = 'smem constant byte address 0x4 - core index']
  #allocation1 [shape = 'u32[144,128]{1,0:T(1,128)}', space=vmem, size = 0x12000, scoped, tag = 'internal scratch']
  #allocation2 [shape = 'f32[1,1]{1,0:T(1,128)S(1)}', space=vmem, size = 0x200, scoped, tag = 'scoped memory for up_transition_forward.19']
  %s0 = inlined_call_operand.vmem [shape: f32[2048,8], index: 0, kind: input, shape index: {}]
  %s1 = inlined_call_operand.vmem [shape: f32[1,8], index: 1, kind: input, shape index: {}]
  %s2 = inlined_call_operand.<no memory space> [shape: f32[1,1], index: 2, kind: input, shape index: {}]
  %s3 = inlined_call_operand.vmem [shape: f32[2048,2], index: 3, kind: output, shape index: {}]
  %s4 = sld [smem:[#allocation0]]
  $region45: #{up_transition_forward.19} parent=0
    _
  %s6 = ssub.s32 1, %s4
  %s7 = scalar_select 0, %s6, %s4
  %v8 = vstv %s2
  %9 = vst [vmem:[#allocation2] sm:$0x1] %v8
  loop: start=0, step=1, limit=6
  $region2: #{up_transition_forward.19} parent=0 // loop_pre_header
    _
  $region3: #{up_transition_forward.19} parent=0 // loop_header
    %s11 = sphi 0, %s15
    %p12 = scmp.ge.s32.totalorder %s11, 6
    %s21 = sphi 0, %s23
    %s24 = sphi 0, %s21
    %s25 = sphi 0, %s24
    %s41 = sphi 0, %s25
    %s45 = sphi 0, %s45
    %s47 = sphi 0, %s45
    %s48 = sphi 0, %s47
    %s62 = sphi 0, %s48
    %s66 = sphi 0, %s66
    %s68 = sphi 0, %s66
    %s69 = sphi 0, %s68
    %s83 = sphi 0, %s69
    %s89 = sphi 0, %s91
    %s92 = sphi 0, %s89
    %s93 = sphi 0, %s92
    %s109 = sphi 0, %s93
  $region4: #{up_transition_forward.19} parent=0 // loop_header_branch
    %14 = sbr.rel (%p12) target = $region8
  $region5: #{up_transition_forward.19} parent=0 // loop_body
    %s16 = ssub.s32 %s11, 1
    %s17 = ssub.s32 %s11, 2
    %s18 = sadd.s32 %s11, 1
    %s19 = ssub.s32 %s11, %s18
    %p20 = scmp.eq.s32.totalorder %s19, 0
    %s22 = sadd.s32 %s21, 1
    %s23 = scalar_select %p20, %s21, %s22
    %p26 = pneg %p20
    %p27 = scmp.eq.s32.totalorder %s11, 3
    %p28 = por %p26, %p27
    %p29 = scmp.ne.s32.totalorder %s21, %s24
    %p30 = scmp.eq.s32.totalorder %s11, 0
    %p31 = por %p29, %p30
    %p32 = scmp.ne.s32.totalorder %s21, %s24
    %p33 = scmp.eq.s32.totalorder %s16, 3
    %p34 = por %p32, %p33
    %p35 = scmp.ne.s32.totalorder %s24, %s25
    %p36 = scmp.eq.s32.totalorder %s16, 0
    %p37 = por %p35, %p36
    %p38 = scmp.ne.s32.totalorder %s24, %s25
    %p39 = scmp.eq.s32.totalorder %s17, 3
    %p40 = por %p38, %p39
    %p42 = scmp.ne.s32.totalorder %s25, %s41
    %p43 = scmp.eq.s32.totalorder %s17, 0
    %p44 = por %p42, %p43
    %s46 = sadd.s32 %s45, 1
    %p49 = scmp.eq.s32.totalorder %s11, 3
    %p50 = scmp.ne.s32.totalorder %s45, %s47
    %p51 = scmp.eq.s32.totalorder %s11, 0
    %p52 = por %p50, %p51
    %p53 = scmp.ne.s32.totalorder %s45, %s47
    %p54 = scmp.eq.s32.totalorder %s16, 3
    %p55 = por %p53, %p54
    %p56 = scmp.ne.s32.totalorder %s47, %s48
    %p57 = scmp.eq.s32.totalorder %s16, 0
    %p58 = por %p56, %p57
    %p59 = scmp.ne.s32.totalorder %s47, %s48
    %p60 = scmp.eq.s32.totalorder %s17, 3
    %p61 = por %p59, %p60
    %p63 = scmp.ne.s32.totalorder %s48, %s62
    %p64 = scmp.eq.s32.totalorder %s17, 0
    %p65 = por %p63, %p64
    %s67 = sadd.s32 %s66, 1
    %p70 = scmp.eq.s32.totalorder %s11, 3
    %p71 = scmp.ne.s32.totalorder %s66, %s68
    %p72 = scmp.eq.s32.totalorder %s11, 0
    %p73 = por %p71, %p72
    %p74 = scmp.ne.s32.totalorder %s66, %s68
    %p75 = scmp.eq.s32.totalorder %s16, 3
    %p76 = por %p74, %p75
    %p77 = scmp.ne.s32.totalorder %s68, %s69
    %p78 = scmp.eq.s32.totalorder %s16, 0
    %p79 = por %p77, %p78
    %p80 = scmp.ne.s32.totalorder %s68, %s69
    %p81 = scmp.eq.s32.totalorder %s17, 3
    %p82 = por %p80, %p81
    %p84 = scmp.ne.s32.totalorder %s69, %s83
    %p85 = scmp.eq.s32.totalorder %s17, 0
    %p86 = por %p84, %p85
    %s87 = ssub.s32 %s11, %s18
    %p88 = scmp.eq.s32.totalorder %s87, 0
    %s90 = sadd.s32 %s89, 1
    %s91 = scalar_select %p88, %s89, %s90
    %p94 = pneg %p88
    %p95 = scmp.eq.s32.totalorder %s11, 3
    %p96 = por %p94, %p95
    %p97 = scmp.ne.s32.totalorder %s89, %s92
    %p98 = scmp.eq.s32.totalorder %s11, 0
    %p99 = por %p97, %p98
    %p100 = scmp.ne.s32.totalorder %s89, %s92
    %p101 = scmp.eq.s32.totalorder %s16, 3
    %p102 = por %p100, %p101
    %p103 = scmp.ne.s32.totalorder %s92, %s93
    %p104 = scmp.eq.s32.totalorder %s16, 0
    %p105 = por %p103, %p104
    %p106 = scmp.ne.s32.totalorder %s92, %s93
    %p107 = scmp.eq.s32.totalorder %s17, 3
    %p108 = por %p106, %p107
    %p110 = scmp.ne.s32.totalorder %s93, %s109
    %p111 = scmp.eq.s32.totalorder %s17, 0
    %p112 = por %p110, %p111
    %p113 = scmp.le.s32.totalorder 1, %s11
    %p114 = scmp.lt.s32.totalorder %s11, 5
    %p115 = pnand %p113, %p114
    %p116 = pneg %p115
    // Predicated region
    $region9: #{up_transition_forward.19} parent=5 // pred_check
      _
    $region10: #{up_transition_forward.19} parent=5 // pred_check_branch
      %118 = sbr.rel (%p115) target = $region12
    $region11: #{up_transition_forward.19} parent=5 // pred_region
      %s119 = ssub.s32 %s11, 1
      // Predicated region
      $region13: #{up_transition_forward.19} parent=11 // pred_check
        %p120 = pneg %p58
      $region14: #{up_transition_forward.19} parent=11 // pred_check_branch
        %122 = sbr.rel (%p120) target = $region16
      $region15: #{up_transition_forward.19} parent=11 // pred_region
        _
      $region16: #{up_transition_forward.19} parent=11 // pred_fallthru
        _
      // Predicated region
      $region17: #{up_transition_forward.19} parent=11 // pred_check
        %p123 = pneg %p79
      $region18: #{up_transition_forward.19} parent=11 // pred_check_branch
        %125 = sbr.rel (%p123) target = $region20
      $region19: #{up_transition_forward.19} parent=11 // pred_region
        _
      $region20: #{up_transition_forward.19} parent=11 // pred_fallthru
        _
    $region12: #{up_transition_forward.19} parent=5 // pred_fallthru
      _
    %p126 = scmp.lt.s32.totalorder %s11, 4
    // Predicated region
    $region21: #{up_transition_forward.19} parent=5 // pred_check
      %p127 = pneg %p126
    $region22: #{up_transition_forward.19} parent=5 // pred_check_branch
      %129 = sbr.rel (%p127) target = $region24
    $region23: #{up_transition_forward.19} parent=5 // pred_region
      // Predicated region
      $region25: #{up_transition_forward.19} parent=23 // pred_check
        %p130 = pneg %p31
      $region26: #{up_transition_forward.19} parent=23 // pred_check_branch
        %132 = sbr.rel (%p130) target = $region28
      $region27: #{up_transition_forward.19} parent=23 // pred_region
        %s133 = smul.u32 64, %s11
        %p134 = scmp.lt.s32.totalorder %s133, 255
        %s135 = scalar_select %p134, %s133, 255
        %s136 = smul.addr %s135, 8
        %s137 = scalar_lea.vmem %s0, %s136
        %s138 = smul.u32 64, %s11
      $region28: #{up_transition_forward.19} parent=23 // pred_fallthru
        _
    $region24: #{up_transition_forward.19} parent=5 // pred_fallthru
      _
    %p139 = scmp.le.s32.totalorder 1, %s11
    %p140 = scmp.lt.s32.totalorder %s11, 5
    %p141 = pnand %p139, %p140
    %p142 = pneg %p141
    // Predicated region
    $region29: #{up_transition_forward.19} parent=5 // pred_check
      _
    $region30: #{up_transition_forward.19} parent=5 // pred_check_branch
      %144 = sbr.rel (%p141) target = $region32
    $region31: #{up_transition_forward.19} parent=5 // pred_region
      %s145 = ssub.s32 %s11, 1
      %s146 = smul.u32 64, %s16
      %p147 = scmp.lt.s32.totalorder %s146, 255
      %s148 = scalar_select %p147, %s146, 255
      %s149 = smul.addr %s148, 8
      %s150 = scalar_lea.vmem %s0, %s149
      %p151 = pneg %p37
      %p152 = pneg %p34
      %p153 = pneg %p58
      %p154 = pneg %p55
      %p155 = pneg %p79
      %p156 = pneg %p76
      %p157 = pneg %p105
      %p158 = pneg %p102
      %s159 = smul.u32 64, %s16
      %p160 = scmp.lt.s32.totalorder %s159, 255
      %s161 = scalar_select %p160, %s159, 255
      %s162 = smul.addr %s161, 8
      %s163 = scalar_lea.vmem %s3, %s162
      %s164 = smul.u32 64, %s16
      %p165 = scmp.lt.s32.totalorder %s164, 255
      %s166 = scalar_select %p165, %s164, 255
      %s167 = smul.addr %s166, 8
      %s168 = scalar_lea.vmem %s0, %s167
      %s169 = smul.u32 64, %s16
      %s170 = smul.u32 64, %s16
      %p171 = scmp.lt.s32.totalorder %s170, 255
      %s172 = scalar_select %p171, %s170, 255
      %s173 = smul.addr %s172, 8
      %s174 = scalar_lea.vmem %s3, %s173
      %s175 = smul.u32 64, %s16
      %v176 = vld [vmem:[%s168] sm:$0xff]
      %v177 = vld [vmem:[%s168 + $0x8] sm:$0xff]
      %v178 = vld [vmem:[%s168 + $0x10] sm:$0xff]
      %v179 = vld [vmem:[%s168 + $0x18] sm:$0xff]
      %v180 = vld [vmem:[%s168 + $0x20] sm:$0xff]
      %v181 = vld [vmem:[%s168 + $0x28] sm:$0xff]
      %v182 = vld [vmem:[%s168 + $0x30] sm:$0xff]
      %v183 = vld [vmem:[%s168 + $0x38] sm:$0xff]
      %v184 = vld [vmem:[%s168 + $0x40] sm:$0xff]
      %v185 = vld [vmem:[%s168 + $0x48] sm:$0xff]
      %v186 = vld [vmem:[%s168 + $0x50] sm:$0xff]
      %v187 = vld [vmem:[%s168 + $0x58] sm:$0xff]
      %v188 = vld [vmem:[%s168 + $0x60] sm:$0xff]
      %v189 = vld [vmem:[%s168 + $0x68] sm:$0xff]
      %v190 = vld [vmem:[%s168 + $0x70] sm:$0xff]
      %v191 = vld [vmem:[%s168 + $0x78] sm:$0xff]
      %v192 = vld [vmem:[%s168 + $0x80] sm:$0xff]
      %v193 = vld [vmem:[%s168 + $0x88] sm:$0xff]
      %v194 = vld [vmem:[%s168 + $0x90] sm:$0xff]
      %v195 = vld [vmem:[%s168 + $0x98] sm:$0xff]
      %v196 = vld [vmem:[%s168 + $0xa0] sm:$0xff]
      %v197 = vld [vmem:[%s168 + $0xa8] sm:$0xff]
      %v198 = vld [vmem:[%s168 + $0xb0] sm:$0xff]
      %v199 = vld [vmem:[%s168 + $0xb8] sm:$0xff]
      %v200 = vld [vmem:[%s168 + $0xc0] sm:$0xff]
      %v201 = vld [vmem:[%s168 + $0xc8] sm:$0xff]
      %v202 = vld [vmem:[%s168 + $0xd0] sm:$0xff]
      %v203 = vld [vmem:[%s168 + $0xd8] sm:$0xff]
      %v204 = vld [vmem:[%s168 + $0xe0] sm:$0xff]
      %v205 = vld [vmem:[%s168 + $0xe8] sm:$0xff]
      %v206 = vld [vmem:[%s168 + $0xf0] sm:$0xff]
      %v207 = vld [vmem:[%s168 + $0xf8] sm:$0xff]
      %v208 = vld [vmem:[%s168 + $0x100] sm:$0xff]
      %v209 = vld [vmem:[%s168 + $0x108] sm:$0xff]
      %v210 = vld [vmem:[%s168 + $0x110] sm:$0xff]
      %v211 = vld [vmem:[%s168 + $0x118] sm:$0xff]
      %v212 = vld [vmem:[%s168 + $0x120] sm:$0xff]
      %v213 = vld [vmem:[%s168 + $0x128] sm:$0xff]
      %v214 = vld [vmem:[%s168 + $0x130] sm:$0xff]
      %v215 = vld [vmem:[%s168 + $0x138] sm:$0xff]
      %v216 = vld [vmem:[%s168 + $0x140] sm:$0xff]
      %v217 = vld [vmem:[%s168 + $0x148] sm:$0xff]
      %v218 = vld [vmem:[%s168 + $0x150] sm:$0xff]
      %v219 = vld [vmem:[%s168 + $0x158] sm:$0xff]
      %v220 = vld [vmem:[%s168 + $0x160] sm:$0xff]
      %v221 = vld [vmem:[%s168 + $0x168] sm:$0xff]
      %v222 = vld [vmem:[%s168 + $0x170] sm:$0xff]
      %v223 = vld [vmem:[%s168 + $0x178] sm:$0xff]
      %v224 = vld [vmem:[%s168 + $0x180] sm:$0xff]
      %v225 = vld [vmem:[%s168 + $0x188] sm:$0xff]
      %v226 = vld [vmem:[%s168 + $0x190] sm:$0xff]
      %v227 = vld [vmem:[%s168 + $0x198] sm:$0xff]
      %v228 = vld [vmem:[%s168 + $0x1a0] sm:$0xff]
      %v229 = vld [vmem:[%s168 + $0x1a8] sm:$0xff]
      %v230 = vld [vmem:[%s168 + $0x1b0] sm:$0xff]
      %v231 = vld [vmem:[%s168 + $0x1b8] sm:$0xff]
      %v232 = vld [vmem:[%s168 + $0x1c0] sm:$0xff]
      %v233 = vld [vmem:[%s168 + $0x1c8] sm:$0xff]
      %v234 = vld [vmem:[%s168 + $0x1d0] sm:$0xff]
      %v235 = vld [vmem:[%s168 + $0x1d8] sm:$0xff]
      %v236 = vld [vmem:[%s168 + $0x1e0] sm:$0xff]
      %v237 = vld [vmem:[%s168 + $0x1e8] sm:$0xff]
      %v238 = vld [vmem:[%s168 + $0x1f0] sm:$0xff]
      %v239 = vld [vmem:[%s168 + $0x1f8] sm:$0xff]
      %v240 = vld [vmem:[%s1] sm:$0x1]
      %v242 = vlaneseq
      %v243 = vshrl.u32 %v242, 7
      %v244 = vsub.s32 0, %v243
      %v245 = vrot.slane %v240, %v244
      %v247 = vmul.f32 %v176, %v245
      %v248 = vmul.f32 %v177, %v245
      %v249 = vmul.f32 %v178, %v245
      %v250 = vmul.f32 %v179, %v245
      %v251 = vmul.f32 %v180, %v245
      %v252 = vmul.f32 %v181, %v245
      %v253 = vmul.f32 %v182, %v245
      %v254 = vmul.f32 %v183, %v245
      %v255 = vmul.f32 %v184, %v245
      %v256 = vmul.f32 %v185, %v245
      %v257 = vmul.f32 %v186, %v245
      %v258 = vmul.f32 %v187, %v245
      %v259 = vmul.f32 %v188, %v245
      %v260 = vmul.f32 %v189, %v245
      %v261 = vmul.f32 %v190, %v245
      %v262 = vmul.f32 %v191, %v245
      %v263 = vmul.f32 %v192, %v245
      %v264 = vmul.f32 %v193, %v245
      %v265 = vmul.f32 %v194, %v245
      %v266 = vmul.f32 %v195, %v245
      %v267 = vmul.f32 %v196, %v245
      %v268 = vmul.f32 %v197, %v245
      %v269 = vmul.f32 %v198, %v245
      %v270 = vmul.f32 %v199, %v245
      %v271 = vmul.f32 %v200, %v245
      %v272 = vmul.f32 %v201, %v245
      %v273 = vmul.f32 %v202, %v245
      %v274 = vmul.f32 %v203, %v245
      %v275 = vmul.f32 %v204, %v245
      %v276 = vmul.f32 %v205, %v245
      %v277 = vmul.f32 %v206, %v245
      %v278 = vmul.f32 %v207, %v245
      %v279 = vmul.f32 %v208, %v245
      %v280 = vmul.f32 %v209, %v245
      %v281 = vmul.f32 %v210, %v245
      %v282 = vmul.f32 %v211, %v245
      %v283 = vmul.f32 %v212, %v245
      %v284 = vmul.f32 %v213, %v245
      %v285 = vmul.f32 %v214, %v245
      %v286 = vmul.f32 %v215, %v245
      %v287 = vmul.f32 %v216, %v245
      %v288 = vmul.f32 %v217, %v245
      %v289 = vmul.f32 %v218, %v245
      %v290 = vmul.f32 %v219, %v245
      %v291 = vmul.f32 %v220, %v245
      %v292 = vmul.f32 %v221, %v245
      %v293 = vmul.f32 %v222, %v245
      %v294 = vmul.f32 %v223, %v245
      %v295 = vmul.f32 %v224, %v245
      %v296 = vmul.f32 %v225, %v245
      %v297 = vmul.f32 %v226, %v245
      %v298 = vmul.f32 %v227, %v245
      %v299 = vmul.f32 %v228, %v245
      %v300 = vmul.f32 %v229, %v245
      %v301 = vmul.f32 %v230, %v245
      %v302 = vmul.f32 %v231, %v245
      %v303 = vmul.f32 %v232, %v245
      %v304 = vmul.f32 %v233, %v245
      %v305 = vmul.f32 %v234, %v245
      %v306 = vmul.f32 %v235, %v245
      %v307 = vmul.f32 %v236, %v245
      %v308 = vmul.f32 %v237, %v245
      %v309 = vmul.f32 %v238, %v245
      %v310 = vmul.f32 %v239, %v245
      %vm311 = vcmask 64512
      %v312 = vsel %vm311, %v247, 0.0
      %313 = vadd.xlane.f32.xlu0 %v312
      %v314 = vpop.xlane.xlu0 %313
      %v315 = vsel %vm311, %v248, 0.0
      %316 = vadd.xlane.f32.xlu0 %v315
      %v317 = vpop.xlane.xlu0 %316
      %v318 = vsel %vm311, %v249, 0.0
      %319 = vadd.xlane.f32.xlu0 %v318
      %v320 = vpop.xlane.xlu0 %319
      %v321 = vsel %vm311, %v250, 0.0
      %322 = vadd.xlane.f32.xlu0 %v321
      %v323 = vpop.xlane.xlu0 %322
      %v324 = vsel %vm311, %v251, 0.0
      %325 = vadd.xlane.f32.xlu0 %v324
      %v326 = vpop.xlane.xlu0 %325
      %v327 = vsel %vm311, %v252, 0.0
      %328 = vadd.xlane.f32.xlu0 %v327
      %v329 = vpop.xlane.xlu0 %328
      %v330 = vsel %vm311, %v253, 0.0
      %331 = vadd.xlane.f32.xlu0 %v330
      %v332 = vpop.xlane.xlu0 %331
      %v333 = vsel %vm311, %v254, 0.0
      %334 = vadd.xlane.f32.xlu0 %v333
      %v335 = vpop.xlane.xlu0 %334
      %v336 = vsel %vm311, %v255, 0.0
      %337 = vadd.xlane.f32.xlu0 %v336
      %v338 = vpop.xlane.xlu0 %337
      %v339 = vsel %vm311, %v256, 0.0
      %340 = vadd.xlane.f32.xlu0 %v339
      %v341 = vpop.xlane.xlu0 %340
      %v342 = vsel %vm311, %v257, 0.0
      %343 = vadd.xlane.f32.xlu0 %v342
      %v344 = vpop.xlane.xlu0 %343
      %v345 = vsel %vm311, %v258, 0.0
      %346 = vadd.xlane.f32.xlu0 %v345
      %v347 = vpop.xlane.xlu0 %346
      %v348 = vsel %vm311, %v259, 0.0
      %349 = vadd.xlane.f32.xlu0 %v348
      %v350 = vpop.xlane.xlu0 %349
      %v351 = vsel %vm311, %v260, 0.0
      %352 = vadd.xlane.f32.xlu0 %v351
      %v353 = vpop.xlane.xlu0 %352
      %v354 = vsel %vm311, %v261, 0.0
      %355 = vadd.xlane.f32.xlu0 %v354
      %v356 = vpop.xlane.xlu0 %355
      %v357 = vsel %vm311, %v262, 0.0
      %358 = vadd.xlane.f32.xlu0 %v357
      %v359 = vpop.xlane.xlu0 %358
      %v360 = vsel %vm311, %v263, 0.0
      %361 = vadd.xlane.f32.xlu0 %v360
      %v362 = vpop.xlane.xlu0 %361
      %v363 = vsel %vm311, %v264, 0.0
      %364 = vadd.xlane.f32.xlu0 %v363
      %v365 = vpop.xlane.xlu0 %364
      %v366 = vsel %vm311, %v265, 0.0
      %367 = vadd.xlane.f32.xlu0 %v366
      %v368 = vpop.xlane.xlu0 %367
      %v369 = vsel %vm311, %v266, 0.0
      %370 = vadd.xlane.f32.xlu0 %v369
      %v371 = vpop.xlane.xlu0 %370
      %v372 = vsel %vm311, %v267, 0.0
      %373 = vadd.xlane.f32.xlu0 %v372
      %v374 = vpop.xlane.xlu0 %373
      %v375 = vsel %vm311, %v268, 0.0
      %376 = vadd.xlane.f32.xlu0 %v375
      %v377 = vpop.xlane.xlu0 %376
      %v378 = vsel %vm311, %v269, 0.0
      %379 = vadd.xlane.f32.xlu0 %v378
      %v380 = vpop.xlane.xlu0 %379
      %v381 = vsel %vm311, %v270, 0.0
      %382 = vadd.xlane.f32.xlu0 %v381
      %v383 = vpop.xlane.xlu0 %382
      %v384 = vsel %vm311, %v271, 0.0
      %385 = vadd.xlane.f32.xlu0 %v384
      %v386 = vpop.xlane.xlu0 %385
      %v387 = vsel %vm311, %v272, 0.0
      %388 = vadd.xlane.f32.xlu0 %v387
      %v389 = vpop.xlane.xlu0 %388
      %v390 = vsel %vm311, %v273, 0.0
      %391 = vadd.xlane.f32.xlu0 %v390
      %v392 = vpop.xlane.xlu0 %391
      %v393 = vsel %vm311, %v274, 0.0
      %394 = vadd.xlane.f32.xlu0 %v393
      %v395 = vpop.xlane.xlu0 %394
      %v396 = vsel %vm311, %v275, 0.0
      %397 = vadd.xlane.f32.xlu0 %v396
      %v398 = vpop.xlane.xlu0 %397
      %v399 = vsel %vm311, %v276, 0.0
      %400 = vadd.xlane.f32.xlu0 %v399
      %v401 = vpop.xlane.xlu0 %400
      %v402 = vsel %vm311, %v277, 0.0
      %403 = vadd.xlane.f32.xlu0 %v402
      %v404 = vpop.xlane.xlu0 %403
      %v405 = vsel %vm311, %v278, 0.0
      %406 = vadd.xlane.f32.xlu0 %v405
      %v407 = vpop.xlane.xlu0 %406
      %v408 = vsel %vm311, %v279, 0.0
      %409 = vadd.xlane.f32.xlu0 %v408
      %v410 = vpop.xlane.xlu0 %409
      %v411 = vsel %vm311, %v280, 0.0
      %412 = vadd.xlane.f32.xlu0 %v411
      %v413 = vpop.xlane.xlu0 %412
      %v414 = vsel %vm311, %v281, 0.0
      %415 = vadd.xlane.f32.xlu0 %v414
      %v416 = vpop.xlane.xlu0 %415
      %v417 = vsel %vm311, %v282, 0.0
      %418 = vadd.xlane.f32.xlu0 %v417
      %v419 = vpop.xlane.xlu0 %418
      %v420 = vsel %vm311, %v283, 0.0
      %421 = vadd.xlane.f32.xlu0 %v420
      %v422 = vpop.xlane.xlu0 %421
      %v423 = vsel %vm311, %v284, 0.0
      %424 = vadd.xlane.f32.xlu0 %v423
      %v425 = vpop.xlane.xlu0 %424
      %v426 = vsel %vm311, %v285, 0.0
      %427 = vadd.xlane.f32.xlu0 %v426
      %v428 = vpop.xlane.xlu0 %427
      %v429 = vsel %vm311, %v286, 0.0
      %430 = vadd.xlane.f32.xlu0 %v429
      %v431 = vpop.xlane.xlu0 %430
      %v432 = vsel %vm311, %v287, 0.0
      %433 = vadd.xlane.f32.xlu0 %v432
      %v434 = vpop.xlane.xlu0 %433
      %v435 = vsel %vm311, %v288, 0.0
      %436 = vadd.xlane.f32.xlu0 %v435
      %v437 = vpop.xlane.xlu0 %436
      %v438 = vsel %vm311, %v289, 0.0
      %439 = vadd.xlane.f32.xlu0 %v438
      %v440 = vpop.xlane.xlu0 %439
      %v441 = vsel %vm311, %v290, 0.0
      %442 = vadd.xlane.f32.xlu0 %v441
      %v443 = vpop.xlane.xlu0 %442
      %v444 = vsel %vm311, %v291, 0.0
      %445 = vadd.xlane.f32.xlu0 %v444
      %v446 = vpop.xlane.xlu0 %445
      %v447 = vsel %vm311, %v292, 0.0
      %448 = vadd.xlane.f32.xlu0 %v447
      %v449 = vpop.xlane.xlu0 %448
      %v450 = vsel %vm311, %v293, 0.0
      %451 = vadd.xlane.f32.xlu0 %v450
      %v452 = vpop.xlane.xlu0 %451
      %v453 = vsel %vm311, %v294, 0.0
      %454 = vadd.xlane.f32.xlu0 %v453
      %v455 = vpop.xlane.xlu0 %454
      %v456 = vsel %vm311, %v295, 0.0
      %457 = vadd.xlane.f32.xlu0 %v456
      %v458 = vpop.xlane.xlu0 %457
      %v459 = vsel %vm311, %v296, 0.0
      %460 = vadd.xlane.f32.xlu0 %v459
      %v461 = vpop.xlane.xlu0 %460
      %v462 = vsel %vm311, %v297, 0.0
      %463 = vadd.xlane.f32.xlu0 %v462
      %v464 = vpop.xlane.xlu0 %463
      %v465 = vsel %vm311, %v298, 0.0
      %466 = vadd.xlane.f32.xlu0 %v465
      %v467 = vpop.xlane.xlu0 %466
      %v468 = vsel %vm311, %v299, 0.0
      %469 = vadd.xlane.f32.xlu0 %v468
      %v470 = vpop.xlane.xlu0 %469
      %v471 = vsel %vm311, %v300, 0.0
      %472 = vadd.xlane.f32.xlu0 %v471
      %v473 = vpop.xlane.xlu0 %472
      %v474 = vsel %vm311, %v301, 0.0
      %475 = vadd.xlane.f32.xlu0 %v474
      %v476 = vpop.xlane.xlu0 %475
      %v477 = vsel %vm311, %v302, 0.0
      %478 = vadd.xlane.f32.xlu0 %v477
      %v479 = vpop.xlane.xlu0 %478
      %v480 = vsel %vm311, %v303, 0.0
      %481 = vadd.xlane.f32.xlu0 %v480
      %v482 = vpop.xlane.xlu0 %481
      %v483 = vsel %vm311, %v304, 0.0
      %484 = vadd.xlane.f32.xlu0 %v483
      %v485 = vpop.xlane.xlu0 %484
      %v486 = vsel %vm311, %v305, 0.0
      %487 = vadd.xlane.f32.xlu0 %v486
      %v488 = vpop.xlane.xlu0 %487
      %v489 = vsel %vm311, %v306, 0.0
      %490 = vadd.xlane.f32.xlu0 %v489
      %v491 = vpop.xlane.xlu0 %490
      %v492 = vsel %vm311, %v307, 0.0
      %493 = vadd.xlane.f32.xlu0 %v492
      %v494 = vpop.xlane.xlu0 %493
      %v495 = vsel %vm311, %v308, 0.0
      %496 = vadd.xlane.f32.xlu0 %v495
      %v497 = vpop.xlane.xlu0 %496
      %v498 = vsel %vm311, %v309, 0.0
      %499 = vadd.xlane.f32.xlu0 %v498
      %v500 = vpop.xlane.xlu0 %499
      %v501 = vsel %vm311, %v310, 0.0
      %502 = vadd.xlane.f32.xlu0 %v501
      %v503 = vpop.xlane.xlu0 %502
      %v504 = vld [vmem:[#allocation2] sm:$0x1]
      %v506 = vlaneseq
      %v507 = vshrl.u32 %v506, 7
      %v508 = vsub.s32 0, %v507
      %v509 = vrot.slane %v504, %v508
      %v511 = vadd.f32 %v314, %v509
      %v512 = vadd.f32 %v317, %v509
      %v513 = vadd.f32 %v320, %v509
      %v514 = vadd.f32 %v323, %v509
      %v515 = vadd.f32 %v326, %v509
      %v516 = vadd.f32 %v329, %v509
      %v517 = vadd.f32 %v332, %v509
      %v518 = vadd.f32 %v335, %v509
      %v519 = vadd.f32 %v338, %v509
      %v520 = vadd.f32 %v341, %v509
      %v521 = vadd.f32 %v344, %v509
      %v522 = vadd.f32 %v347, %v509
      %v523 = vadd.f32 %v350, %v509
      %v524 = vadd.f32 %v353, %v509
      %v525 = vadd.f32 %v356, %v509
      %v526 = vadd.f32 %v359, %v509
      %v527 = vadd.f32 %v362, %v509
      %v528 = vadd.f32 %v365, %v509
      %v529 = vadd.f32 %v368, %v509
      %v530 = vadd.f32 %v371, %v509
      %v531 = vadd.f32 %v374, %v509
      %v532 = vadd.f32 %v377, %v509
      %v533 = vadd.f32 %v380, %v509
      %v534 = vadd.f32 %v383, %v509
      %v535 = vadd.f32 %v386, %v509
      %v536 = vadd.f32 %v389, %v509
      %v537 = vadd.f32 %v392, %v509
      %v538 = vadd.f32 %v395, %v509
      %v539 = vadd.f32 %v398, %v509
      %v540 = vadd.f32 %v401, %v509
      %v541 = vadd.f32 %v404, %v509
      %v542 = vadd.f32 %v407, %v509
      %v543 = vadd.f32 %v410, %v509
      %v544 = vadd.f32 %v413, %v509
      %v545 = vadd.f32 %v416, %v509
      %v546 = vadd.f32 %v419, %v509
      %v547 = vadd.f32 %v422, %v509
      %v548 = vadd.f32 %v425, %v509
      %v549 = vadd.f32 %v428, %v509
      %v550 = vadd.f32 %v431, %v509
      %v551 = vadd.f32 %v434, %v509
      %v552 = vadd.f32 %v437, %v509
      %v553 = vadd.f32 %v440, %v509
      %v554 = vadd.f32 %v443, %v509
      %v555 = vadd.f32 %v446, %v509
      %v556 = vadd.f32 %v449, %v509
      %v557 = vadd.f32 %v452, %v509
      %v558 = vadd.f32 %v455, %v509
      %v559 = vadd.f32 %v458, %v509
      %v560 = vadd.f32 %v461, %v509
      %v561 = vadd.f32 %v464, %v509
      %v562 = vadd.f32 %v467, %v509
      %v563 = vadd.f32 %v470, %v509
      %v564 = vadd.f32 %v473, %v509
      %v565 = vadd.f32 %v476, %v509
      %v566 = vadd.f32 %v479, %v509
      %v567 = vadd.f32 %v482, %v509
      %v568 = vadd.f32 %v485, %v509
      %v569 = vadd.f32 %v488, %v509
      %v570 = vadd.f32 %v491, %v509
      %v571 = vadd.f32 %v494, %v509
      %v572 = vadd.f32 %v497, %v509
      %v573 = vadd.f32 %v500, %v509
      %v574 = vadd.f32 %v503, %v509
      %v575 = vsub.f32 0.0, %v511
      %v576 = vsub.f32 0.0, %v512
      %v577 = vsub.f32 0.0, %v513
      %v578 = vsub.f32 0.0, %v514
      %v579 = vsub.f32 0.0, %v515
      %v580 = vsub.f32 0.0, %v516
      %v581 = vsub.f32 0.0, %v517
      %v582 = vsub.f32 0.0, %v518
      %v583 = vsub.f32 0.0, %v519
      %v584 = vsub.f32 0.0, %v520
      %v585 = vsub.f32 0.0, %v521
      %v586 = vsub.f32 0.0, %v522
      %v587 = vsub.f32 0.0, %v523
      %v588 = vsub.f32 0.0, %v524
      %v589 = vsub.f32 0.0, %v525
      %v590 = vsub.f32 0.0, %v526
      %v591 = vsub.f32 0.0, %v527
      %v592 = vsub.f32 0.0, %v528
      %v593 = vsub.f32 0.0, %v529
      %v594 = vsub.f32 0.0, %v530
      %v595 = vsub.f32 0.0, %v531
      %v596 = vsub.f32 0.0, %v532
      %v597 = vsub.f32 0.0, %v533
      %v598 = vsub.f32 0.0, %v534
      %v599 = vsub.f32 0.0, %v535
      %v600 = vsub.f32 0.0, %v536
      %v601 = vsub.f32 0.0, %v537
      %v602 = vsub.f32 0.0, %v538
      %v603 = vsub.f32 0.0, %v539
      %v604 = vsub.f32 0.0, %v540
      %v605 = vsub.f32 0.0, %v541
      %v606 = vsub.f32 0.0, %v542
      %v607 = vsub.f32 0.0, %v543
      %v608 = vsub.f32 0.0, %v544
      %v609 = vsub.f32 0.0, %v545
      %v610 = vsub.f32 0.0, %v546
      %v611 = vsub.f32 0.0, %v547
      %v612 = vsub.f32 0.0, %v548
      %v613 = vsub.f32 0.0, %v549
      %v614 = vsub.f32 0.0, %v550
      %v615 = vsub.f32 0.0, %v551
      %v616 = vsub.f32 0.0, %v552
      %v617 = vsub.f32 0.0, %v553
      %v618 = vsub.f32 0.0, %v554
      %v619 = vsub.f32 0.0, %v555
      %v620 = vsub.f32 0.0, %v556
      %v621 = vsub.f32 0.0, %v557
      %v622 = vsub.f32 0.0, %v558
      %v623 = vsub.f32 0.0, %v559
      %v624 = vsub.f32 0.0, %v560
      %v625 = vsub.f32 0.0, %v561
      %v626 = vsub.f32 0.0, %v562
      %v627 = vsub.f32 0.0, %v563
      %v628 = vsub.f32 0.0, %v564
      %v629 = vsub.f32 0.0, %v565
      %v630 = vsub.f32 0.0, %v566
      %v631 = vsub.f32 0.0, %v567
      %v632 = vsub.f32 0.0, %v568
      %v633 = vsub.f32 0.0, %v569
      %v634 = vsub.f32 0.0, %v570
      %v635 = vsub.f32 0.0, %v571
      %v636 = vsub.f32 0.0, %v572
      %v637 = vsub.f32 0.0, %v573
      %v638 = vsub.f32 0.0, %v574
      %v639 = vmul.f32 %v575, 1.442695
      %v640 = vpow.pop %v639
      %v641 = vmul.f32 %v576, 1.442695
      %v642 = vpow.pop %v641
      %v643 = vmul.f32 %v577, 1.442695
      %v644 = vpow.pop %v643
      %v645 = vmul.f32 %v578, 1.442695
      %v646 = vpow.pop %v645
      %v647 = vmul.f32 %v579, 1.442695
      %v648 = vpow.pop %v647
      %v649 = vmul.f32 %v580, 1.442695
      %v650 = vpow.pop %v649
      %v651 = vmul.f32 %v581, 1.442695
      %v652 = vpow.pop %v651
      %v653 = vmul.f32 %v582, 1.442695
      %v654 = vpow.pop %v653
      %v655 = vmul.f32 %v583, 1.442695
      %v656 = vpow.pop %v655
      %v657 = vmul.f32 %v584, 1.442695
      %v658 = vpow.pop %v657
      %v659 = vmul.f32 %v585, 1.442695
      %v660 = vpow.pop %v659
      %v661 = vmul.f32 %v586, 1.442695
      %v662 = vpow.pop %v661
      %v663 = vmul.f32 %v587, 1.442695
      %v664 = vpow.pop %v663
      %v665 = vmul.f32 %v588, 1.442695
      %v666 = vpow.pop %v665
      %v667 = vmul.f32 %v589, 1.442695
      %v668 = vpow.pop %v667
      %v669 = vmul.f32 %v590, 1.442695
      %v670 = vpow.pop %v669
      %v671 = vmul.f32 %v591, 1.442695
      %v672 = vpow.pop %v671
      %v673 = vmul.f32 %v592, 1.442695
      %v674 = vpow.pop %v673
      %v675 = vmul.f32 %v593, 1.442695
      %v676 = vpow.pop %v675
      %v677 = vmul.f32 %v594, 1.442695
      %v678 = vpow.pop %v677
      %v679 = vmul.f32 %v595, 1.442695
      %v680 = vpow.pop %v679
      %v681 = vmul.f32 %v596, 1.442695
      %v682 = vpow.pop %v681
      %v683 = vmul.f32 %v597, 1.442695
      %v684 = vpow.pop %v683
      %v685 = vmul.f32 %v598, 1.442695
      %v686 = vpow.pop %v685
      %v687 = vmul.f32 %v599, 1.442695
      %v688 = vpow.pop %v687
      %v689 = vmul.f32 %v600, 1.442695
      %v690 = vpow.pop %v689
      %v691 = vmul.f32 %v601, 1.442695
      %v692 = vpow.pop %v691
      %v693 = vmul.f32 %v602, 1.442695
      %v694 = vpow.pop %v693
      %v695 = vmul.f32 %v603, 1.442695
      %v696 = vpow.pop %v695
      %v697 = vmul.f32 %v604, 1.442695
      %v698 = vpow.pop %v697
      %v699 = vmul.f32 %v605, 1.442695
      %v700 = vpow.pop %v699
      %v701 = vmul.f32 %v606, 1.442695
      %v702 = vpow.pop %v701
      %v703 = vmul.f32 %v607, 1.442695
      %v704 = vpow.pop %v703
      %v705 = vmul.f32 %v608, 1.442695
      %v706 = vpow.pop %v705
      %v707 = vmul.f32 %v609, 1.442695
      %v708 = vpow.pop %v707
      %v709 = vmul.f32 %v610, 1.442695
      %v710 = vpow.pop %v709
      %v711 = vmul.f32 %v611, 1.442695
      %v712 = vpow.pop %v711
      %v713 = vmul.f32 %v612, 1.442695
      %v714 = vpow.pop %v713
      %v715 = vmul.f32 %v613, 1.442695
      %v716 = vpow.pop %v715
      %v717 = vmul.f32 %v614, 1.442695
      %v718 = vpow.pop %v717
      %v719 = vmul.f32 %v615, 1.442695
      %v720 = vpow.pop %v719
      %v721 = vmul.f32 %v616, 1.442695
      %v722 = vpow.pop %v721
      %v723 = vmul.f32 %v617, 1.442695
      %v724 = vpow.pop %v723
      %v725 = vmul.f32 %v618, 1.442695
      %v726 = vpow.pop %v725
      %v727 = vmul.f32 %v619, 1.442695
      %v728 = vpow.pop %v727
      %v729 = vmul.f32 %v620, 1.442695
      %v730 = vpow.pop %v729
      %v731 = vmul.f32 %v621, 1.442695
      %v732 = vpow.pop %v731
      %v733 = vmul.f32 %v622, 1.442695
      %v734 = vpow.pop %v733
      %v735 = vmul.f32 %v623, 1.442695
      %v736 = vpow.pop %v735
      %v737 = vmul.f32 %v624, 1.442695
      %v738 = vpow.pop %v737
      %v739 = vmul.f32 %v625, 1.442695
      %v740 = vpow.pop %v739
      %v741 = vmul.f32 %v626, 1.442695
      %v742 = vpow.pop %v741
      %v743 = vmul.f32 %v627, 1.442695
      %v744 = vpow.pop %v743
      %v745 = vmul.f32 %v628, 1.442695
      %v746 = vpow.pop %v745
      %v747 = vmul.f32 %v629, 1.442695
      %v748 = vpow.pop %v747
      %v749 = vmul.f32 %v630, 1.442695
      %v750 = vpow.pop %v749
      %v751 = vmul.f32 %v631, 1.442695
      %v752 = vpow.pop %v751
      %v753 = vmul.f32 %v632, 1.442695
      %v754 = vpow.pop %v753
      %v755 = vmul.f32 %v633, 1.442695
      %v756 = vpow.pop %v755
      %v757 = vmul.f32 %v634, 1.442695
      %v758 = vpow.pop %v757
      %v759 = vmul.f32 %v635, 1.442695
      %v760 = vpow.pop %v759
      %v761 = vmul.f32 %v636, 1.442695
      %v762 = vpow.pop %v761
      %v763 = vmul.f32 %v637, 1.442695
      %v764 = vpow.pop %v763
      %v765 = vmul.f32 %v638, 1.442695
      %v766 = vpow.pop %v765
      %v767 = vadd.f32 %v640, 1.0
      %v768 = vadd.f32 %v642, 1.0
      %v769 = vadd.f32 %v644, 1.0
      %v770 = vadd.f32 %v646, 1.0
      %v771 = vadd.f32 %v648, 1.0
      %v772 = vadd.f32 %v650, 1.0
      %v773 = vadd.f32 %v652, 1.0
      %v774 = vadd.f32 %v654, 1.0
      %v775 = vadd.f32 %v656, 1.0
      %v776 = vadd.f32 %v658, 1.0
      %v777 = vadd.f32 %v660, 1.0
      %v778 = vadd.f32 %v662, 1.0
      %v779 = vadd.f32 %v664, 1.0
      %v780 = vadd.f32 %v666, 1.0
      %v781 = vadd.f32 %v668, 1.0
      %v782 = vadd.f32 %v670, 1.0
      %v783 = vadd.f32 %v672, 1.0
      %v784 = vadd.f32 %v674, 1.0
      %v785 = vadd.f32 %v676, 1.0
      %v786 = vadd.f32 %v678, 1.0
      %v787 = vadd.f32 %v680, 1.0
      %v788 = vadd.f32 %v682, 1.0
      %v789 = vadd.f32 %v684, 1.0
      %v790 = vadd.f32 %v686, 1.0
      %v791 = vadd.f32 %v688, 1.0
      %v792 = vadd.f32 %v690, 1.0
      %v793 = vadd.f32 %v692, 1.0
      %v794 = vadd.f32 %v694, 1.0
      %v795 = vadd.f32 %v696, 1.0
      %v796 = vadd.f32 %v698, 1.0
      %v797 = vadd.f32 %v700, 1.0
      %v798 = vadd.f32 %v702, 1.0
      %v799 = vadd.f32 %v704, 1.0
      %v800 = vadd.f32 %v706, 1.0
      %v801 = vadd.f32 %v708, 1.0
      %v802 = vadd.f32 %v710, 1.0
      %v803 = vadd.f32 %v712, 1.0
      %v804 = vadd.f32 %v714, 1.0
      %v805 = vadd.f32 %v716, 1.0
      %v806 = vadd.f32 %v718, 1.0
      %v807 = vadd.f32 %v720, 1.0
      %v808 = vadd.f32 %v722, 1.0
      %v809 = vadd.f32 %v724, 1.0
      %v810 = vadd.f32 %v726, 1.0
      %v811 = vadd.f32 %v728, 1.0
      %v812 = vadd.f32 %v730, 1.0
      %v813 = vadd.f32 %v732, 1.0
      %v814 = vadd.f32 %v734, 1.0
      %v815 = vadd.f32 %v736, 1.0
      %v816 = vadd.f32 %v738, 1.0
      %v817 = vadd.f32 %v740, 1.0
      %v818 = vadd.f32 %v742, 1.0
      %v819 = vadd.f32 %v744, 1.0
      %v820 = vadd.f32 %v746, 1.0
      %v821 = vadd.f32 %v748, 1.0
      %v822 = vadd.f32 %v750, 1.0
      %v823 = vadd.f32 %v752, 1.0
      %v824 = vadd.f32 %v754, 1.0
      %v825 = vadd.f32 %v756, 1.0
      %v826 = vadd.f32 %v758, 1.0
      %v827 = vadd.f32 %v760, 1.0
      %v828 = vadd.f32 %v762, 1.0
      %v829 = vadd.f32 %v764, 1.0
      %v830 = vadd.f32 %v766, 1.0
      %v831 = vrcp.pop %v767
      %v832 = vmul.f32 1.0, %v831
      %v833 = vrcp.pop %v768
      %v834 = vmul.f32 1.0, %v833
      %v835 = vrcp.pop %v769
      %v836 = vmul.f32 1.0, %v835
      %v837 = vrcp.pop %v770
      %v838 = vmul.f32 1.0, %v837
      %v839 = vrcp.pop %v771
      %v840 = vmul.f32 1.0, %v839
      %v841 = vrcp.pop %v772
      %v842 = vmul.f32 1.0, %v841
      %v843 = vrcp.pop %v773
      %v844 = vmul.f32 1.0, %v843
      %v845 = vrcp.pop %v774
      %v846 = vmul.f32 1.0, %v845
      %v847 = vrcp.pop %v775
      %v848 = vmul.f32 1.0, %v847
      %v849 = vrcp.pop %v776
      %v850 = vmul.f32 1.0, %v849
      %v851 = vrcp.pop %v777
      %v852 = vmul.f32 1.0, %v851
      %v853 = vrcp.pop %v778
      %v854 = vmul.f32 1.0, %v853
      %v855 = vrcp.pop %v779
      %v856 = vmul.f32 1.0, %v855
      %v857 = vrcp.pop %v780
      %v858 = vmul.f32 1.0, %v857
      %v859 = vrcp.pop %v781
      %v860 = vmul.f32 1.0, %v859
      %v861 = vrcp.pop %v782
      %v862 = vmul.f32 1.0, %v861
      %v863 = vrcp.pop %v783
      %v864 = vmul.f32 1.0, %v863
      %v865 = vrcp.pop %v784
      %v866 = vmul.f32 1.0, %v865
      %v867 = vrcp.pop %v785
      %v868 = vmul.f32 1.0, %v867
      %v869 = vrcp.pop %v786
      %v870 = vmul.f32 1.0, %v869
      %v871 = vrcp.pop %v787
      %v872 = vmul.f32 1.0, %v871
      %v873 = vrcp.pop %v788
      %v874 = vmul.f32 1.0, %v873
      %v875 = vrcp.pop %v789
      %v876 = vmul.f32 1.0, %v875
      %v877 = vrcp.pop %v790
      %v878 = vmul.f32 1.0, %v877
      %v879 = vrcp.pop %v791
      %v880 = vmul.f32 1.0, %v879
      %v881 = vrcp.pop %v792
      %v882 = vmul.f32 1.0, %v881
      %v883 = vrcp.pop %v793
      %v884 = vmul.f32 1.0, %v883
      %v885 = vrcp.pop %v794
      %v886 = vmul.f32 1.0, %v885
      %v887 = vrcp.pop %v795
      %v888 = vmul.f32 1.0, %v887
      %v889 = vrcp.pop %v796
      %v890 = vmul.f32 1.0, %v889
      %v891 = vrcp.pop %v797
      %v892 = vmul.f32 1.0, %v891
      %v893 = vrcp.pop %v798
      %v894 = vmul.f32 1.0, %v893
      %v895 = vrcp.pop %v799
      %v896 = vmul.f32 1.0, %v895
      %v897 = vrcp.pop %v800
      %v898 = vmul.f32 1.0, %v897
      %v899 = vrcp.pop %v801
      %v900 = vmul.f32 1.0, %v899
      %v901 = vrcp.pop %v802
      %v902 = vmul.f32 1.0, %v901
      %v903 = vrcp.pop %v803
      %v904 = vmul.f32 1.0, %v903
      %v905 = vrcp.pop %v804
      %v906 = vmul.f32 1.0, %v905
      %v907 = vrcp.pop %v805
      %v908 = vmul.f32 1.0, %v907
      %v909 = vrcp.pop %v806
      %v910 = vmul.f32 1.0, %v909
      %v911 = vrcp.pop %v807
      %v912 = vmul.f32 1.0, %v911
      %v913 = vrcp.pop %v808
      %v914 = vmul.f32 1.0, %v913
      %v915 = vrcp.pop %v809
      %v916 = vmul.f32 1.0, %v915
      %v917 = vrcp.pop %v810
      %v918 = vmul.f32 1.0, %v917
      %v919 = vrcp.pop %v811
      %v920 = vmul.f32 1.0, %v919
      %v921 = vrcp.pop %v812
      %v922 = vmul.f32 1.0, %v921
      %v923 = vrcp.pop %v813
      %v924 = vmul.f32 1.0, %v923
      %v925 = vrcp.pop %v814
      %v926 = vmul.f32 1.0, %v925
      %v927 = vrcp.pop %v815
      %v928 = vmul.f32 1.0, %v927
      %v929 = vrcp.pop %v816
      %v930 = vmul.f32 1.0, %v929
      %v931 = vrcp.pop %v817
      %v932 = vmul.f32 1.0, %v931
      %v933 = vrcp.pop %v818
      %v934 = vmul.f32 1.0, %v933
      %v935 = vrcp.pop %v819
      %v936 = vmul.f32 1.0, %v935
      %v937 = vrcp.pop %v820
      %v938 = vmul.f32 1.0, %v937
      %v939 = vrcp.pop %v821
      %v940 = vmul.f32 1.0, %v939
      %v941 = vrcp.pop %v822
      %v942 = vmul.f32 1.0, %v941
      %v943 = vrcp.pop %v823
      %v944 = vmul.f32 1.0, %v943
      %v945 = vrcp.pop %v824
      %v946 = vmul.f32 1.0, %v945
      %v947 = vrcp.pop %v825
      %v948 = vmul.f32 1.0, %v947
      %v949 = vrcp.pop %v826
      %v950 = vmul.f32 1.0, %v949
      %v951 = vrcp.pop %v827
      %v952 = vmul.f32 1.0, %v951
      %v953 = vrcp.pop %v828
      %v954 = vmul.f32 1.0, %v953
      %v955 = vrcp.pop %v829
      %v956 = vmul.f32 1.0, %v955
      %v957 = vrcp.pop %v830
      %v958 = vmul.f32 1.0, %v957
      %v959 = vlaneseq
      %v960 = vand.u32 %v959, 127
      %vm961 = vcmp.eq.s32.totalorder %v960, 0
      %v962 = vsub.f32 1.0, %v832
      %v963 = vsub.f32 1.0, %v834
      %v964 = vsub.f32 1.0, %v836
      %v965 = vsub.f32 1.0, %v838
      %v966 = vsub.f32 1.0, %v840
      %v967 = vsub.f32 1.0, %v842
      %v968 = vsub.f32 1.0, %v844
      %v969 = vsub.f32 1.0, %v846
      %v970 = vsub.f32 1.0, %v848
      %v971 = vsub.f32 1.0, %v850
      %v972 = vsub.f32 1.0, %v852
      %v973 = vsub.f32 1.0, %v854
      %v974 = vsub.f32 1.0, %v856
      %v975 = vsub.f32 1.0, %v858
      %v976 = vsub.f32 1.0, %v860
      %v977 = vsub.f32 1.0, %v862
      %v978 = vsub.f32 1.0, %v864
      %v979 = vsub.f32 1.0, %v866
      %v980 = vsub.f32 1.0, %v868
      %v981 = vsub.f32 1.0, %v870
      %v982 = vsub.f32 1.0, %v872
      %v983 = vsub.f32 1.0, %v874
      %v984 = vsub.f32 1.0, %v876
      %v985 = vsub.f32 1.0, %v878
      %v986 = vsub.f32 1.0, %v880
      %v987 = vsub.f32 1.0, %v882
      %v988 = vsub.f32 1.0, %v884
      %v989 = vsub.f32 1.0, %v886
      %v990 = vsub.f32 1.0, %v888
      %v991 = vsub.f32 1.0, %v890
      %v992 = vsub.f32 1.0, %v892
      %v993 = vsub.f32 1.0, %v894
      %v994 = vsub.f32 1.0, %v896
      %v995 = vsub.f32 1.0, %v898
      %v996 = vsub.f32 1.0, %v900
      %v997 = vsub.f32 1.0, %v902
      %v998 = vsub.f32 1.0, %v904
      %v999 = vsub.f32 1.0, %v906
      %v1000 = vsub.f32 1.0, %v908
      %v1001 = vsub.f32 1.0, %v910
      %v1002 = vsub.f32 1.0, %v912
      %v1003 = vsub.f32 1.0, %v914
      %v1004 = vsub.f32 1.0, %v916
      %v1005 = vsub.f32 1.0, %v918
      %v1006 = vsub.f32 1.0, %v920
      %v1007 = vsub.f32 1.0, %v922
      %v1008 = vsub.f32 1.0, %v924
      %v1009 = vsub.f32 1.0, %v926
      %v1010 = vsub.f32 1.0, %v928
      %v1011 = vsub.f32 1.0, %v930
      %v1012 = vsub.f32 1.0, %v932
      %v1013 = vsub.f32 1.0, %v934
      %v1014 = vsub.f32 1.0, %v936
      %v1015 = vsub.f32 1.0, %v938
      %v1016 = vsub.f32 1.0, %v940
      %v1017 = vsub.f32 1.0, %v942
      %v1018 = vsub.f32 1.0, %v944
      %v1019 = vsub.f32 1.0, %v946
      %v1020 = vsub.f32 1.0, %v948
      %v1021 = vsub.f32 1.0, %v950
      %v1022 = vsub.f32 1.0, %v952
      %v1023 = vsub.f32 1.0, %v954
      %v1024 = vsub.f32 1.0, %v956
      %v1025 = vsub.f32 1.0, %v958
      %1027 = vset.pattern.permute.xlu0 0
      %1028 = vperm.xlu0 %1027, %v832
      %v1029 = vpop.permute.xlu0 %1028
      %1032 = vset.pattern.permute.xlu0 0
      %1033 = vperm.xlu0 %1032, %v834
      %v1034 = vpop.permute.xlu0 %1033
      %1037 = vset.pattern.permute.xlu0 0
      %1038 = vperm.xlu0 %1037, %v836
      %v1039 = vpop.permute.xlu0 %1038
      %1042 = vset.pattern.permute.xlu0 0
      %1043 = vperm.xlu0 %1042, %v838
      %v1044 = vpop.permute.xlu0 %1043
      %1047 = vset.pattern.permute.xlu0 0
      %1048 = vperm.xlu0 %1047, %v840
      %v1049 = vpop.permute.xlu0 %1048
      %1052 = vset.pattern.permute.xlu0 0
      %1053 = vperm.xlu0 %1052, %v842
      %v1054 = vpop.permute.xlu0 %1053
      %1057 = vset.pattern.permute.xlu0 0
      %1058 = vperm.xlu0 %1057, %v844
      %v1059 = vpop.permute.xlu0 %1058
      %1062 = vset.pattern.permute.xlu0 0
      %1063 = vperm.xlu0 %1062, %v846
      %v1064 = vpop.permute.xlu0 %1063
      %1067 = vset.pattern.permute.xlu0 0
      %1068 = vperm.xlu0 %1067, %v848
      %v1069 = vpop.permute.xlu0 %1068
      %1072 = vset.pattern.permute.xlu0 0
      %1073 = vperm.xlu0 %1072, %v850
      %v1074 = vpop.permute.xlu0 %1073
      %1077 = vset.pattern.permute.xlu0 0
      %1078 = vperm.xlu0 %1077, %v852
      %v1079 = vpop.permute.xlu0 %1078
      %1082 = vset.pattern.permute.xlu0 0
      %1083 = vperm.xlu0 %1082, %v854
      %v1084 = vpop.permute.xlu0 %1083
      %1087 = vset.pattern.permute.xlu0 0
      %1088 = vperm.xlu0 %1087, %v856
      %v1089 = vpop.permute.xlu0 %1088
      %1092 = vset.pattern.permute.xlu0 0
      %1093 = vperm.xlu0 %1092, %v858
      %v1094 = vpop.permute.xlu0 %1093
      %1097 = vset.pattern.permute.xlu0 0
      %1098 = vperm.xlu0 %1097, %v860
      %v1099 = vpop.permute.xlu0 %1098
      %1102 = vset.pattern.permute.xlu0 0
      %1103 = vperm.xlu0 %1102, %v862
      %v1104 = vpop.permute.xlu0 %1103
      %1107 = vset.pattern.permute.xlu0 0
      %1108 = vperm.xlu0 %1107, %v864
      %v1109 = vpop.permute.xlu0 %1108
      %1112 = vset.pattern.permute.xlu0 0
      %1113 = vperm.xlu0 %1112, %v866
      %v1114 = vpop.permute.xlu0 %1113
      %1117 = vset.pattern.permute.xlu0 0
      %1118 = vperm.xlu0 %1117, %v868
      %v1119 = vpop.permute.xlu0 %1118
      %1122 = vset.pattern.permute.xlu0 0
      %1123 = vperm.xlu0 %1122, %v870
      %v1124 = vpop.permute.xlu0 %1123
      %1127 = vset.pattern.permute.xlu0 0
      %1128 = vperm.xlu0 %1127, %v872
      %v1129 = vpop.permute.xlu0 %1128
      %1132 = vset.pattern.permute.xlu0 0
      %1133 = vperm.xlu0 %1132, %v874
      %v1134 = vpop.permute.xlu0 %1133
      %1137 = vset.pattern.permute.xlu0 0
      %1138 = vperm.xlu0 %1137, %v876
      %v1139 = vpop.permute.xlu0 %1138
      %1142 = vset.pattern.permute.xlu0 0
      %1143 = vperm.xlu0 %1142, %v878
      %v1144 = vpop.permute.xlu0 %1143
      %1147 = vset.pattern.permute.xlu0 0
      %1148 = vperm.xlu0 %1147, %v880
      %v1149 = vpop.permute.xlu0 %1148
      %1152 = vset.pattern.permute.xlu0 0
      %1153 = vperm.xlu0 %1152, %v882
      %v1154 = vpop.permute.xlu0 %1153
      %1157 = vset.pattern.permute.xlu0 0
      %1158 = vperm.xlu0 %1157, %v884
      %v1159 = vpop.permute.xlu0 %1158
      %1162 = vset.pattern.permute.xlu0 0
      %1163 = vperm.xlu0 %1162, %v886
      %v1164 = vpop.permute.xlu0 %1163
      %1167 = vset.pattern.permute.xlu0 0
      %1168 = vperm.xlu0 %1167, %v888
      %v1169 = vpop.permute.xlu0 %1168
      %1172 = vset.pattern.permute.xlu0 0
      %1173 = vperm.xlu0 %1172, %v890
      %v1174 = vpop.permute.xlu0 %1173
      %1177 = vset.pattern.permute.xlu0 0
      %1178 = vperm.xlu0 %1177, %v892
      %v1179 = vpop.permute.xlu0 %1178
      %1182 = vset.pattern.permute.xlu0 0
      %1183 = vperm.xlu0 %1182, %v894
      %v1184 = vpop.permute.xlu0 %1183
      %1187 = vset.pattern.permute.xlu0 0
      %1188 = vperm.xlu0 %1187, %v896
      %v1189 = vpop.permute.xlu0 %1188
      %1192 = vset.pattern.permute.xlu0 0
      %1193 = vperm.xlu0 %1192, %v898
      %v1194 = vpop.permute.xlu0 %1193
      %1197 = vset.pattern.permute.xlu0 0
      %1198 = vperm.xlu0 %1197, %v900
      %v1199 = vpop.permute.xlu0 %1198
      %1202 = vset.pattern.permute.xlu0 0
      %1203 = vperm.xlu0 %1202, %v902
      %v1204 = vpop.permute.xlu0 %1203
      %1207 = vset.pattern.permute.xlu0 0
      %1208 = vperm.xlu0 %1207, %v904
      %v1209 = vpop.permute.xlu0 %1208
      %1212 = vset.pattern.permute.xlu0 0
      %1213 = vperm.xlu0 %1212, %v906
      %v1214 = vpop.permute.xlu0 %1213
      %1217 = vset.pattern.permute.xlu0 0
      %1218 = vperm.xlu0 %1217, %v908
      %v1219 = vpop.permute.xlu0 %1218
      %1222 = vset.pattern.permute.xlu0 0
      %1223 = vperm.xlu0 %1222, %v910
      %v1224 = vpop.permute.xlu0 %1223
      %1227 = vset.pattern.permute.xlu0 0
      %1228 = vperm.xlu0 %1227, %v912
      %v1229 = vpop.permute.xlu0 %1228
      %1232 = vset.pattern.permute.xlu0 0
      %1233 = vperm.xlu0 %1232, %v914
      %v1234 = vpop.permute.xlu0 %1233
      %1237 = vset.pattern.permute.xlu0 0
      %1238 = vperm.xlu0 %1237, %v916
      %v1239 = vpop.permute.xlu0 %1238
      %1242 = vset.pattern.permute.xlu0 0
      %1243 = vperm.xlu0 %1242, %v918
      %v1244 = vpop.permute.xlu0 %1243
      %1247 = vset.pattern.permute.xlu0 0
      %1248 = vperm.xlu0 %1247, %v920
      %v1249 = vpop.permute.xlu0 %1248
      %1252 = vset.pattern.permute.xlu0 0
      %1253 = vperm.xlu0 %1252, %v922
      %v1254 = vpop.permute.xlu0 %1253
      %1257 = vset.pattern.permute.xlu0 0
      %1258 = vperm.xlu0 %1257, %v924
      %v1259 = vpop.permute.xlu0 %1258
      %1262 = vset.pattern.permute.xlu0 0
      %1263 = vperm.xlu0 %1262, %v926
      %v1264 = vpop.permute.xlu0 %1263
      %1267 = vset.pattern.permute.xlu0 0
      %1268 = vperm.xlu0 %1267, %v928
      %v1269 = vpop.permute.xlu0 %1268
      %1272 = vset.pattern.permute.xlu0 0
      %1273 = vperm.xlu0 %1272, %v930
      %v1274 = vpop.permute.xlu0 %1273
      %1277 = vset.pattern.permute.xlu0 0
      %1278 = vperm.xlu0 %1277, %v932
      %v1279 = vpop.permute.xlu0 %1278
      %1282 = vset.pattern.permute.xlu0 0
      %1283 = vperm.xlu0 %1282, %v934
      %v1284 = vpop.permute.xlu0 %1283
      %1287 = vset.pattern.permute.xlu0 0
      %1288 = vperm.xlu0 %1287, %v936
      %v1289 = vpop.permute.xlu0 %1288
      %1292 = vset.pattern.permute.xlu0 0
      %1293 = vperm.xlu0 %1292, %v938
      %v1294 = vpop.permute.xlu0 %1293
      %1297 = vset.pattern.permute.xlu0 0
      %1298 = vperm.xlu0 %1297, %v940
      %v1299 = vpop.permute.xlu0 %1298
      %1302 = vset.pattern.permute.xlu0 0
      %1303 = vperm.xlu0 %1302, %v942
      %v1304 = vpop.permute.xlu0 %1303
      %1307 = vset.pattern.permute.xlu0 0
      %1308 = vperm.xlu0 %1307, %v944
      %v1309 = vpop.permute.xlu0 %1308
      %1312 = vset.pattern.permute.xlu0 0
      %1313 = vperm.xlu0 %1312, %v946
      %v1314 = vpop.permute.xlu0 %1313
      %1317 = vset.pattern.permute.xlu0 0
      %1318 = vperm.xlu0 %1317, %v948
      %v1319 = vpop.permute.xlu0 %1318
      %1322 = vset.pattern.permute.xlu0 0
      %1323 = vperm.xlu0 %1322, %v950
      %v1324 = vpop.permute.xlu0 %1323
      %1327 = vset.pattern.permute.xlu0 0
      %1328 = vperm.xlu0 %1327, %v952
      %v1329 = vpop.permute.xlu0 %1328
      %1332 = vset.pattern.permute.xlu0 0
      %1333 = vperm.xlu0 %1332, %v954
      %v1334 = vpop.permute.xlu0 %1333
      %1337 = vset.pattern.permute.xlu0 0
      %1338 = vperm.xlu0 %1337, %v956
      %v1339 = vpop.permute.xlu0 %1338
      %1342 = vset.pattern.permute.xlu0 0
      %1343 = vperm.xlu0 %1342, %v958
      %v1344 = vpop.permute.xlu0 %1343
      %1347 = vset.pattern.permute.xlu0 0
      %1348 = vperm.xlu0 %1347, %v962
      %v1349 = vpop.permute.xlu0 %1348
      %1352 = vset.pattern.permute.xlu0 0
      %1353 = vperm.xlu0 %1352, %v963
      %v1354 = vpop.permute.xlu0 %1353
      %1357 = vset.pattern.permute.xlu0 0
      %1358 = vperm.xlu0 %1357, %v964
      %v1359 = vpop.permute.xlu0 %1358
      %1362 = vset.pattern.permute.xlu0 0
      %1363 = vperm.xlu0 %1362, %v965
      %v1364 = vpop.permute.xlu0 %1363
      %1367 = vset.pattern.permute.xlu0 0
      %1368 = vperm.xlu0 %1367, %v966
      %v1369 = vpop.permute.xlu0 %1368
      %1372 = vset.pattern.permute.xlu0 0
      %1373 = vperm.xlu0 %1372, %v967
      %v1374 = vpop.permute.xlu0 %1373
      %1377 = vset.pattern.permute.xlu0 0
      %1378 = vperm.xlu0 %1377, %v968
      %v1379 = vpop.permute.xlu0 %1378
      %1382 = vset.pattern.permute.xlu0 0
      %1383 = vperm.xlu0 %1382, %v969
      %v1384 = vpop.permute.xlu0 %1383
      %1387 = vset.pattern.permute.xlu0 0
      %1388 = vperm.xlu0 %1387, %v970
      %v1389 = vpop.permute.xlu0 %1388
      %1392 = vset.pattern.permute.xlu0 0
      %1393 = vperm.xlu0 %1392, %v971
      %v1394 = vpop.permute.xlu0 %1393
      %1397 = vset.pattern.permute.xlu0 0
      %1398 = vperm.xlu0 %1397, %v972
      %v1399 = vpop.permute.xlu0 %1398
      %1402 = vset.pattern.permute.xlu0 0
      %1403 = vperm.xlu0 %1402, %v973
      %v1404 = vpop.permute.xlu0 %1403
      %1407 = vset.pattern.permute.xlu0 0
      %1408 = vperm.xlu0 %1407, %v974
      %v1409 = vpop.permute.xlu0 %1408
      %1412 = vset.pattern.permute.xlu0 0
      %1413 = vperm.xlu0 %1412, %v975
      %v1414 = vpop.permute.xlu0 %1413
      %1417 = vset.pattern.permute.xlu0 0
      %1418 = vperm.xlu0 %1417, %v976
      %v1419 = vpop.permute.xlu0 %1418
      %1422 = vset.pattern.permute.xlu0 0
      %1423 = vperm.xlu0 %1422, %v977
      %v1424 = vpop.permute.xlu0 %1423
      %1427 = vset.pattern.permute.xlu0 0
      %1428 = vperm.xlu0 %1427, %v978
      %v1429 = vpop.permute.xlu0 %1428
      %1432 = vset.pattern.permute.xlu0 0
      %1433 = vperm.xlu0 %1432, %v979
      %v1434 = vpop.permute.xlu0 %1433
      %1437 = vset.pattern.permute.xlu0 0
      %1438 = vperm.xlu0 %1437, %v980
      %v1439 = vpop.permute.xlu0 %1438
      %1442 = vset.pattern.permute.xlu0 0
      %1443 = vperm.xlu0 %1442, %v981
      %v1444 = vpop.permute.xlu0 %1443
      %1447 = vset.pattern.permute.xlu0 0
      %1448 = vperm.xlu0 %1447, %v982
      %v1449 = vpop.permute.xlu0 %1448
      %1452 = vset.pattern.permute.xlu0 0
      %1453 = vperm.xlu0 %1452, %v983
      %v1454 = vpop.permute.xlu0 %1453
      %1457 = vset.pattern.permute.xlu0 0
      %1458 = vperm.xlu0 %1457, %v984
      %v1459 = vpop.permute.xlu0 %1458
      %1462 = vset.pattern.permute.xlu0 0
      %1463 = vperm.xlu0 %1462, %v985
      %v1464 = vpop.permute.xlu0 %1463
      %1467 = vset.pattern.permute.xlu0 0
      %1468 = vperm.xlu0 %1467, %v986
      %v1469 = vpop.permute.xlu0 %1468
      %1472 = vset.pattern.permute.xlu0 0
      %1473 = vperm.xlu0 %1472, %v987
      %v1474 = vpop.permute.xlu0 %1473
      %1477 = vset.pattern.permute.xlu0 0
      %1478 = vperm.xlu0 %1477, %v988
      %v1479 = vpop.permute.xlu0 %1478
      %1482 = vset.pattern.permute.xlu0 0
      %1483 = vperm.xlu0 %1482, %v989
      %v1484 = vpop.permute.xlu0 %1483
      %1487 = vset.pattern.permute.xlu0 0
      %1488 = vperm.xlu0 %1487, %v990
      %v1489 = vpop.permute.xlu0 %1488
      %1492 = vset.pattern.permute.xlu0 0
      %1493 = vperm.xlu0 %1492, %v991
      %v1494 = vpop.permute.xlu0 %1493
      %1497 = vset.pattern.permute.xlu0 0
      %1498 = vperm.xlu0 %1497, %v992
      %v1499 = vpop.permute.xlu0 %1498
      %1502 = vset.pattern.permute.xlu0 0
      %1503 = vperm.xlu0 %1502, %v993
      %v1504 = vpop.permute.xlu0 %1503
      %1507 = vset.pattern.permute.xlu0 0
      %1508 = vperm.xlu0 %1507, %v994
      %v1509 = vpop.permute.xlu0 %1508
      %1512 = vset.pattern.permute.xlu0 0
      %1513 = vperm.xlu0 %1512, %v995
      %v1514 = vpop.permute.xlu0 %1513
      %1517 = vset.pattern.permute.xlu0 0
      %1518 = vperm.xlu0 %1517, %v996
      %v1519 = vpop.permute.xlu0 %1518
      %1522 = vset.pattern.permute.xlu0 0
      %1523 = vperm.xlu0 %1522, %v997
      %v1524 = vpop.permute.xlu0 %1523
      %1527 = vset.pattern.permute.xlu0 0
      %1528 = vperm.xlu0 %1527, %v998
      %v1529 = vpop.permute.xlu0 %1528
      %1532 = vset.pattern.permute.xlu0 0
      %1533 = vperm.xlu0 %1532, %v999
      %v1534 = vpop.permute.xlu0 %1533
      %1537 = vset.pattern.permute.xlu0 0
      %1538 = vperm.xlu0 %1537, %v1000
      %v1539 = vpop.permute.xlu0 %1538
      %1542 = vset.pattern.permute.xlu0 0
      %1543 = vperm.xlu0 %1542, %v1001
      %v1544 = vpop.permute.xlu0 %1543
      %1547 = vset.pattern.permute.xlu0 0
      %1548 = vperm.xlu0 %1547, %v1002
      %v1549 = vpop.permute.xlu0 %1548
      %1552 = vset.pattern.permute.xlu0 0
      %1553 = vperm.xlu0 %1552, %v1003
      %v1554 = vpop.permute.xlu0 %1553
      %1557 = vset.pattern.permute.xlu0 0
      %1558 = vperm.xlu0 %1557, %v1004
      %v1559 = vpop.permute.xlu0 %1558
      %1562 = vset.pattern.permute.xlu0 0
      %1563 = vperm.xlu0 %1562, %v1005
      %v1564 = vpop.permute.xlu0 %1563
      %1567 = vset.pattern.permute.xlu0 0
      %1568 = vperm.xlu0 %1567, %v1006
      %v1569 = vpop.permute.xlu0 %1568
      %1572 = vset.pattern.permute.xlu0 0
      %1573 = vperm.xlu0 %1572, %v1007
      %v1574 = vpop.permute.xlu0 %1573
      %1577 = vset.pattern.permute.xlu0 0
      %1578 = vperm.xlu0 %1577, %v1008
      %v1579 = vpop.permute.xlu0 %1578
      %1582 = vset.pattern.permute.xlu0 0
      %1583 = vperm.xlu0 %1582, %v1009
      %v1584 = vpop.permute.xlu0 %1583
      %1587 = vset.pattern.permute.xlu0 0
      %1588 = vperm.xlu0 %1587, %v1010
      %v1589 = vpop.permute.xlu0 %1588
      %1592 = vset.pattern.permute.xlu0 0
      %1593 = vperm.xlu0 %1592, %v1011
      %v1594 = vpop.permute.xlu0 %1593
      %1597 = vset.pattern.permute.xlu0 0
      %1598 = vperm.xlu0 %1597, %v1012
      %v1599 = vpop.permute.xlu0 %1598
      %1602 = vset.pattern.permute.xlu0 0
      %1603 = vperm.xlu0 %1602, %v1013
      %v1604 = vpop.permute.xlu0 %1603
      %1607 = vset.pattern.permute.xlu0 0
      %1608 = vperm.xlu0 %1607, %v1014
      %v1609 = vpop.permute.xlu0 %1608
      %1612 = vset.pattern.permute.xlu0 0
      %1613 = vperm.xlu0 %1612, %v1015
      %v1614 = vpop.permute.xlu0 %1613
      %1617 = vset.pattern.permute.xlu0 0
      %1618 = vperm.xlu0 %1617, %v1016
      %v1619 = vpop.permute.xlu0 %1618
      %1622 = vset.pattern.permute.xlu0 0
      %1623 = vperm.xlu0 %1622, %v1017
      %v1624 = vpop.permute.xlu0 %1623
      %1627 = vset.pattern.permute.xlu0 0
      %1628 = vperm.xlu0 %1627, %v1018
      %v1629 = vpop.permute.xlu0 %1628
      %1632 = vset.pattern.permute.xlu0 0
      %1633 = vperm.xlu0 %1632, %v1019
      %v1634 = vpop.permute.xlu0 %1633
      %1637 = vset.pattern.permute.xlu0 0
      %1638 = vperm.xlu0 %1637, %v1020
      %v1639 = vpop.permute.xlu0 %1638
      %1642 = vset.pattern.permute.xlu0 0
      %1643 = vperm.xlu0 %1642, %v1021
      %v1644 = vpop.permute.xlu0 %1643
      %1647 = vset.pattern.permute.xlu0 0
      %1648 = vperm.xlu0 %1647, %v1022
      %v1649 = vpop.permute.xlu0 %1648
      %1652 = vset.pattern.permute.xlu0 0
      %1653 = vperm.xlu0 %1652, %v1023
      %v1654 = vpop.permute.xlu0 %1653
      %1657 = vset.pattern.permute.xlu0 0
      %1658 = vperm.xlu0 %1657, %v1024
      %v1659 = vpop.permute.xlu0 %1658
      %1662 = vset.pattern.permute.xlu0 0
      %1663 = vperm.xlu0 %1662, %v1025
      %v1664 = vpop.permute.xlu0 %1663
      %v1666 = vsel %vm961, %v1029, %v1349
      %v1667 = vsel %vm961, %v1034, %v1354
      %v1668 = vsel %vm961, %v1039, %v1359
      %v1669 = vsel %vm961, %v1044, %v1364
      %v1670 = vsel %vm961, %v1049, %v1369
      %v1671 = vsel %vm961, %v1054, %v1374
      %v1672 = vsel %vm961, %v1059, %v1379
      %v1673 = vsel %vm961, %v1064, %v1384
      %v1674 = vsel %vm961, %v1069, %v1389
      %v1675 = vsel %vm961, %v1074, %v1394
      %v1676 = vsel %vm961, %v1079, %v1399
      %v1677 = vsel %vm961, %v1084, %v1404
      %v1678 = vsel %vm961, %v1089, %v1409
      %v1679 = vsel %vm961, %v1094, %v1414
      %v1680 = vsel %vm961, %v1099, %v1419
      %v1681 = vsel %vm961, %v1104, %v1424
      %v1682 = vsel %vm961, %v1109, %v1429
      %v1683 = vsel %vm961, %v1114, %v1434
      %v1684 = vsel %vm961, %v1119, %v1439
      %v1685 = vsel %vm961, %v1124, %v1444
      %v1686 = vsel %vm961, %v1129, %v1449
      %v1687 = vsel %vm961, %v1134, %v1454
      %v1688 = vsel %vm961, %v1139, %v1459
      %v1689 = vsel %vm961, %v1144, %v1464
      %v1690 = vsel %vm961, %v1149, %v1469
      %v1691 = vsel %vm961, %v1154, %v1474
      %v1692 = vsel %vm961, %v1159, %v1479
      %v1693 = vsel %vm961, %v1164, %v1484
      %v1694 = vsel %vm961, %v1169, %v1489
      %v1695 = vsel %vm961, %v1174, %v1494
      %v1696 = vsel %vm961, %v1179, %v1499
      %v1697 = vsel %vm961, %v1184, %v1504
      %v1698 = vsel %vm961, %v1189, %v1509
      %v1699 = vsel %vm961, %v1194, %v1514
      %v1700 = vsel %vm961, %v1199, %v1519
      %v1701 = vsel %vm961, %v1204, %v1524
      %v1702 = vsel %vm961, %v1209, %v1529
      %v1703 = vsel %vm961, %v1214, %v1534
      %v1704 = vsel %vm961, %v1219, %v1539
      %v1705 = vsel %vm961, %v1224, %v1544
      %v1706 = vsel %vm961, %v1229, %v1549
      %v1707 = vsel %vm961, %v1234, %v1554
      %v1708 = vsel %vm961, %v1239, %v1559
      %v1709 = vsel %vm961, %v1244, %v1564
      %v1710 = vsel %vm961, %v1249, %v1569
      %v1711 = vsel %vm961, %v1254, %v1574
      %v1712 = vsel %vm961, %v1259, %v1579
      %v1713 = vsel %vm961, %v1264, %v1584
      %v1714 = vsel %vm961, %v1269, %v1589
      %v1715 = vsel %vm961, %v1274, %v1594
      %v1716 = vsel %vm961, %v1279, %v1599
      %v1717 = vsel %vm961, %v1284, %v1604
      %v1718 = vsel %vm961, %v1289, %v1609
      %v1719 = vsel %vm961, %v1294, %v1614
      %v1720 = vsel %vm961, %v1299, %v1619
      %v1721 = vsel %vm961, %v1304, %v1624
      %v1722 = vsel %vm961, %v1309, %v1629
      %v1723 = vsel %vm961, %v1314, %v1634
      %v1724 = vsel %vm961, %v1319, %v1639
      %v1725 = vsel %vm961, %v1324, %v1644
      %v1726 = vsel %vm961, %v1329, %v1649
      %v1727 = vsel %vm961, %v1334, %v1654
      %v1728 = vsel %vm961, %v1339, %v1659
      %v1729 = vsel %vm961, %v1344, %v1664
      %vm1730 = vcmask 15360
      %1731 = vst.msk [vmem:[%s174] sm:$0xff] %vm1730, %v1666
      %1732 = vst.msk [vmem:[%s174 + $0x8] sm:$0xff] %vm1730, %v1667
      %1733 = vst.msk [vmem:[%s174 + $0x10] sm:$0xff] %vm1730, %v1668
      %1734 = vst.msk [vmem:[%s174 + $0x18] sm:$0xff] %vm1730, %v1669
      %1735 = vst.msk [vmem:[%s174 + $0x20] sm:$0xff] %vm1730, %v1670
      %1736 = vst.msk [vmem:[%s174 + $0x28] sm:$0xff] %vm1730, %v1671
      %1737 = vst.msk [vmem:[%s174 + $0x30] sm:$0xff] %vm1730, %v1672
      %1738 = vst.msk [vmem:[%s174 + $0x38] sm:$0xff] %vm1730, %v1673
      %1739 = vst.msk [vmem:[%s174 + $0x40] sm:$0xff] %vm1730, %v1674
      %1740 = vst.msk [vmem:[%s174 + $0x48] sm:$0xff] %vm1730, %v1675
      %1741 = vst.msk [vmem:[%s174 + $0x50] sm:$0xff] %vm1730, %v1676
      %1742 = vst.msk [vmem:[%s174 + $0x58] sm:$0xff] %vm1730, %v1677
      %1743 = vst.msk [vmem:[%s174 + $0x60] sm:$0xff] %vm1730, %v1678
      %1744 = vst.msk [vmem:[%s174 + $0x68] sm:$0xff] %vm1730, %v1679
      %1745 = vst.msk [vmem:[%s174 + $0x70] sm:$0xff] %vm1730, %v1680
      %1746 = vst.msk [vmem:[%s174 + $0x78] sm:$0xff] %vm1730, %v1681
      %1747 = vst.msk [vmem:[%s174 + $0x80] sm:$0xff] %vm1730, %v1682
      %1748 = vst.msk [vmem:[%s174 + $0x88] sm:$0xff] %vm1730, %v1683
      %1749 = vst.msk [vmem:[%s174 + $0x90] sm:$0xff] %vm1730, %v1684
      %1750 = vst.msk [vmem:[%s174 + $0x98] sm:$0xff] %vm1730, %v1685
      %1751 = vst.msk [vmem:[%s174 + $0xa0] sm:$0xff] %vm1730, %v1686
      %1752 = vst.msk [vmem:[%s174 + $0xa8] sm:$0xff] %vm1730, %v1687
      %1753 = vst.msk [vmem:[%s174 + $0xb0] sm:$0xff] %vm1730, %v1688
      %1754 = vst.msk [vmem:[%s174 + $0xb8] sm:$0xff] %vm1730, %v1689
      %1755 = vst.msk [vmem:[%s174 + $0xc0] sm:$0xff] %vm1730, %v1690
      %1756 = vst.msk [vmem:[%s174 + $0xc8] sm:$0xff] %vm1730, %v1691
      %1757 = vst.msk [vmem:[%s174 + $0xd0] sm:$0xff] %vm1730, %v1692
      %1758 = vst.msk [vmem:[%s174 + $0xd8] sm:$0xff] %vm1730, %v1693
      %1759 = vst.msk [vmem:[%s174 + $0xe0] sm:$0xff] %vm1730, %v1694
      %1760 = vst.msk [vmem:[%s174 + $0xe8] sm:$0xff] %vm1730, %v1695
      %1761 = vst.msk [vmem:[%s174 + $0xf0] sm:$0xff] %vm1730, %v1696
      %1762 = vst.msk [vmem:[%s174 + $0xf8] sm:$0xff] %vm1730, %v1697
      %1763 = vst.msk [vmem:[%s174 + $0x100] sm:$0xff] %vm1730, %v1698
      %1764 = vst.msk [vmem:[%s174 + $0x108] sm:$0xff] %vm1730, %v1699
      %1765 = vst.msk [vmem:[%s174 + $0x110] sm:$0xff] %vm1730, %v1700
      %1766 = vst.msk [vmem:[%s174 + $0x118] sm:$0xff] %vm1730, %v1701
      %1767 = vst.msk [vmem:[%s174 + $0x120] sm:$0xff] %vm1730, %v1702
      %1768 = vst.msk [vmem:[%s174 + $0x128] sm:$0xff] %vm1730, %v1703
      %1769 = vst.msk [vmem:[%s174 + $0x130] sm:$0xff] %vm1730, %v1704
      %1770 = vst.msk [vmem:[%s174 + $0x138] sm:$0xff] %vm1730, %v1705
      %1771 = vst.msk [vmem:[%s174 + $0x140] sm:$0xff] %vm1730, %v1706
      %1772 = vst.msk [vmem:[%s174 + $0x148] sm:$0xff] %vm1730, %v1707
      %1773 = vst.msk [vmem:[%s174 + $0x150] sm:$0xff] %vm1730, %v1708
      %1774 = vst.msk [vmem:[%s174 + $0x158] sm:$0xff] %vm1730, %v1709
      %1775 = vst.msk [vmem:[%s174 + $0x160] sm:$0xff] %vm1730, %v1710
      %1776 = vst.msk [vmem:[%s174 + $0x168] sm:$0xff] %vm1730, %v1711
      %1777 = vst.msk [vmem:[%s174 + $0x170] sm:$0xff] %vm1730, %v1712
      %1778 = vst.msk [vmem:[%s174 + $0x178] sm:$0xff] %vm1730, %v1713
      %1779 = vst.msk [vmem:[%s174 + $0x180] sm:$0xff] %vm1730, %v1714
      %1780 = vst.msk [vmem:[%s174 + $0x188] sm:$0xff] %vm1730, %v1715
      %1781 = vst.msk [vmem:[%s174 + $0x190] sm:$0xff] %vm1730, %v1716
      %1782 = vst.msk [vmem:[%s174 + $0x198] sm:$0xff] %vm1730, %v1717
      %1783 = vst.msk [vmem:[%s174 + $0x1a0] sm:$0xff] %vm1730, %v1718
      %1784 = vst.msk [vmem:[%s174 + $0x1a8] sm:$0xff] %vm1730, %v1719
      %1785 = vst.msk [vmem:[%s174 + $0x1b0] sm:$0xff] %vm1730, %v1720
      %1786 = vst.msk [vmem:[%s174 + $0x1b8] sm:$0xff] %vm1730, %v1721
      %1787 = vst.msk [vmem:[%s174 + $0x1c0] sm:$0xff] %vm1730, %v1722
      %1788 = vst.msk [vmem:[%s174 + $0x1c8] sm:$0xff] %vm1730, %v1723
      %1789 = vst.msk [vmem:[%s174 + $0x1d0] sm:$0xff] %vm1730, %v1724
      %1790 = vst.msk [vmem:[%s174 + $0x1d8] sm:$0xff] %vm1730, %v1725
      %1791 = vst.msk [vmem:[%s174 + $0x1e0] sm:$0xff] %vm1730, %v1726
      %1792 = vst.msk [vmem:[%s174 + $0x1e8] sm:$0xff] %vm1730, %v1727
      %1793 = vst.msk [vmem:[%s174 + $0x1f0] sm:$0xff] %vm1730, %v1728
      %1794 = vst.msk [vmem:[%s174 + $0x1f8] sm:$0xff] %vm1730, %v1729
      %s1795 = smul.u32 64, %s16
      %p1796 = scmp.lt.s32.totalorder %s1795, 255
      %s1797 = scalar_select %p1796, %s1795, 255
      %s1798 = smul.addr %s1797, 8
      %s1799 = scalar_lea.vmem %s3, %s1798
      // Predicated region
      $region33: #{up_transition_forward.19} parent=31 // pred_check
        %p1800 = pneg %p102
      $region34: #{up_transition_forward.19} parent=31 // pred_check_branch
        %1802 = sbr.rel (%p1800) target = $region36
      $region35: #{up_transition_forward.19} parent=31 // pred_region
        %s1803 = smul.u32 64, %s16
      $region36: #{up_transition_forward.19} parent=31 // pred_fallthru
        _
    $region32: #{up_transition_forward.19} parent=5 // pred_fallthru
      _
    %p1804 = scmp.le.s32.totalorder 2, %s11
    // Predicated region
    $region37: #{up_transition_forward.19} parent=5 // pred_check
      %p1805 = pneg %p1804
    $region38: #{up_transition_forward.19} parent=5 // pred_check_branch
      %1807 = sbr.rel (%p1805) target = $region40
    $region39: #{up_transition_forward.19} parent=5 // pred_region
      %s1808 = ssub.s32 %s11, 2
      // Predicated region
      $region41: #{up_transition_forward.19} parent=39 // pred_check
        %p1809 = pneg %p108
      $region42: #{up_transition_forward.19} parent=39 // pred_check_branch
        %1811 = sbr.rel (%p1809) target = $region44
      $region43: #{up_transition_forward.19} parent=39 // pred_region
        %s1812 = smul.u32 64, %s17
        %p1813 = scmp.lt.s32.totalorder %s1812, 255
        %s1814 = scalar_select %p1813, %s1812, 255
        %s1815 = smul.addr %s1814, 8
        %s1816 = scalar_lea.vmem %s3, %s1815
      $region44: #{up_transition_forward.19} parent=39 // pred_fallthru
        _
    $region40: #{up_transition_forward.19} parent=5 // pred_fallthru
      _
  $region6: #{up_transition_forward.19} parent=0 // loop_footer
    %s15 = sadd.s32 1, %s11
  $region7: #{up_transition_forward.19} parent=0 // loop_footer_branch
    %10 = sbr.rel target = $region3
  $region8: #{up_transition_forward.19} parent=0 // loop_exit
    _

</llo_original>
